<compile_context>
chip_gen: v5e
topology: v5e:2x2
jax: 0.10.0
libtpu: 0.0.40
codegen_flags: <defaults>
</compile_context>

<pallas_src>
import functools
import math

import jax
import jax.numpy as jnp
import numpy as np
from jax.experimental import pallas as pl
from jax.experimental.pallas import tpu as pltpu

EMA_CHANNEL = 18
CHANNEL_SPLIT_INDICES = [3, 6, 9, 12, 15]
NUM_BUCKETS = 180
DW_KERNEL = 7          # depthwise-conv kernel size of the conformer conv module
POST_KERNEL = 3        # conv_post kernel size (Conv1d(E, 1, 3))

# Packed weight-plane / bias-row indices -------------------------------------
WQ, WK, WV, WO, PW1A, PW1B, PW2 = range(7)                      # w_sq planes
(LN1_G, LN1_B, FFN1_B2, LNA_G, LNA_B, B_Q, B_K, B_V, B_O,
 LNC_G, LNC_B, PW1_BA, PW1_BB, PW2_B, LN2_G, LN2_B, FFN2_B2,
 LNF_G, LNF_B) = range(19)                                      # b_vec rows
NUM_VEC = 19


# ----------------------------- Pallas kernel --------------------------------

def _ln(x, g, b):
    mean = jnp.mean(x, axis=-1, keepdims=True)
    var = jnp.mean((x - mean) ** 2, axis=-1, keepdims=True)
    return (x - mean) * jax.lax.rsqrt(var + 1e-5) * g + b


def _dpd_fused_kernel(x_src_ref, tok_ref, selx_ref, selt_ref, bias_ref,
                      mask_ref, wpost_ref, bpost_ref,
                      wsq_ref, wfi_ref, wfo_ref, bvec_ref, bffn_ref, wdw_ref,
                      fmap_ref, post_ref, x_sc):
    """grid=(B, L): one batch element, one Conformer layer per grid step."""
    li = pl.program_id(1)
    n_layers = pl.num_programs(1)

    # Layer-0 prologue: build the token-interleaved (T, E) sequence for this
    # batch element directly in VMEM with two exact one-hot f32 matmuls.  This
    # replaces the 6 concatenates + reshape/permute chain of the PyTorch forward.
    @pl.when(li == 0)
    def _():
        x_sc[...] = (
            jnp.dot(selx_ref[...], x_src_ref[0],
                    preferred_element_type=jnp.float32) +
            jnp.dot(selt_ref[...], tok_ref[...],
                    preferred_element_type=jnp.float32))

    x = x_sc[...]                                   # (T, E) residual stream, f32
    T, E = x.shape

    def vec(i):                                     # (1, E) f32 LN/bias row
        return bvec_ref[0, i:i + 1, :]

    def mm(a, w):                                   # bf16 MXU operands, f32 acc
        return jnp.dot(a, w, preferred_element_type=jnp.float32)

    # ---- feed-forward 1 (half-step residual) ----
    h = _ln(x, vec(LN1_G), vec(LN1_B))
    h = mm(h.astype(jnp.bfloat16), wfi_ref[0, 0]) + bffn_ref[0, 0:1, :]
    h = h * jax.nn.sigmoid(h)                       # SiLU, f32
    h = mm(h.astype(jnp.bfloat16), wfo_ref[0, 0]) + vec(FFN1_B2)
    x = x + 0.5 * h

    # ---- single-head self-attention with T5 relative-position bias ----
    h = _ln(x, vec(LNA_G), vec(LNA_B))
    hb = h.astype(jnp.bfloat16)                     # cast once, reused 3x
    q = mm(hb, wsq_ref[0, WQ]) + vec(B_Q)           # separate (E,E) projections:
    k = mm(hb, wsq_ref[0, WK]) + vec(B_K)           # lane-aligned outputs, no
    v = mm(hb, wsq_ref[0, WV]) + vec(B_V)           # lane-offset slicing
    s = jnp.einsum("qd,kd->qk", q.astype(jnp.bfloat16), k.astype(jnp.bfloat16),
                   preferred_element_type=jnp.float32)
    s = s * (1.0 / math.sqrt(E)) + bias_ref[...]
    s = s - jnp.max(s, axis=-1, keepdims=True)
    p = jnp.exp(s)
    p = p * pl.reciprocal(jnp.sum(p, axis=-1, keepdims=True), approx=True)
    a = jnp.dot(p.astype(jnp.bfloat16), v.astype(jnp.bfloat16),
                preferred_element_type=jnp.float32)
    a = mm(a.astype(jnp.bfloat16), wsq_ref[0, WO]) + vec(B_O)
    x = x + a

    # ---- convolution module (native (T, E) layout -> zero transposes) ----
    h = _ln(x, vec(LNC_G), vec(LNC_B))
    hb = h.astype(jnp.bfloat16)
    ha = mm(hb, wsq_ref[0, PW1A]) + vec(PW1_BA)     # GLU value half
    hg = mm(hb, wsq_ref[0, PW1B]) + vec(PW1_BB)     # GLU gate half
    g = ha * jax.nn.sigmoid(hg)                     # (T, E) f32
    K = wdw_ref.shape[1]
    pad = (K - 1) // 2
    acc = jnp.zeros_like(g)
    for kk in range(K):                             # static unroll, K small
        shift = (pad - kk) % T
        r = g if shift == 0 else pltpu.roll(g, shift, 0)   # sublane (time) roll
        # edge mask pre-baked in mask_ref -> tap is roll + multiply-add only
        acc = acc + r * (mask_ref[kk] * wdw_ref[0, kk:kk + 1, :])
    acc = acc * jax.nn.sigmoid(acc)                 # SiLU, f32
    h = mm(acc.astype(jnp.bfloat16), wsq_ref[0, PW2]) + vec(PW2_B)
    x = x + h

    # ---- feed-forward 2 (half-step residual) + final LN ----
    h = _ln(x, vec(LN2_G), vec(LN2_B))
    h = mm(h.astype(jnp.bfloat16), wfi_ref[0, 1]) + bffn_ref[0, 1:2, :]
    h = h * jax.nn.sigmoid(h)
    h = mm(h.astype(jnp.bfloat16), wfo_ref[0, 1]) + vec(FFN2_B2)
    x = x + 0.5 * h
    x = _ln(x, vec(LNF_G), vec(LNF_B))

    x_sc[...] = x                                   # carried to the next layer
    fmap_ref[0, 0] = x                              # per-layer feature map

    # ---- conv_post epilogue folded into the last layer's grid step ----
    @pl.when(li == n_layers - 1)
    def _():
        PK = wpost_ref.shape[0]
        z = jnp.zeros_like(x)
        for kk in range(PK):
            r = x if kk == 0 else pltpu.roll(x, (-kk) % T, 0)
            z = z + r * wpost_ref[kk:kk + 1, :]
        # rows t >= T - PK + 1 contain wrapped data; the wrapper slices them off.
        post_ref[0] = jnp.sum(z, axis=-1, keepdims=True) + bpost_ref[...]


# ----------------------------- trace-time (numpy) helpers -------------------

def _build_selection_np(c, rep):
    """One-hot maps: (reshaped EMA rows, tokens) -> token-interleaved sequence."""
    ch = list(range(c))
    for idx in sorted(CHANNEL_SPLIT_INDICES, reverse=True):   # mirror torch.cat loop
        ch = ch[:idx] + [-1] + ch[idx:]
    ch.append(-2)                                             # end token
    n_ch = len(ch)
    T = rep * n_ch
    selx = np.zeros((T, c * rep), np.float32)
    selt = np.zeros((T, 2), np.float32)
    for r_i in range(rep):
        for j, oc in enumerate(ch):
            row = r_i * n_ch + j
            if oc >= 0:
                selx[row, oc * rep + r_i] = 1.0
            else:
                selt[row, 0 if oc == -1 else 1] = 1.0
    return selx, selt, n_ch


def _t5_buckets_np(T, num_buckets=NUM_BUCKETS, max_distance=128):
    rel = np.arange(T)[None, :] - np.arange(T)[:, None]       # key - query
    nb = num_buckets // 2
    ret = (rel > 0).astype(np.int64) * nb
    n = np.abs(rel)
    max_exact = nb // 2
    large = max_exact + (
        np.log(np.maximum(n, 1).astype(np.float64) / max_exact)
        / math.log(max_distance / max_exact) * (nb - max_exact)).astype(np.int64)
    large = np.minimum(large, nb - 1)
    return ret + np.where(n < max_exact, n, large)


def _dw_tap_mask_np(T, K):
    pad = (K - 1) // 2
    m = np.zeros((K, T, 1), np.float32)
    for kk in range(K):
        lo = max(0, pad - kk)
        hi = T + min(0, pad - kk)
        m[kk, lo:hi, 0] = 1.0
    return m


# ----------------------------- forward wrapper -------------------------------

def dpd_forward(params, x, duration, n_head=1):
    b, c, t = x.shape
    assert c == EMA_CHANNEL, "check the tensor size"
    assert n_head == 1  # TODO(synk): only n_head == 1 implemented
    E = duration * n_head
    rep = 90 // E
    assert t == duration * rep
    D = duration
    FF = 4 * E
    L = params["w_sq"].shape[0]
    K = params["w_dw"].shape[1]
    PK = params["conv_post_v"].shape[2]

    # Static (trace-time) constants.
    selx_np, selt_np, n_ch = _build_selection_np(c, rep)
    T = rep * n_ch
    buckets_np = _t5_buckets_np(T)
    mask_np = _dw_tap_mask_np(T, K)

    # Tiny XLA prep; everything heavy runs inside the single fused Pallas call.
    x_src = x.reshape(b, c * rep, D)
    tok = jnp.stack([params["channel_split_token"], params["channel_end_token"]])
    pos_bias = params["rel_emb"][jnp.asarray(buckets_np), 0]          # (T, T)
    v = params["conv_post_v"]
    w_post = params["conv_post_g"] * v * jax.lax.rsqrt(jnp.sum(v * v))  # weight_norm
    w_post = jnp.transpose(w_post[0])                                  # (PK, E)
    b_post = params["conv_post_b"].reshape(1, 1)

    fmap_arr, post = pl.pallas_call(
        _dpd_fused_kernel,
        out_shape=(jax.ShapeDtypeStruct((L, b, T, E), jnp.float32),
                   jax.ShapeDtypeStruct((b, T, 1), jnp.float32)),
        grid=(b, L),
        in_specs=[
            pl.BlockSpec((1, c * rep, D), lambda bi, li: (bi, 0, 0)),   # x rows
            pl.BlockSpec((2, E), lambda bi, li: (0, 0)),                # tokens
            pl.BlockSpec((T, c * rep), lambda bi, li: (0, 0)),          # selx
            pl.BlockSpec((T, 2), lambda bi, li: (0, 0)),                # selt
            pl.BlockSpec((T, T), lambda bi, li: (0, 0)),                # pos bias
            pl.BlockSpec((K, T, 1), lambda bi, li: (0, 0, 0)),          # tap mask
            pl.BlockSpec((PK, E), lambda bi, li: (0, 0)),               # conv_post w
            pl.BlockSpec((1, 1), lambda bi, li: (0, 0)),                # conv_post b
            pl.BlockSpec((1, 7, E, E), lambda bi, li: (li, 0, 0, 0)),   # w_sq
            pl.BlockSpec((1, 2, E, FF), lambda bi, li: (li, 0, 0, 0)),  # w_ffn_in
            pl.BlockSpec((1, 2, FF, E), lambda bi, li: (li, 0, 0, 0)),  # w_ffn_out
            pl.BlockSpec((1, NUM_VEC, E), lambda bi, li: (li, 0, 0)),   # b_vec
            pl.BlockSpec((1, 2, FF), lambda bi, li: (li, 0, 0)),        # b_ffn
            pl.BlockSpec((1, K, E), lambda bi, li: (li, 0, 0)),         # w_dw
        ],
        out_specs=[
            pl.BlockSpec((1, 1, T, E), lambda bi, li: (li, bi, 0, 0)),  # fmap
            pl.BlockSpec((1, T, 1), lambda bi, li: (bi, 0, 0)),         # conv_post
        ],
        scratch_shapes=[pltpu.VMEM((T, E), jnp.float32)],               # running x
        compiler_params=pltpu.CompilerParams(
            dimension_semantics=("parallel", "arbitrary")),
    )(x_src, tok, jnp.asarray(selx_np), jnp.asarray(selt_np), pos_bias,
      jnp.asarray(mask_np), w_post, b_post,
      params["w_sq"], params["w_ffn_in"], params["w_ffn_out"],
      params["b_vec"], params["b_ffn"], params["w_dw"])

    fmap = [fmap_arr[li] for li in range(L)]          # each (b, T, E)
    y = post[:, :T - PK + 1, 0]                       # valid conv_post outputs
    fmap.append(y[:, None, :])                        # (b, 1, T-PK+1)
    return y, fmap                                    # y == flatten(conv_post, 1, -1)


# ----------------------------- parameters -----------------------------------

def init_params(key, duration, n_head, n_layers):
    """Parameters pre-packed for the fused kernel: per-layer weights stacked with
    a leading L axis, matmul weights bf16 (MXU operands), biases/LN/taps f32."""
    E = duration * n_head
    FF = 4 * E
    keys = jax.random.split(key, 5 + n_layers)

    def w(kk, shape, scale=0.05):
        return jax.random.normal(kk, shape, jnp.float32) * scale

    params = {
        "channel_split_token": jax.random.uniform(keys[0], (E,), jnp.float32),
        "channel_end_token": jax.random.uniform(keys[1], (E,), jnp.float32),
        "mask_emb": jax.random.uniform(keys[2], (E,), jnp.float32),  # unused (mask=False)
        "rel_emb": w(keys[3], (NUM_BUCKETS, n_head)),                # layer 0 only
        "conv_post_v": w(keys[4], (1, E, POST_KERNEL), 0.1),
        "conv_post_g": jnp.ones((1, 1, 1), jnp.float32),
        "conv_post_b": jnp.zeros((1,), jnp.float32),
    }

    vec_init = np.zeros((NUM_VEC, E), np.float32)
    for gi in (LN1_G, LNA_G, LNC_G, LN2_G, LNF_G):
        vec_init[gi] = 1.0                                            # LN gammas

    wsq, wfi, wfo, bvec, bffn, wdw = [], [], [], [], [], []
    for li in range(n_layers):
        k = jax.random.split(keys[5 + li], 12)
        wsq.append(jnp.stack([w(k[i], (E, E)) for i in range(7)]))    # q,k,v,o,pw1a,pw1b,pw2
        wfi.append(jnp.stack([w(k[7], (E, FF)), w(k[8], (E, FF))]))
        wfo.append(jnp.stack([w(k[9], (FF, E)), w(k[10], (FF, E))]))
        bvec.append(jnp.asarray(vec_init))
        bffn.append(jnp.zeros((2, FF), jnp.float32))
        wdw.append(w(k[11], (DW_KERNEL, E)))

    params.update(
        w_sq=jnp.stack(wsq).astype(jnp.bfloat16),        # (L, 7, E, E)
        w_ffn_in=jnp.stack(wfi).astype(jnp.bfloat16),    # (L, 2, E, 4E)
        w_ffn_out=jnp.stack(wfo).astype(jnp.bfloat16),   # (L, 2, 4E, E)
        b_vec=jnp.stack(bvec),                           # (L, 19, E)
        b_ffn=jnp.stack(bffn),                           # (L, 2, 4E)
        w_dw=jnp.stack(wdw),                             # (L, K, E)
    )
    return params


# ----------------------------- main ------------------------------------------

if __name__ == "__main__":
    duration = 30        # encoder_dim = duration * n_head = 30
    n_head = 1
    conf_layer = 2       # module default is 12; small count for the demo

    key = jax.random.PRNGKey(0)
    kp, kx = jax.random.split(key)
    params = init_params(kp, duration, n_head, conf_layer)

    b, c, t = 2, EMA_CHANNEL, 90          # x: (B=2, C=18, T=90), NCT like PyTorch
    x = jax.random.normal(kx, (b, c, t), jnp.float32)

    fwd = jax.jit(functools.partial(dpd_forward, duration=duration, n_head=n_head))
    out, fmap = fwd(params, x)
    jax.block_until_ready(out)

    T_seq = (c + len(CHANNEL_SPLIT_INDICES) + 1) * (t // duration)   # 24 * 3 = 72
    assert out.shape == (b, T_seq - 2), out.shape                    # (2, 70)
    assert len(fmap) == conf_layer + 1
    assert fmap[0].shape == (b, T_seq, duration * n_head)
    assert fmap[-1].shape == (b, 1, T_seq - 2)
    assert bool(jnp.all(jnp.isfinite(out)))
    print("KERNEL_OK")
</pallas_src>

<mosaic_0001>
module attributes {stable_mosaic.version = 11 : i64} {
  func.func @_dpd_fused_kernel(%arg0: i32, %arg1: i32, %arg2: memref<1x54x30xf32, #tpu.memory_space<vmem>>, %arg3: memref<2x30xf32, #tpu.memory_space<vmem>>, %arg4: memref<72x54xf32, #tpu.memory_space<vmem>>, %arg5: memref<72x2xf32, #tpu.memory_space<vmem>>, %arg6: memref<72x72xf32, #tpu.memory_space<vmem>>, %arg7: memref<7x72x1xf32, #tpu.memory_space<vmem>>, %arg8: memref<3x30xf32, #tpu.memory_space<vmem>>, %arg9: memref<1x1xf32, #tpu.memory_space<vmem>>, %arg10: memref<1x7x30x30xbf16, #tpu.memory_space<vmem>>, %arg11: memref<1x2x30x120xbf16, #tpu.memory_space<vmem>>, %arg12: memref<1x2x120x30xbf16, #tpu.memory_space<vmem>>, %arg13: memref<1x19x30xf32, #tpu.memory_space<vmem>>, %arg14: memref<1x2x120xf32, #tpu.memory_space<vmem>>, %arg15: memref<1x7x30xf32, #tpu.memory_space<vmem>>, %arg16: memref<1x1x72x30xf32, #tpu.memory_space<vmem>>, %arg17: memref<1x72x1xf32, #tpu.memory_space<vmem>>, %arg18: memref<72x30xf32, #tpu.memory_space<vmem>>) attributes {dimension_semantics = [#tpu.dimension_semantics<parallel>, #tpu.dimension_semantics<arbitrary>], iteration_bounds = array<i64: 2, 2>, scalar_prefetch = 0 : i64, scratch_operands = 1 : i64, tpu.core_type = #tpu.core_type<tc>, window_params = [{transform_indices = @transform_0, window_bounds = array<i64: 1, 54, 30>}, {pipeline_mode = #tpu.pipeline_mode<synchronous>, transform_indices = @transform_1, window_bounds = array<i64: 2, 30>}, {pipeline_mode = #tpu.pipeline_mode<synchronous>, transform_indices = @transform_2, window_bounds = array<i64: 72, 54>}, {pipeline_mode = #tpu.pipeline_mode<synchronous>, transform_indices = @transform_3, window_bounds = array<i64: 72, 2>}, {pipeline_mode = #tpu.pipeline_mode<synchronous>, transform_indices = @transform_4, window_bounds = array<i64: 72, 72>}, {pipeline_mode = #tpu.pipeline_mode<synchronous>, transform_indices = @transform_5, window_bounds = array<i64: 7, 72, 1>}, {pipeline_mode = #tpu.pipeline_mode<synchronous>, transform_indices = @transform_6, window_bounds = array<i64: 3, 30>}, {pipeline_mode = #tpu.pipeline_mode<synchronous>, transform_indices = @transform_7, window_bounds = array<i64: 1, 1>}, {transform_indices = @transform_8, window_bounds = array<i64: 1, 7, 30, 30>}, {transform_indices = @transform_9, window_bounds = array<i64: 1, 2, 30, 120>}, {transform_indices = @transform_10, window_bounds = array<i64: 1, 2, 120, 30>}, {transform_indices = @transform_11, window_bounds = array<i64: 1, 19, 30>}, {transform_indices = @transform_12, window_bounds = array<i64: 1, 2, 120>}, {transform_indices = @transform_13, window_bounds = array<i64: 1, 7, 30>}, {transform_indices = @transform_14, window_bounds = array<i64: 1, 1, 72, 30>}, {transform_indices = @transform_15, window_bounds = array<i64: 1, 72, 1>}]} {
    %c0_i32 = arith.constant 0 : i32
    %0 = arith.cmpi eq, %arg1, %c0_i32 : i32
    %1 = arith.extui %0 : i1 to i32
    %c0_i32_0 = arith.constant 0 : i32
    %2 = arith.cmpi ne, %1, %c0_i32_0 : i32
    scf.if %2 {
      %c0_190 = arith.constant 0 : index
      %c0_191 = arith.constant 0 : index
      %348 = vector.load %arg4[%c0_190, %c0_191] : memref<72x54xf32, #tpu.memory_space<vmem>>, vector<72x54xf32>
      %c0_192 = arith.constant 0 : index
      %c0_193 = arith.constant 0 : index
      %c0_194 = arith.constant 0 : index
      %349 = vector.load %arg2[%c0_192, %c0_193, %c0_194] : memref<1x54x30xf32, #tpu.memory_space<vmem>>, vector<1x54x30xf32>
      %350 = vector.shape_cast %349 : vector<1x54x30xf32> to vector<54x30xf32>
      %cst_195 = arith.constant dense<0.000000e+00> : vector<72x30xf32>
      %351 = tpu.matmul %348, %350, %cst_195 {dimension_numbers = #tpu.dot_dimension_numbers<[1], [0], [0], [1], [0, 0, 1, 1], [], []>} : vector<72x54xf32>, vector<54x30xf32>, vector<72x30xf32> -> vector<72x30xf32>
      %c0_196 = arith.constant 0 : index
      %c0_197 = arith.constant 0 : index
      %352 = vector.load %arg5[%c0_196, %c0_197] : memref<72x2xf32, #tpu.memory_space<vmem>>, vector<72x2xf32>
      %c0_198 = arith.constant 0 : index
      %c0_199 = arith.constant 0 : index
      %353 = vector.load %arg3[%c0_198, %c0_199] : memref<2x30xf32, #tpu.memory_space<vmem>>, vector<2x30xf32>
      %cst_200 = arith.constant dense<0.000000e+00> : vector<72x30xf32>
      %354 = tpu.matmul %352, %353, %cst_200 {dimension_numbers = #tpu.dot_dimension_numbers<[1], [0], [0], [1], [0, 0, 1, 1], [], []>} : vector<72x2xf32>, vector<2x30xf32>, vector<72x30xf32> -> vector<72x30xf32>
      %355 = arith.addf %351, %354 : vector<72x30xf32>
      %c0_201 = arith.constant 0 : index
      %c0_202 = arith.constant 0 : index
      %356 = vector.load %arg18[%c0_201, %c0_202] : memref<72x30xf32, #tpu.memory_space<vmem>>, vector<72x30xf32>
      tpu.vector_store %arg18[%c0_201, %c0_202], %355 {strides = array<i32>} : memref<72x30xf32, #tpu.memory_space<vmem>>, vector<72x30xf32>,
    } else {
    }
    %c0 = arith.constant 0 : index
    %c0_1 = arith.constant 0 : index
    %3 = vector.load %arg18[%c0, %c0_1] : memref<72x30xf32, #tpu.memory_space<vmem>>, vector<72x30xf32>
    %c0_2 = arith.constant 0 : index
    %c0_3 = arith.constant 0 : index
    %c0_4 = arith.constant 0 : index
    %4 = vector.load %arg13[%c0_2, %c0_3, %c0_4] : memref<1x19x30xf32, #tpu.memory_space<vmem>>, vector<1x1x30xf32>
    %5 = vector.shape_cast %4 : vector<1x1x30xf32> to vector<1x30xf32>
    %c0_5 = arith.constant 0 : index
    %c1 = arith.constant 1 : index
    %c0_6 = arith.constant 0 : index
    %6 = vector.load %arg13[%c0_5, %c1, %c0_6] : memref<1x19x30xf32, #tpu.memory_space<vmem>>, vector<1x1x30xf32>
    %7 = vector.shape_cast %6 : vector<1x1x30xf32> to vector<1x30xf32>
    %cst = arith.constant dense<0.000000e+00> : vector<72xf32>
    %8 = vector.multi_reduction <add>, %3, %cst [1] : vector<72x30xf32> to vector<72xf32>
    %9 = vector.shape_cast %8 : vector<72xf32> to vector<72x1xf32>
    %cst_7 = arith.constant 3.000000e+01 : f32
    %10 = vector.broadcast %cst_7 : f32 to vector<72x1xf32>
    %11 = arith.divf %9, %10 : vector<72x1xf32>
    %12 = vector.broadcast %11 : vector<72x1xf32> to vector<72x30xf32>
    %13 = arith.subf %3, %12 : vector<72x30xf32>
    %14 = arith.mulf %13, %13 : vector<72x30xf32>
    %cst_8 = arith.constant dense<0.000000e+00> : vector<72xf32>
    %15 = vector.multi_reduction <add>, %14, %cst_8 [1] : vector<72x30xf32> to vector<72xf32>
    %16 = vector.shape_cast %15 : vector<72xf32> to vector<72x1xf32>
    %cst_9 = arith.constant 3.000000e+01 : f32
    %17 = vector.broadcast %cst_9 : f32 to vector<72x1xf32>
    %18 = arith.divf %16, %17 : vector<72x1xf32>
    %19 = vector.broadcast %11 : vector<72x1xf32> to vector<72x30xf32>
    %20 = arith.subf %3, %19 : vector<72x30xf32>
    %cst_10 = arith.constant 9.99999974E-6 : f32
    %21 = vector.broadcast %cst_10 : f32 to vector<72x1xf32>
    %22 = arith.addf %18, %21 : vector<72x1xf32>
    %23 = math.rsqrt %22 : vector<72x1xf32>
    %24 = vector.broadcast %23 : vector<72x1xf32> to vector<72x30xf32>
    %25 = arith.mulf %20, %24 : vector<72x30xf32>
    %26 = vector.broadcast %5 : vector<1x30xf32> to vector<72x30xf32>
    %27 = arith.mulf %25, %26 : vector<72x30xf32>
    %28 = vector.broadcast %7 : vector<1x30xf32> to vector<72x30xf32>
    %29 = arith.addf %27, %28 : vector<72x30xf32>
    %30 = arith.truncf %29 : vector<72x30xf32> to vector<72x30xbf16>
    %c0_11 = arith.constant 0 : index
    %c0_12 = arith.constant 0 : index
    %c0_13 = arith.constant 0 : index
    %c0_14 = arith.constant 0 : index
    %31 = vector.load %arg11[%c0_11, %c0_12, %c0_13, %c0_14] : memref<1x2x30x120xbf16, #tpu.memory_space<vmem>>, vector<1x1x30x120xbf16>
    %32 = vector.shape_cast %31 : vector<1x1x30x120xbf16> to vector<30x120xbf16>
    %cst_15 = arith.constant dense<0.000000e+00> : vector<72x120xf32>
    %33 = tpu.matmul %30, %32, %cst_15 {dimension_numbers = #tpu.dot_dimension_numbers<[1], [0], [0], [1], [0, 0, 1, 1], [], []>} : vector<72x30xbf16>, vector<30x120xbf16>, vector<72x120xf32> -> vector<72x120xf32>
    %c0_16 = arith.constant 0 : index
    %c0_17 = arith.constant 0 : index
    %c0_18 = arith.constant 0 : index
    %34 = vector.load %arg14[%c0_16, %c0_17, %c0_18] : memref<1x2x120xf32, #tpu.memory_space<vmem>>, vector<1x1x120xf32>
    %35 = vector.shape_cast %34 : vector<1x1x120xf32> to vector<1x120xf32>
    %36 = vector.broadcast %35 : vector<1x120xf32> to vector<72x120xf32>
    %37 = arith.addf %33, %36 : vector<72x120xf32>
    %38 = arith.negf %37 : vector<72x120xf32>
    %39 = math.exp %38 : vector<72x120xf32>
    %cst_19 = arith.constant 1.000000e+00 : f32
    %40 = vector.broadcast %cst_19 : f32 to vector<72x120xf32>
    %41 = arith.addf %40, %39 : vector<72x120xf32>
    %42 = arith.divf %40, %41 : vector<72x120xf32>
    %43 = arith.mulf %37, %42 : vector<72x120xf32>
    %44 = arith.truncf %43 : vector<72x120xf32> to vector<72x120xbf16>
    %c0_20 = arith.constant 0 : index
    %c0_21 = arith.constant 0 : index
    %c0_22 = arith.constant 0 : index
    %c0_23 = arith.constant 0 : index
    %45 = vector.load %arg12[%c0_20, %c0_21, %c0_22, %c0_23] : memref<1x2x120x30xbf16, #tpu.memory_space<vmem>>, vector<1x1x120x30xbf16>
    %46 = vector.shape_cast %45 : vector<1x1x120x30xbf16> to vector<120x30xbf16>
    %cst_24 = arith.constant dense<0.000000e+00> : vector<72x30xf32>
    %47 = tpu.matmul %44, %46, %cst_24 {dimension_numbers = #tpu.dot_dimension_numbers<[1], [0], [0], [1], [0, 0, 1, 1], [], []>} : vector<72x120xbf16>, vector<120x30xbf16>, vector<72x30xf32> -> vector<72x30xf32>
    %c0_25 = arith.constant 0 : index
    %c2 = arith.constant 2 : index
    %c0_26 = arith.constant 0 : index
    %48 = vector.load %arg13[%c0_25, %c2, %c0_26] : memref<1x19x30xf32, #tpu.memory_space<vmem>>, vector<1x1x30xf32>
    %49 = vector.shape_cast %48 : vector<1x1x30xf32> to vector<1x30xf32>
    %50 = vector.broadcast %49 : vector<1x30xf32> to vector<72x30xf32>
    %51 = arith.addf %47, %50 : vector<72x30xf32>
    %cst_27 = arith.constant 5.000000e-01 : f32
    %52 = vector.broadcast %cst_27 : f32 to vector<72x30xf32>
    %53 = arith.mulf %52, %51 : vector<72x30xf32>
    %54 = arith.addf %3, %53 : vector<72x30xf32>
    %c0_28 = arith.constant 0 : index
    %c3 = arith.constant 3 : index
    %c0_29 = arith.constant 0 : index
    %55 = vector.load %arg13[%c0_28, %c3, %c0_29] : memref<1x19x30xf32, #tpu.memory_space<vmem>>, vector<1x1x30xf32>
    %56 = vector.shape_cast %55 : vector<1x1x30xf32> to vector<1x30xf32>
    %c0_30 = arith.constant 0 : index
    %c4 = arith.constant 4 : index
    %c0_31 = arith.constant 0 : index
    %57 = vector.load %arg13[%c0_30, %c4, %c0_31] : memref<1x19x30xf32, #tpu.memory_space<vmem>>, vector<1x1x30xf32>
    %58 = vector.shape_cast %57 : vector<1x1x30xf32> to vector<1x30xf32>
    %cst_32 = arith.constant dense<0.000000e+00> : vector<72xf32>
    %59 = vector.multi_reduction <add>, %54, %cst_32 [1] : vector<72x30xf32> to vector<72xf32>
    %60 = vector.shape_cast %59 : vector<72xf32> to vector<72x1xf32>
    %cst_33 = arith.constant 3.000000e+01 : f32
    %61 = vector.broadcast %cst_33 : f32 to vector<72x1xf32>
    %62 = arith.divf %60, %61 : vector<72x1xf32>
    %63 = vector.broadcast %62 : vector<72x1xf32> to vector<72x30xf32>
    %64 = arith.subf %54, %63 : vector<72x30xf32>
    %65 = arith.mulf %64, %64 : vector<72x30xf32>
    %cst_34 = arith.constant dense<0.000000e+00> : vector<72xf32>
    %66 = vector.multi_reduction <add>, %65, %cst_34 [1] : vector<72x30xf32> to vector<72xf32>
    %67 = vector.shape_cast %66 : vector<72xf32> to vector<72x1xf32>
    %cst_35 = arith.constant 3.000000e+01 : f32
    %68 = vector.broadcast %cst_35 : f32 to vector<72x1xf32>
    %69 = arith.divf %67, %68 : vector<72x1xf32>
    %70 = vector.broadcast %62 : vector<72x1xf32> to vector<72x30xf32>
    %71 = arith.subf %54, %70 : vector<72x30xf32>
    %cst_36 = arith.constant 9.99999974E-6 : f32
    %72 = vector.broadcast %cst_36 : f32 to vector<72x1xf32>
    %73 = arith.addf %69, %72 : vector<72x1xf32>
    %74 = math.rsqrt %73 : vector<72x1xf32>
    %75 = vector.broadcast %74 : vector<72x1xf32> to vector<72x30xf32>
    %76 = arith.mulf %71, %75 : vector<72x30xf32>
    %77 = vector.broadcast %56 : vector<1x30xf32> to vector<72x30xf32>
    %78 = arith.mulf %76, %77 : vector<72x30xf32>
    %79 = vector.broadcast %58 : vector<1x30xf32> to vector<72x30xf32>
    %80 = arith.addf %78, %79 : vector<72x30xf32>
    %81 = arith.truncf %80 : vector<72x30xf32> to vector<72x30xbf16>
    %c0_37 = arith.constant 0 : index
    %c0_38 = arith.constant 0 : index
    %c0_39 = arith.constant 0 : index
    %c0_40 = arith.constant 0 : index
    %82 = vector.load %arg10[%c0_37, %c0_38, %c0_39, %c0_40] : memref<1x7x30x30xbf16, #tpu.memory_space<vmem>>, vector<1x1x30x30xbf16>
    %83 = vector.shape_cast %82 : vector<1x1x30x30xbf16> to vector<30x30xbf16>
    %cst_41 = arith.constant dense<0.000000e+00> : vector<72x30xf32>
    %84 = tpu.matmul %81, %83, %cst_41 {dimension_numbers = #tpu.dot_dimension_numbers<[1], [0], [0], [1], [0, 0, 1, 1], [], []>} : vector<72x30xbf16>, vector<30x30xbf16>, vector<72x30xf32> -> vector<72x30xf32>
    %c0_42 = arith.constant 0 : index
    %c5 = arith.constant 5 : index
    %c0_43 = arith.constant 0 : index
    %85 = vector.load %arg13[%c0_42, %c5, %c0_43] : memref<1x19x30xf32, #tpu.memory_space<vmem>>, vector<1x1x30xf32>
    %86 = vector.shape_cast %85 : vector<1x1x30xf32> to vector<1x30xf32>
    %87 = vector.broadcast %86 : vector<1x30xf32> to vector<72x30xf32>
    %88 = arith.addf %84, %87 : vector<72x30xf32>
    %c0_44 = arith.constant 0 : index
    %c1_45 = arith.constant 1 : index
    %c0_46 = arith.constant 0 : index
    %c0_47 = arith.constant 0 : index
    %89 = vector.load %arg10[%c0_44, %c1_45, %c0_46, %c0_47] : memref<1x7x30x30xbf16, #tpu.memory_space<vmem>>, vector<1x1x30x30xbf16>
    %90 = vector.shape_cast %89 : vector<1x1x30x30xbf16> to vector<30x30xbf16>
    %cst_48 = arith.constant dense<0.000000e+00> : vector<72x30xf32>
    %91 = tpu.matmul %81, %90, %cst_48 {dimension_numbers = #tpu.dot_dimension_numbers<[1], [0], [0], [1], [0, 0, 1, 1], [], []>} : vector<72x30xbf16>, vector<30x30xbf16>, vector<72x30xf32> -> vector<72x30xf32>
    %c0_49 = arith.constant 0 : index
    %c6 = arith.constant 6 : index
    %c0_50 = arith.constant 0 : index
    %92 = vector.load %arg13[%c0_49, %c6, %c0_50] : memref<1x19x30xf32, #tpu.memory_space<vmem>>, vector<1x1x30xf32>
    %93 = vector.shape_cast %92 : vector<1x1x30xf32> to vector<1x30xf32>
    %94 = vector.broadcast %93 : vector<1x30xf32> to vector<72x30xf32>
    %95 = arith.addf %91, %94 : vector<72x30xf32>
    %c0_51 = arith.constant 0 : index
    %c2_52 = arith.constant 2 : index
    %c0_53 = arith.constant 0 : index
    %c0_54 = arith.constant 0 : index
    %96 = vector.load %arg10[%c0_51, %c2_52, %c0_53, %c0_54] : memref<1x7x30x30xbf16, #tpu.memory_space<vmem>>, vector<1x1x30x30xbf16>
    %97 = vector.shape_cast %96 : vector<1x1x30x30xbf16> to vector<30x30xbf16>
    %cst_55 = arith.constant dense<0.000000e+00> : vector<72x30xf32>
    %98 = tpu.matmul %81, %97, %cst_55 {dimension_numbers = #tpu.dot_dimension_numbers<[1], [0], [0], [1], [0, 0, 1, 1], [], []>} : vector<72x30xbf16>, vector<30x30xbf16>, vector<72x30xf32> -> vector<72x30xf32>
    %c0_56 = arith.constant 0 : index
    %c7 = arith.constant 7 : index
    %c0_57 = arith.constant 0 : index
    %99 = vector.load %arg13[%c0_56, %c7, %c0_57] : memref<1x19x30xf32, #tpu.memory_space<vmem>>, vector<1x1x30xf32>
    %100 = vector.shape_cast %99 : vector<1x1x30xf32> to vector<1x30xf32>
    %101 = vector.broadcast %100 : vector<1x30xf32> to vector<72x30xf32>
    %102 = arith.addf %98, %101 : vector<72x30xf32>
    %103 = arith.truncf %88 : vector<72x30xf32> to vector<72x30xbf16>
    %104 = arith.truncf %95 : vector<72x30xf32> to vector<72x30xbf16>
    "tpu.trace_start"() <{level = 10 : i32, message = "qd,kd->qk"}> : () -> ()
    %cst_58 = arith.constant dense<0.000000e+00> : vector<72x72xf32>
    %105 = tpu.matmul %103, %104, %cst_58 {dimension_numbers = #tpu.dot_dimension_numbers<[1], [1], [0], [0], [0, 0, 1, 0], [], []>} : vector<72x30xbf16>, vector<72x30xbf16>, vector<72x72xf32> -> vector<72x72xf32>
    "tpu.trace_stop"() : () -> ()
    %cst_59 = arith.constant 0.182574183 : f32
    %106 = vector.broadcast %cst_59 : f32 to vector<72x72xf32>
    %107 = arith.mulf %105, %106 : vector<72x72xf32>
    %c0_60 = arith.constant 0 : index
    %c0_61 = arith.constant 0 : index
    %108 = vector.load %arg6[%c0_60, %c0_61] : memref<72x72xf32, #tpu.memory_space<vmem>>, vector<72x72xf32>
    %109 = arith.addf %107, %108 : vector<72x72xf32>
    %cst_62 = arith.constant dense<0xFF800000> : vector<72xf32>
    %110 = vector.multi_reduction <maximumf>, %109, %cst_62 [1] : vector<72x72xf32> to vector<72xf32>
    %111 = vector.shape_cast %110 : vector<72xf32> to vector<72x1xf32>
    %112 = vector.broadcast %111 : vector<72x1xf32> to vector<72x72xf32>
    %113 = arith.subf %109, %112 : vector<72x72xf32>
    %114 = math.exp %113 : vector<72x72xf32>
    %cst_63 = arith.constant dense<0.000000e+00> : vector<72xf32>
    %115 = vector.multi_reduction <add>, %114, %cst_63 [1] : vector<72x72xf32> to vector<72xf32>
    %116 = vector.shape_cast %115 : vector<72xf32> to vector<72x1xf32>
    %117 = tpu.reciprocal %116 {approx = true} : vector<72x1xf32> -> vector<72x1xf32>
    %118 = vector.broadcast %117 : vector<72x1xf32> to vector<72x72xf32>
    %119 = arith.mulf %114, %118 : vector<72x72xf32>
    %120 = arith.truncf %119 : vector<72x72xf32> to vector<72x72xbf16>
    %121 = arith.truncf %102 : vector<72x30xf32> to vector<72x30xbf16>
    %cst_64 = arith.constant dense<0.000000e+00> : vector<72x30xf32>
    %122 = tpu.matmul %120, %121, %cst_64 {dimension_numbers = #tpu.dot_dimension_numbers<[1], [0], [0], [1], [0, 0, 1, 1], [], []>} : vector<72x72xbf16>, vector<72x30xbf16>, vector<72x30xf32> -> vector<72x30xf32>
    %123 = arith.truncf %122 : vector<72x30xf32> to vector<72x30xbf16>
    %c0_65 = arith.constant 0 : index
    %c3_66 = arith.constant 3 : index
    %c0_67 = arith.constant 0 : index
    %c0_68 = arith.constant 0 : index
    %124 = vector.load %arg10[%c0_65, %c3_66, %c0_67, %c0_68] : memref<1x7x30x30xbf16, #tpu.memory_space<vmem>>, vector<1x1x30x30xbf16>
    %125 = vector.shape_cast %124 : vector<1x1x30x30xbf16> to vector<30x30xbf16>
    %cst_69 = arith.constant dense<0.000000e+00> : vector<72x30xf32>
    %126 = tpu.matmul %123, %125, %cst_69 {dimension_numbers = #tpu.dot_dimension_numbers<[1], [0], [0], [1], [0, 0, 1, 1], [], []>} : vector<72x30xbf16>, vector<30x30xbf16>, vector<72x30xf32> -> vector<72x30xf32>
    %c0_70 = arith.constant 0 : index
    %c8 = arith.constant 8 : index
    %c0_71 = arith.constant 0 : index
    %127 = vector.load %arg13[%c0_70, %c8, %c0_71] : memref<1x19x30xf32, #tpu.memory_space<vmem>>, vector<1x1x30xf32>
    %128 = vector.shape_cast %127 : vector<1x1x30xf32> to vector<1x30xf32>
    %129 = vector.broadcast %128 : vector<1x30xf32> to vector<72x30xf32>
    %130 = arith.addf %126, %129 : vector<72x30xf32>
    %131 = arith.addf %54, %130 : vector<72x30xf32>
    %c0_72 = arith.constant 0 : index
    %c9 = arith.constant 9 : index
    %c0_73 = arith.constant 0 : index
    %132 = vector.load %arg13[%c0_72, %c9, %c0_73] : memref<1x19x30xf32, #tpu.memory_space<vmem>>, vector<1x1x30xf32>
    %133 = vector.shape_cast %132 : vector<1x1x30xf32> to vector<1x30xf32>
    %c0_74 = arith.constant 0 : index
    %c10 = arith.constant 10 : index
    %c0_75 = arith.constant 0 : index
    %134 = vector.load %arg13[%c0_74, %c10, %c0_75] : memref<1x19x30xf32, #tpu.memory_space<vmem>>, vector<1x1x30xf32>
    %135 = vector.shape_cast %134 : vector<1x1x30xf32> to vector<1x30xf32>
    %cst_76 = arith.constant dense<0.000000e+00> : vector<72xf32>
    %136 = vector.multi_reduction <add>, %131, %cst_76 [1] : vector<72x30xf32> to vector<72xf32>
    %137 = vector.shape_cast %136 : vector<72xf32> to vector<72x1xf32>
    %cst_77 = arith.constant 3.000000e+01 : f32
    %138 = vector.broadcast %cst_77 : f32 to vector<72x1xf32>
    %139 = arith.divf %137, %138 : vector<72x1xf32>
    %140 = vector.broadcast %139 : vector<72x1xf32> to vector<72x30xf32>
    %141 = arith.subf %131, %140 : vector<72x30xf32>
    %142 = arith.mulf %141, %141 : vector<72x30xf32>
    %cst_78 = arith.constant dense<0.000000e+00> : vector<72xf32>
    %143 = vector.multi_reduction <add>, %142, %cst_78 [1] : vector<72x30xf32> to vector<72xf32>
    %144 = vector.shape_cast %143 : vector<72xf32> to vector<72x1xf32>
    %cst_79 = arith.constant 3.000000e+01 : f32
    %145 = vector.broadcast %cst_79 : f32 to vector<72x1xf32>
    %146 = arith.divf %144, %145 : vector<72x1xf32>
    %147 = vector.broadcast %139 : vector<72x1xf32> to vector<72x30xf32>
    %148 = arith.subf %131, %147 : vector<72x30xf32>
    %cst_80 = arith.constant 9.99999974E-6 : f32
    %149 = vector.broadcast %cst_80 : f32 to vector<72x1xf32>
    %150 = arith.addf %146, %149 : vector<72x1xf32>
    %151 = math.rsqrt %150 : vector<72x1xf32>
    %152 = vector.broadcast %151 : vector<72x1xf32> to vector<72x30xf32>
    %153 = arith.mulf %148, %152 : vector<72x30xf32>
    %154 = vector.broadcast %133 : vector<1x30xf32> to vector<72x30xf32>
    %155 = arith.mulf %153, %154 : vector<72x30xf32>
    %156 = vector.broadcast %135 : vector<1x30xf32> to vector<72x30xf32>
    %157 = arith.addf %155, %156 : vector<72x30xf32>
    %158 = arith.truncf %157 : vector<72x30xf32> to vector<72x30xbf16>
    %c0_81 = arith.constant 0 : index
    %c4_82 = arith.constant 4 : index
    %c0_83 = arith.constant 0 : index
    %c0_84 = arith.constant 0 : index
    %159 = vector.load %arg10[%c0_81, %c4_82, %c0_83, %c0_84] : memref<1x7x30x30xbf16, #tpu.memory_space<vmem>>, vector<1x1x30x30xbf16>
    %160 = vector.shape_cast %159 : vector<1x1x30x30xbf16> to vector<30x30xbf16>
    %cst_85 = arith.constant dense<0.000000e+00> : vector<72x30xf32>
    %161 = tpu.matmul %158, %160, %cst_85 {dimension_numbers = #tpu.dot_dimension_numbers<[1], [0], [0], [1], [0, 0, 1, 1], [], []>} : vector<72x30xbf16>, vector<30x30xbf16>, vector<72x30xf32> -> vector<72x30xf32>
    %c0_86 = arith.constant 0 : index
    %c11 = arith.constant 11 : index
    %c0_87 = arith.constant 0 : index
    %162 = vector.load %arg13[%c0_86, %c11, %c0_87] : memref<1x19x30xf32, #tpu.memory_space<vmem>>, vector<1x1x30xf32>
    %163 = vector.shape_cast %162 : vector<1x1x30xf32> to vector<1x30xf32>
    %164 = vector.broadcast %163 : vector<1x30xf32> to vector<72x30xf32>
    %165 = arith.addf %161, %164 : vector<72x30xf32>
    %c0_88 = arith.constant 0 : index
    %c5_89 = arith.constant 5 : index
    %c0_90 = arith.constant 0 : index
    %c0_91 = arith.constant 0 : index
    %166 = vector.load %arg10[%c0_88, %c5_89, %c0_90, %c0_91] : memref<1x7x30x30xbf16, #tpu.memory_space<vmem>>, vector<1x1x30x30xbf16>
    %167 = vector.shape_cast %166 : vector<1x1x30x30xbf16> to vector<30x30xbf16>
    %cst_92 = arith.constant dense<0.000000e+00> : vector<72x30xf32>
    %168 = tpu.matmul %158, %167, %cst_92 {dimension_numbers = #tpu.dot_dimension_numbers<[1], [0], [0], [1], [0, 0, 1, 1], [], []>} : vector<72x30xbf16>, vector<30x30xbf16>, vector<72x30xf32> -> vector<72x30xf32>
    %c0_93 = arith.constant 0 : index
    %c12 = arith.constant 12 : index
    %c0_94 = arith.constant 0 : index
    %169 = vector.load %arg13[%c0_93, %c12, %c0_94] : memref<1x19x30xf32, #tpu.memory_space<vmem>>, vector<1x1x30xf32>
    %170 = vector.shape_cast %169 : vector<1x1x30xf32> to vector<1x30xf32>
    %171 = vector.broadcast %170 : vector<1x30xf32> to vector<72x30xf32>
    %172 = arith.addf %168, %171 : vector<72x30xf32>
    %173 = arith.negf %172 : vector<72x30xf32>
    %174 = math.exp %173 : vector<72x30xf32>
    %cst_95 = arith.constant 1.000000e+00 : f32
    %175 = vector.broadcast %cst_95 : f32 to vector<72x30xf32>
    %176 = arith.addf %175, %174 : vector<72x30xf32>
    %177 = arith.divf %175, %176 : vector<72x30xf32>
    %178 = arith.mulf %165, %177 : vector<72x30xf32>
    %cst_96 = arith.constant 0.000000e+00 : f32
    %179 = vector.broadcast %cst_96 : f32 to vector<72x30xf32>
    %c3_i32 = arith.constant 3 : i32
    %180 = tpu.dynamic_rotate %178 by %c3_i32 dim 0 : vector<72x30xf32>, i32 -> vector<72x30xf32>
    %c0_97 = arith.constant 0 : index
    %c0_98 = arith.constant 0 : index
    %c0_99 = arith.constant 0 : index
    %181 = vector.load %arg7[%c0_97, %c0_98, %c0_99] : memref<7x72x1xf32, #tpu.memory_space<vmem>>, vector<1x72x1xf32>
    %182 = vector.shape_cast %181 : vector<1x72x1xf32> to vector<72x1xf32>
    %c0_100 = arith.constant 0 : index
    %c0_101 = arith.constant 0 : index
    %c0_102 = arith.constant 0 : index
    %183 = vector.load %arg15[%c0_100, %c0_101, %c0_102] : memref<1x7x30xf32, #tpu.memory_space<vmem>>, vector<1x1x30xf32>
    %184 = vector.shape_cast %183 : vector<1x1x30xf32> to vector<1x30xf32>
    %185 = vector.broadcast %182 : vector<72x1xf32> to vector<72x30xf32>
    %186 = vector.broadcast %184 : vector<1x30xf32> to vector<72x30xf32>
    %187 = arith.mulf %185, %186 : vector<72x30xf32>
    %188 = arith.mulf %180, %187 : vector<72x30xf32>
    %189 = arith.addf %179, %188 : vector<72x30xf32>
    %c2_i32 = arith.constant 2 : i32
    %190 = tpu.dynamic_rotate %178 by %c2_i32 dim 0 : vector<72x30xf32>, i32 -> vector<72x30xf32>
    %c1_103 = arith.constant 1 : index
    %c0_104 = arith.constant 0 : index
    %c0_105 = arith.constant 0 : index
    %191 = vector.load %arg7[%c1_103, %c0_104, %c0_105] : memref<7x72x1xf32, #tpu.memory_space<vmem>>, vector<1x72x1xf32>
    %192 = vector.shape_cast %191 : vector<1x72x1xf32> to vector<72x1xf32>
    %c0_106 = arith.constant 0 : index
    %c1_107 = arith.constant 1 : index
    %c0_108 = arith.constant 0 : index
    %193 = vector.load %arg15[%c0_106, %c1_107, %c0_108] : memref<1x7x30xf32, #tpu.memory_space<vmem>>, vector<1x1x30xf32>
    %194 = vector.shape_cast %193 : vector<1x1x30xf32> to vector<1x30xf32>
    %195 = vector.broadcast %192 : vector<72x1xf32> to vector<72x30xf32>
    %196 = vector.broadcast %194 : vector<1x30xf32> to vector<72x30xf32>
    %197 = arith.mulf %195, %196 : vector<72x30xf32>
    %198 = arith.mulf %190, %197 : vector<72x30xf32>
    %199 = arith.addf %189, %198 : vector<72x30xf32>
    %c1_i32 = arith.constant 1 : i32
    %200 = tpu.dynamic_rotate %178 by %c1_i32 dim 0 : vector<72x30xf32>, i32 -> vector<72x30xf32>
    %c2_109 = arith.constant 2 : index
    %c0_110 = arith.constant 0 : index
    %c0_111 = arith.constant 0 : index
    %201 = vector.load %arg7[%c2_109, %c0_110, %c0_111] : memref<7x72x1xf32, #tpu.memory_space<vmem>>, vector<1x72x1xf32>
    %202 = vector.shape_cast %201 : vector<1x72x1xf32> to vector<72x1xf32>
    %c0_112 = arith.constant 0 : index
    %c2_113 = arith.constant 2 : index
    %c0_114 = arith.constant 0 : index
    %203 = vector.load %arg15[%c0_112, %c2_113, %c0_114] : memref<1x7x30xf32, #tpu.memory_space<vmem>>, vector<1x1x30xf32>
    %204 = vector.shape_cast %203 : vector<1x1x30xf32> to vector<1x30xf32>
    %205 = vector.broadcast %202 : vector<72x1xf32> to vector<72x30xf32>
    %206 = vector.broadcast %204 : vector<1x30xf32> to vector<72x30xf32>
    %207 = arith.mulf %205, %206 : vector<72x30xf32>
    %208 = arith.mulf %200, %207 : vector<72x30xf32>
    %209 = arith.addf %199, %208 : vector<72x30xf32>
    %c3_115 = arith.constant 3 : index
    %c0_116 = arith.constant 0 : index
    %c0_117 = arith.constant 0 : index
    %210 = vector.load %arg7[%c3_115, %c0_116, %c0_117] : memref<7x72x1xf32, #tpu.memory_space<vmem>>, vector<1x72x1xf32>
    %211 = vector.shape_cast %210 : vector<1x72x1xf32> to vector<72x1xf32>
    %c0_118 = arith.constant 0 : index
    %c3_119 = arith.constant 3 : index
    %c0_120 = arith.constant 0 : index
    %212 = vector.load %arg15[%c0_118, %c3_119, %c0_120] : memref<1x7x30xf32, #tpu.memory_space<vmem>>, vector<1x1x30xf32>
    %213 = vector.shape_cast %212 : vector<1x1x30xf32> to vector<1x30xf32>
    %214 = vector.broadcast %211 : vector<72x1xf32> to vector<72x30xf32>
    %215 = vector.broadcast %213 : vector<1x30xf32> to vector<72x30xf32>
    %216 = arith.mulf %214, %215 : vector<72x30xf32>
    %217 = arith.mulf %178, %216 : vector<72x30xf32>
    %218 = arith.addf %209, %217 : vector<72x30xf32>
    %c71_i32 = arith.constant 71 : i32
    %219 = tpu.dynamic_rotate %178 by %c71_i32 dim 0 : vector<72x30xf32>, i32 -> vector<72x30xf32>
    %c4_121 = arith.constant 4 : index
    %c0_122 = arith.constant 0 : index
    %c0_123 = arith.constant 0 : index
    %220 = vector.load %arg7[%c4_121, %c0_122, %c0_123] : memref<7x72x1xf32, #tpu.memory_space<vmem>>, vector<1x72x1xf32>
    %221 = vector.shape_cast %220 : vector<1x72x1xf32> to vector<72x1xf32>
    %c0_124 = arith.constant 0 : index
    %c4_125 = arith.constant 4 : index
    %c0_126 = arith.constant 0 : index
    %222 = vector.load %arg15[%c0_124, %c4_125, %c0_126] : memref<1x7x30xf32, #tpu.memory_space<vmem>>, vector<1x1x30xf32>
    %223 = vector.shape_cast %222 : vector<1x1x30xf32> to vector<1x30xf32>
    %224 = vector.broadcast %221 : vector<72x1xf32> to vector<72x30xf32>
    %225 = vector.broadcast %223 : vector<1x30xf32> to vector<72x30xf32>
    %226 = arith.mulf %224, %225 : vector<72x30xf32>
    %227 = arith.mulf %219, %226 : vector<72x30xf32>
    %228 = arith.addf %218, %227 : vector<72x30xf32>
    %c70_i32 = arith.constant 70 : i32
    %229 = tpu.dynamic_rotate %178 by %c70_i32 dim 0 : vector<72x30xf32>, i32 -> vector<72x30xf32>
    %c5_127 = arith.constant 5 : index
    %c0_128 = arith.constant 0 : index
    %c0_129 = arith.constant 0 : index
    %230 = vector.load %arg7[%c5_127, %c0_128, %c0_129] : memref<7x72x1xf32, #tpu.memory_space<vmem>>, vector<1x72x1xf32>
    %231 = vector.shape_cast %230 : vector<1x72x1xf32> to vector<72x1xf32>
    %c0_130 = arith.constant 0 : index
    %c5_131 = arith.constant 5 : index
    %c0_132 = arith.constant 0 : index
    %232 = vector.load %arg15[%c0_130, %c5_131, %c0_132] : memref<1x7x30xf32, #tpu.memory_space<vmem>>, vector<1x1x30xf32>
    %233 = vector.shape_cast %232 : vector<1x1x30xf32> to vector<1x30xf32>
    %234 = vector.broadcast %231 : vector<72x1xf32> to vector<72x30xf32>
    %235 = vector.broadcast %233 : vector<1x30xf32> to vector<72x30xf32>
    %236 = arith.mulf %234, %235 : vector<72x30xf32>
    %237 = arith.mulf %229, %236 : vector<72x30xf32>
    %238 = arith.addf %228, %237 : vector<72x30xf32>
    %c69_i32 = arith.constant 69 : i32
    %239 = tpu.dynamic_rotate %178 by %c69_i32 dim 0 : vector<72x30xf32>, i32 -> vector<72x30xf32>
    %c6_133 = arith.constant 6 : index
    %c0_134 = arith.constant 0 : index
    %c0_135 = arith.constant 0 : index
    %240 = vector.load %arg7[%c6_133, %c0_134, %c0_135] : memref<7x72x1xf32, #tpu.memory_space<vmem>>, vector<1x72x1xf32>
    %241 = vector.shape_cast %240 : vector<1x72x1xf32> to vector<72x1xf32>
    %c0_136 = arith.constant 0 : index
    %c6_137 = arith.constant 6 : index
    %c0_138 = arith.constant 0 : index
    %242 = vector.load %arg15[%c0_136, %c6_137, %c0_138] : memref<1x7x30xf32, #tpu.memory_space<vmem>>, vector<1x1x30xf32>
    %243 = vector.shape_cast %242 : vector<1x1x30xf32> to vector<1x30xf32>
    %244 = vector.broadcast %241 : vector<72x1xf32> to vector<72x30xf32>
    %245 = vector.broadcast %243 : vector<1x30xf32> to vector<72x30xf32>
    %246 = arith.mulf %244, %245 : vector<72x30xf32>
    %247 = arith.mulf %239, %246 : vector<72x30xf32>
    %248 = arith.addf %238, %247 : vector<72x30xf32>
    %249 = arith.negf %248 : vector<72x30xf32>
    %250 = math.exp %249 : vector<72x30xf32>
    %cst_139 = arith.constant 1.000000e+00 : f32
    %251 = vector.broadcast %cst_139 : f32 to vector<72x30xf32>
    %252 = arith.addf %251, %250 : vector<72x30xf32>
    %253 = arith.divf %251, %252 : vector<72x30xf32>
    %254 = arith.mulf %248, %253 : vector<72x30xf32>
    %255 = arith.truncf %254 : vector<72x30xf32> to vector<72x30xbf16>
    %c0_140 = arith.constant 0 : index
    %c6_141 = arith.constant 6 : index
    %c0_142 = arith.constant 0 : index
    %c0_143 = arith.constant 0 : index
    %256 = vector.load %arg10[%c0_140, %c6_141, %c0_142, %c0_143] : memref<1x7x30x30xbf16, #tpu.memory_space<vmem>>, vector<1x1x30x30xbf16>
    %257 = vector.shape_cast %256 : vector<1x1x30x30xbf16> to vector<30x30xbf16>
    %cst_144 = arith.constant dense<0.000000e+00> : vector<72x30xf32>
    %258 = tpu.matmul %255, %257, %cst_144 {dimension_numbers = #tpu.dot_dimension_numbers<[1], [0], [0], [1], [0, 0, 1, 1], [], []>} : vector<72x30xbf16>, vector<30x30xbf16>, vector<72x30xf32> -> vector<72x30xf32>
    %c0_145 = arith.constant 0 : index
    %c13 = arith.constant 13 : index
    %c0_146 = arith.constant 0 : index
    %259 = vector.load %arg13[%c0_145, %c13, %c0_146] : memref<1x19x30xf32, #tpu.memory_space<vmem>>, vector<1x1x30xf32>
    %260 = vector.shape_cast %259 : vector<1x1x30xf32> to vector<1x30xf32>
    %261 = vector.broadcast %260 : vector<1x30xf32> to vector<72x30xf32>
    %262 = arith.addf %258, %261 : vector<72x30xf32>
    %263 = arith.addf %131, %262 : vector<72x30xf32>
    %c0_147 = arith.constant 0 : index
    %c14 = arith.constant 14 : index
    %c0_148 = arith.constant 0 : index
    %264 = vector.load %arg13[%c0_147, %c14, %c0_148] : memref<1x19x30xf32, #tpu.memory_space<vmem>>, vector<1x1x30xf32>
    %265 = vector.shape_cast %264 : vector<1x1x30xf32> to vector<1x30xf32>
    %c0_149 = arith.constant 0 : index
    %c15 = arith.constant 15 : index
    %c0_150 = arith.constant 0 : index
    %266 = vector.load %arg13[%c0_149, %c15, %c0_150] : memref<1x19x30xf32, #tpu.memory_space<vmem>>, vector<1x1x30xf32>
    %267 = vector.shape_cast %266 : vector<1x1x30xf32> to vector<1x30xf32>
    %cst_151 = arith.constant dense<0.000000e+00> : vector<72xf32>
    %268 = vector.multi_reduction <add>, %263, %cst_151 [1] : vector<72x30xf32> to vector<72xf32>
    %269 = vector.shape_cast %268 : vector<72xf32> to vector<72x1xf32>
    %cst_152 = arith.constant 3.000000e+01 : f32
    %270 = vector.broadcast %cst_152 : f32 to vector<72x1xf32>
    %271 = arith.divf %269, %270 : vector<72x1xf32>
    %272 = vector.broadcast %271 : vector<72x1xf32> to vector<72x30xf32>
    %273 = arith.subf %263, %272 : vector<72x30xf32>
    %274 = arith.mulf %273, %273 : vector<72x30xf32>
    %cst_153 = arith.constant dense<0.000000e+00> : vector<72xf32>
    %275 = vector.multi_reduction <add>, %274, %cst_153 [1] : vector<72x30xf32> to vector<72xf32>
    %276 = vector.shape_cast %275 : vector<72xf32> to vector<72x1xf32>
    %cst_154 = arith.constant 3.000000e+01 : f32
    %277 = vector.broadcast %cst_154 : f32 to vector<72x1xf32>
    %278 = arith.divf %276, %277 : vector<72x1xf32>
    %279 = vector.broadcast %271 : vector<72x1xf32> to vector<72x30xf32>
    %280 = arith.subf %263, %279 : vector<72x30xf32>
    %cst_155 = arith.constant 9.99999974E-6 : f32
    %281 = vector.broadcast %cst_155 : f32 to vector<72x1xf32>
    %282 = arith.addf %278, %281 : vector<72x1xf32>
    %283 = math.rsqrt %282 : vector<72x1xf32>
    %284 = vector.broadcast %283 : vector<72x1xf32> to vector<72x30xf32>
    %285 = arith.mulf %280, %284 : vector<72x30xf32>
    %286 = vector.broadcast %265 : vector<1x30xf32> to vector<72x30xf32>
    %287 = arith.mulf %285, %286 : vector<72x30xf32>
    %288 = vector.broadcast %267 : vector<1x30xf32> to vector<72x30xf32>
    %289 = arith.addf %287, %288 : vector<72x30xf32>
    %290 = arith.truncf %289 : vector<72x30xf32> to vector<72x30xbf16>
    %c0_156 = arith.constant 0 : index
    %c1_157 = arith.constant 1 : index
    %c0_158 = arith.constant 0 : index
    %c0_159 = arith.constant 0 : index
    %291 = vector.load %arg11[%c0_156, %c1_157, %c0_158, %c0_159] : memref<1x2x30x120xbf16, #tpu.memory_space<vmem>>, vector<1x1x30x120xbf16>
    %292 = vector.shape_cast %291 : vector<1x1x30x120xbf16> to vector<30x120xbf16>
    %cst_160 = arith.constant dense<0.000000e+00> : vector<72x120xf32>
    %293 = tpu.matmul %290, %292, %cst_160 {dimension_numbers = #tpu.dot_dimension_numbers<[1], [0], [0], [1], [0, 0, 1, 1], [], []>} : vector<72x30xbf16>, vector<30x120xbf16>, vector<72x120xf32> -> vector<72x120xf32>
    %c0_161 = arith.constant 0 : index
    %c1_162 = arith.constant 1 : index
    %c0_163 = arith.constant 0 : index
    %294 = vector.load %arg14[%c0_161, %c1_162, %c0_163] : memref<1x2x120xf32, #tpu.memory_space<vmem>>, vector<1x1x120xf32>
    %295 = vector.shape_cast %294 : vector<1x1x120xf32> to vector<1x120xf32>
    %296 = vector.broadcast %295 : vector<1x120xf32> to vector<72x120xf32>
    %297 = arith.addf %293, %296 : vector<72x120xf32>
    %298 = arith.negf %297 : vector<72x120xf32>
    %299 = math.exp %298 : vector<72x120xf32>
    %cst_164 = arith.constant 1.000000e+00 : f32
    %300 = vector.broadcast %cst_164 : f32 to vector<72x120xf32>
    %301 = arith.addf %300, %299 : vector<72x120xf32>
    %302 = arith.divf %300, %301 : vector<72x120xf32>
    %303 = arith.mulf %297, %302 : vector<72x120xf32>
    %304 = arith.truncf %303 : vector<72x120xf32> to vector<72x120xbf16>
    %c0_165 = arith.constant 0 : index
    %c1_166 = arith.constant 1 : index
    %c0_167 = arith.constant 0 : index
    %c0_168 = arith.constant 0 : index
    %305 = vector.load %arg12[%c0_165, %c1_166, %c0_167, %c0_168] : memref<1x2x120x30xbf16, #tpu.memory_space<vmem>>, vector<1x1x120x30xbf16>
    %306 = vector.shape_cast %305 : vector<1x1x120x30xbf16> to vector<120x30xbf16>
    %cst_169 = arith.constant dense<0.000000e+00> : vector<72x30xf32>
    %307 = tpu.matmul %304, %306, %cst_169 {dimension_numbers = #tpu.dot_dimension_numbers<[1], [0], [0], [1], [0, 0, 1, 1], [], []>} : vector<72x120xbf16>, vector<120x30xbf16>, vector<72x30xf32> -> vector<72x30xf32>
    %c0_170 = arith.constant 0 : index
    %c16 = arith.constant 16 : index
    %c0_171 = arith.constant 0 : index
    %308 = vector.load %arg13[%c0_170, %c16, %c0_171] : memref<1x19x30xf32, #tpu.memory_space<vmem>>, vector<1x1x30xf32>
    %309 = vector.shape_cast %308 : vector<1x1x30xf32> to vector<1x30xf32>
    %310 = vector.broadcast %309 : vector<1x30xf32> to vector<72x30xf32>
    %311 = arith.addf %307, %310 : vector<72x30xf32>
    %cst_172 = arith.constant 5.000000e-01 : f32
    %312 = vector.broadcast %cst_172 : f32 to vector<72x30xf32>
    %313 = arith.mulf %312, %311 : vector<72x30xf32>
    %314 = arith.addf %263, %313 : vector<72x30xf32>
    %c0_173 = arith.constant 0 : index
    %c17 = arith.constant 17 : index
    %c0_174 = arith.constant 0 : index
    %315 = vector.load %arg13[%c0_173, %c17, %c0_174] : memref<1x19x30xf32, #tpu.memory_space<vmem>>, vector<1x1x30xf32>
    %316 = vector.shape_cast %315 : vector<1x1x30xf32> to vector<1x30xf32>
    %c0_175 = arith.constant 0 : index
    %c18 = arith.constant 18 : index
    %c0_176 = arith.constant 0 : index
    %317 = vector.load %arg13[%c0_175, %c18, %c0_176] : memref<1x19x30xf32, #tpu.memory_space<vmem>>, vector<1x1x30xf32>
    %318 = vector.shape_cast %317 : vector<1x1x30xf32> to vector<1x30xf32>
    %cst_177 = arith.constant dense<0.000000e+00> : vector<72xf32>
    %319 = vector.multi_reduction <add>, %314, %cst_177 [1] : vector<72x30xf32> to vector<72xf32>
    %320 = vector.shape_cast %319 : vector<72xf32> to vector<72x1xf32>
    %cst_178 = arith.constant 3.000000e+01 : f32
    %321 = vector.broadcast %cst_178 : f32 to vector<72x1xf32>
    %322 = arith.divf %320, %321 : vector<72x1xf32>
    %323 = vector.broadcast %322 : vector<72x1xf32> to vector<72x30xf32>
    %324 = arith.subf %314, %323 : vector<72x30xf32>
    %325 = arith.mulf %324, %324 : vector<72x30xf32>
    %cst_179 = arith.constant dense<0.000000e+00> : vector<72xf32>
    %326 = vector.multi_reduction <add>, %325, %cst_179 [1] : vector<72x30xf32> to vector<72xf32>
    %327 = vector.shape_cast %326 : vector<72xf32> to vector<72x1xf32>
    %cst_180 = arith.constant 3.000000e+01 : f32
    %328 = vector.broadcast %cst_180 : f32 to vector<72x1xf32>
    %329 = arith.divf %327, %328 : vector<72x1xf32>
    %330 = vector.broadcast %322 : vector<72x1xf32> to vector<72x30xf32>
    %331 = arith.subf %314, %330 : vector<72x30xf32>
    %cst_181 = arith.constant 9.99999974E-6 : f32
    %332 = vector.broadcast %cst_181 : f32 to vector<72x1xf32>
    %333 = arith.addf %329, %332 : vector<72x1xf32>
    %334 = math.rsqrt %333 : vector<72x1xf32>
    %335 = vector.broadcast %334 : vector<72x1xf32> to vector<72x30xf32>
    %336 = arith.mulf %331, %335 : vector<72x30xf32>
    %337 = vector.broadcast %316 : vector<1x30xf32> to vector<72x30xf32>
    %338 = arith.mulf %336, %337 : vector<72x30xf32>
    %339 = vector.broadcast %318 : vector<1x30xf32> to vector<72x30xf32>
    %340 = arith.addf %338, %339 : vector<72x30xf32>
    %c0_182 = arith.constant 0 : index
    %c0_183 = arith.constant 0 : index
    %341 = vector.load %arg18[%c0_182, %c0_183] : memref<72x30xf32, #tpu.memory_space<vmem>>, vector<72x30xf32>
    tpu.vector_store %arg18[%c0_182, %c0_183], %340 {strides = array<i32>} : memref<72x30xf32, #tpu.memory_space<vmem>>, vector<72x30xf32>,
    %c0_184 = arith.constant 0 : index
    %c0_185 = arith.constant 0 : index
    %c0_186 = arith.constant 0 : index
    %c0_187 = arith.constant 0 : index
    %342 = vector.load %arg16[%c0_184, %c0_185, %c0_186, %c0_187] : memref<1x1x72x30xf32, #tpu.memory_space<vmem>>, vector<1x1x72x30xf32>
    %343 = vector.shape_cast %342 : vector<1x1x72x30xf32> to vector<72x30xf32>
    %344 = vector.shape_cast %340 : vector<72x30xf32> to vector<1x1x72x30xf32>
    tpu.vector_store %arg16[%c0_184, %c0_185, %c0_186, %c0_187], %344 {strides = array<i32>} : memref<1x1x72x30xf32, #tpu.memory_space<vmem>>, vector<1x1x72x30xf32>,
    %c1_i32_188 = arith.constant 1 : i32
    %345 = arith.cmpi eq, %arg1, %c1_i32_188 : i32
    %346 = arith.extui %345 : i1 to i32
    %c0_i32_189 = arith.constant 0 : i32
    %347 = arith.cmpi ne, %346, %c0_i32_189 : i32
    scf.if %347 {
      %cst_190 = arith.constant 0.000000e+00 : f32
      %348 = vector.broadcast %cst_190 : f32 to vector<72x30xf32>
      %c0_191 = arith.constant 0 : index
      %c0_192 = arith.constant 0 : index
      %349 = vector.load %arg8[%c0_191, %c0_192] : memref<3x30xf32, #tpu.memory_space<vmem>>, vector<1x30xf32>
      %350 = vector.broadcast %349 : vector<1x30xf32> to vector<72x30xf32>
      %351 = arith.mulf %340, %350 : vector<72x30xf32>
      %352 = arith.addf %348, %351 : vector<72x30xf32>
      %c71_i32_193 = arith.constant 71 : i32
      %353 = tpu.dynamic_rotate %340 by %c71_i32_193 dim 0 : vector<72x30xf32>, i32 -> vector<72x30xf32>
      %c1_194 = arith.constant 1 : index
      %c0_195 = arith.constant 0 : index
      %354 = vector.load %arg8[%c1_194, %c0_195] : memref<3x30xf32, #tpu.memory_space<vmem>>, vector<1x30xf32>
      %355 = vector.broadcast %354 : vector<1x30xf32> to vector<72x30xf32>
      %356 = arith.mulf %353, %355 : vector<72x30xf32>
      %357 = arith.addf %352, %356 : vector<72x30xf32>
      %c70_i32_196 = arith.constant 70 : i32
      %358 = tpu.dynamic_rotate %340 by %c70_i32_196 dim 0 : vector<72x30xf32>, i32 -> vector<72x30xf32>
      %c2_197 = arith.constant 2 : index
      %c0_198 = arith.constant 0 : index
      %359 = vector.load %arg8[%c2_197, %c0_198] : memref<3x30xf32, #tpu.memory_space<vmem>>, vector<1x30xf32>
      %360 = vector.broadcast %359 : vector<1x30xf32> to vector<72x30xf32>
      %361 = arith.mulf %358, %360 : vector<72x30xf32>
      %362 = arith.addf %357, %361 : vector<72x30xf32>
      %cst_199 = arith.constant dense<0.000000e+00> : vector<72xf32>
      %363 = vector.multi_reduction <add>, %362, %cst_199 [1] : vector<72x30xf32> to vector<72xf32>
      %364 = vector.shape_cast %363 : vector<72xf32> to vector<72x1xf32>
      %c0_200 = arith.constant 0 : index
      %c0_201 = arith.constant 0 : index
      %365 = vector.load %arg9[%c0_200, %c0_201] : memref<1x1xf32, #tpu.memory_space<vmem>>, vector<1x1xf32>
      %366 = vector.broadcast %365 : vector<1x1xf32> to vector<72x1xf32>
      %367 = arith.addf %364, %366 : vector<72x1xf32>
      %c0_202 = arith.constant 0 : index
      %c0_203 = arith.constant 0 : index
      %c0_204 = arith.constant 0 : index
      %368 = vector.load %arg17[%c0_202, %c0_203, %c0_204] : memref<1x72x1xf32, #tpu.memory_space<vmem>>, vector<1x72x1xf32>
      %369 = vector.shape_cast %368 : vector<1x72x1xf32> to vector<72x1xf32>
      %370 = vector.shape_cast %367 : vector<72x1xf32> to vector<1x72x1xf32>
      tpu.vector_store %arg17[%c0_202, %c0_203, %c0_204], %370 {strides = array<i32>} : memref<1x72x1xf32, #tpu.memory_space<vmem>>, vector<1x72x1xf32>,
    } else {
    }
    return
  }
  func.func @transform_0(%arg0: i32, %arg1: i32) -> (i32, i32, i32) {
    %c0_i32 = arith.constant 0 : i32
    %c0_i32_0 = arith.constant 0 : i32
    %c0_i32_1 = arith.constant 0 : i32
    return %arg0, %c0_i32, %c0_i32_0 : i32, i32, i32
  }
  func.func @transform_1(%arg0: i32, %arg1: i32) -> (i32, i32) {
    %c0_i32 = arith.constant 0 : i32
    %c0_i32_0 = arith.constant 0 : i32
    %c0_i32_1 = arith.constant 0 : i32
    return %c0_i32, %c0_i32_0 : i32, i32
  }
  func.func @transform_2(%arg0: i32, %arg1: i32) -> (i32, i32) {
    %c0_i32 = arith.constant 0 : i32
    %c0_i32_0 = arith.constant 0 : i32
    %c0_i32_1 = arith.constant 0 : i32
    return %c0_i32, %c0_i32_0 : i32, i32
  }
  func.func @transform_3(%arg0: i32, %arg1: i32) -> (i32, i32) {
    %c0_i32 = arith.constant 0 : i32
    %c0_i32_0 = arith.constant 0 : i32
    %c0_i32_1 = arith.constant 0 : i32
    return %c0_i32, %c0_i32_0 : i32, i32
  }
  func.func @transform_4(%arg0: i32, %arg1: i32) -> (i32, i32) {
    %c0_i32 = arith.constant 0 : i32
    %c0_i32_0 = arith.constant 0 : i32
    %c0_i32_1 = arith.constant 0 : i32
    return %c0_i32, %c0_i32_0 : i32, i32
  }
  func.func @transform_5(%arg0: i32, %arg1: i32) -> (i32, i32, i32) {
    %c0_i32 = arith.constant 0 : i32
    %c0_i32_0 = arith.constant 0 : i32
    %c0_i32_1 = arith.constant 0 : i32
    %c0_i32_2 = arith.constant 0 : i32
    return %c0_i32, %c0_i32_0, %c0_i32_1 : i32, i32, i32
  }
  func.func @transform_6(%arg0: i32, %arg1: i32) -> (i32, i32) {
    %c0_i32 = arith.constant 0 : i32
    %c0_i32_0 = arith.constant 0 : i32
    %c0_i32_1 = arith.constant 0 : i32
    return %c0_i32, %c0_i32_0 : i32, i32
  }
  func.func @transform_7(%arg0: i32, %arg1: i32) -> (i32, i32) {
    %c0_i32 = arith.constant 0 : i32
    %c0_i32_0 = arith.constant 0 : i32
    %c0_i32_1 = arith.constant 0 : i32
    return %c0_i32, %c0_i32_0 : i32, i32
  }
  func.func @transform_8(%arg0: i32, %arg1: i32) -> (i32, i32, i32, i32) {
    %c0_i32 = arith.constant 0 : i32
    %c0_i32_0 = arith.constant 0 : i32
    %c0_i32_1 = arith.constant 0 : i32
    %c0_i32_2 = arith.constant 0 : i32
    return %arg1, %c0_i32, %c0_i32_0, %c0_i32_1 : i32, i32, i32, i32
  }
  func.func @transform_9(%arg0: i32, %arg1: i32) -> (i32, i32, i32, i32) {
    %c0_i32 = arith.constant 0 : i32
    %c0_i32_0 = arith.constant 0 : i32
    %c0_i32_1 = arith.constant 0 : i32
    %c0_i32_2 = arith.constant 0 : i32
    return %arg1, %c0_i32, %c0_i32_0, %c0_i32_1 : i32, i32, i32, i32
  }
  func.func @transform_10(%arg0: i32, %arg1: i32) -> (i32, i32, i32, i32) {
    %c0_i32 = arith.constant 0 : i32
    %c0_i32_0 = arith.constant 0 : i32
    %c0_i32_1 = arith.constant 0 : i32
    %c0_i32_2 = arith.constant 0 : i32
    return %arg1, %c0_i32, %c0_i32_0, %c0_i32_1 : i32, i32, i32, i32
  }
  func.func @transform_11(%arg0: i32, %arg1: i32) -> (i32, i32, i32) {
    %c0_i32 = arith.constant 0 : i32
    %c0_i32_0 = arith.constant 0 : i32
    %c0_i32_1 = arith.constant 0 : i32
    return %arg1, %c0_i32, %c0_i32_0 : i32, i32, i32
  }
  func.func @transform_12(%arg0: i32, %arg1: i32) -> (i32, i32, i32) {
    %c0_i32 = arith.constant 0 : i32
    %c0_i32_0 = arith.constant 0 : i32
    %c0_i32_1 = arith.constant 0 : i32
    return %arg1, %c0_i32, %c0_i32_0 : i32, i32, i32
  }
  func.func @transform_13(%arg0: i32, %arg1: i32) -> (i32, i32, i32) {
    %c0_i32 = arith.constant 0 : i32
    %c0_i32_0 = arith.constant 0 : i32
    %c0_i32_1 = arith.constant 0 : i32
    return %arg1, %c0_i32, %c0_i32_0 : i32, i32, i32
  }
  func.func @transform_14(%arg0: i32, %arg1: i32) -> (i32, i32, i32, i32) {
    %c0_i32 = arith.constant 0 : i32
    %c0_i32_0 = arith.constant 0 : i32
    %c0_i32_1 = arith.constant 0 : i32
    return %arg1, %arg0, %c0_i32, %c0_i32_0 : i32, i32, i32, i32
  }
  func.func @transform_15(%arg0: i32, %arg1: i32) -> (i32, i32, i32) {
    %c0_i32 = arith.constant 0 : i32
    %c0_i32_0 = arith.constant 0 : i32
    %c0_i32_1 = arith.constant 0 : i32
    return %arg0, %c0_i32, %c0_i32_0 : i32, i32, i32
  }
}

</mosaic_0001>

<llo_original>
// kernel: dpd_forward.1
$region0: #{dpd_forward.1}
  #allocation0 [shape = 'u32[]', space=smem, size = 0x4, offset = 0x4, fixed_abs, tag = 'smem constant byte address 0x4 - core index']
  #allocation1 [shape = 'u32[72,128]{1,0:T(1,128)}', space=vmem, size = 0x9000, scoped, tag = 'internal scratch']
  #allocation2 [shape = 'f32[72,30]{1,0:T(8,128)}', space=vmem, size = 0x9000, scoped, tag = 'scratch operand']
  #allocation3 [shape = 'f32[1,1]{1,0:T(1,128)S(1)}', space=vmem, size = 0x200, scoped, tag = 'scoped memory for dpd_forward.1']
  %s0 = inlined_call_operand.vmem [shape: f32[2,54,30], index: 0, kind: input, shape index: {}]
  %s1 = inlined_call_operand.vmem [shape: f32[2,30], index: 1, kind: input, shape index: {}]
  %s2 = inlined_call_operand.vmem [shape: f32[72,54], index: 2, kind: input, shape index: {}]
  %s3 = inlined_call_operand.vmem [shape: f32[72,2], index: 3, kind: input, shape index: {}]
  %s4 = inlined_call_operand.vmem [shape: f32[72,72], index: 4, kind: input, shape index: {}]
  %s5 = inlined_call_operand.vmem [shape: f32[7,72,1], index: 5, kind: input, shape index: {}]
  %s6 = inlined_call_operand.vmem [shape: f32[3,30], index: 6, kind: input, shape index: {}]
  %s7 = inlined_call_operand.<no memory space> [shape: f32[1,1], index: 7, kind: input, shape index: {}]
  %s8 = inlined_call_operand.vmem [shape: bf16[2,7,30,30], index: 8, kind: input, shape index: {}]
  %s9 = inlined_call_operand.vmem [shape: bf16[2,2,30,120], index: 9, kind: input, shape index: {}]
  %s10 = inlined_call_operand.vmem [shape: bf16[2,2,120,30], index: 10, kind: input, shape index: {}]
  %s11 = inlined_call_operand.vmem [shape: f32[2,19,30], index: 11, kind: input, shape index: {}]
  %s12 = inlined_call_operand.vmem [shape: f32[2,2,120], index: 12, kind: input, shape index: {}]
  %s13 = inlined_call_operand.vmem [shape: f32[2,7,30], index: 13, kind: input, shape index: {}]
  %s14 = inlined_call_operand.vmem [shape: f32[2,2,72,30], index: 14, kind: output, shape index: {0}]
  %s15 = inlined_call_operand.vmem [shape: f32[2,72,1], index: 15, kind: output, shape index: {1}]
  %16 = xla_tuple %s14, %s15
  %s17 = sld [smem:[#allocation0]]
  $region105: #{dpd_forward.1} parent=0
    _
  %s19 = ssub.s32 1, %s17
  %s20 = scalar_select 0, %s19, %s17
  %v21 = vstv %s7
  %22 = vst [vmem:[#allocation3] sm:$0x1] %v21
  loop: start=0, step=1, limit=6
  $region2: #{dpd_forward.1} parent=0 // loop_pre_header
    _
  $region3: #{dpd_forward.1} parent=0 // loop_header
    %s24 = sphi 0, %s28
    %p25 = scmp.ge.s32.totalorder %s24, 6
    %s31 = sphi 0, %s43
    %s32 = sphi 0, %s39
    %s33 = sphi 0, %s31
    %s34 = sphi 0, %s32
    %s35 = sphi 0, %s33
    %s36 = sphi 0, %s34
    %s46 = sphi 0, %s48
    %s49 = sphi 0, %s46
    %s50 = sphi 0, %s49
    %s66 = sphi 0, %s50
    %s70 = sphi 0, %s70
    %s72 = sphi 0, %s70
    %s73 = sphi 0, %s72
    %s87 = sphi 0, %s73
    %s91 = sphi 0, %s91
    %s93 = sphi 0, %s91
    %s94 = sphi 0, %s93
    %s108 = sphi 0, %s94
    %s112 = sphi 0, %s112
    %s114 = sphi 0, %s112
    %s115 = sphi 0, %s114
    %s129 = sphi 0, %s115
    %s133 = sphi 0, %s133
    %s135 = sphi 0, %s133
    %s136 = sphi 0, %s135
    %s150 = sphi 0, %s136
    %s154 = sphi 0, %s154
    %s156 = sphi 0, %s154
    %s157 = sphi 0, %s156
    %s171 = sphi 0, %s157
    %s175 = sphi 0, %s175
    %s177 = sphi 0, %s175
    %s178 = sphi 0, %s177
    %s192 = sphi 0, %s178
    %s196 = sphi 0, %s196
    %s198 = sphi 0, %s196
    %s199 = sphi 0, %s198
    %s213 = sphi 0, %s199
    %s219 = sphi 0, %s221
    %s222 = sphi 0, %s219
    %s223 = sphi 0, %s222
    %s239 = sphi 0, %s223
    %s245 = sphi 0, %s247
    %s248 = sphi 0, %s245
    %s249 = sphi 0, %s248
    %s265 = sphi 0, %s249
    %s271 = sphi 0, %s273
    %s274 = sphi 0, %s271
    %s275 = sphi 0, %s274
    %s291 = sphi 0, %s275
    %s297 = sphi 0, %s299
    %s300 = sphi 0, %s297
    %s301 = sphi 0, %s300
    %s317 = sphi 0, %s301
    %s323 = sphi 0, %s325
    %s326 = sphi 0, %s323
    %s327 = sphi 0, %s326
    %s343 = sphi 0, %s327
    %s349 = sphi 0, %s351
    %s352 = sphi 0, %s349
    %s353 = sphi 0, %s352
    %s369 = sphi 0, %s353
    %s377 = sphi 0, %s379
    %s380 = sphi 0, %s377
    %s381 = sphi 0, %s380
    %s397 = sphi 0, %s381
    %s403 = sphi 0, %s405
    %s406 = sphi 0, %s403
    %s407 = sphi 0, %s406
    %s423 = sphi 0, %s407
  $region4: #{dpd_forward.1} parent=0 // loop_header_branch
    %27 = sbr.rel (%p25) target = $region8
  $region5: #{dpd_forward.1} parent=0 // loop_body
    %s29 = ssub.s32 %s24, 1
    %s30 = ssub.s32 %s24, 2
    %s37 = sadd.s32 1, %s32
    %p38 = scmp.ge.s32.totalorder %s37, 2
    %s39 = scalar_select %p38, 0, %s37
    %s40 = sadd.s32 1, %s31
    %s41 = scalar_select %p38, %s40, %s31
    %p42 = scmp.ge.s32.totalorder %s41, 2
    %s43 = scalar_select %p42, 0, %s41
    %s44 = ssub.s32 %s31, %s43
    %p45 = scmp.eq.s32.totalorder %s44, 0
    %s47 = sadd.s32 %s46, 1
    %s48 = scalar_select %p45, %s46, %s47
    %p51 = pneg %p45
    %p52 = scmp.eq.s32.totalorder %s24, 3
    %p53 = por %p51, %p52
    %p54 = scmp.ne.s32.totalorder %s46, %s49
    %p55 = scmp.eq.s32.totalorder %s24, 0
    %p56 = por %p54, %p55
    %p57 = scmp.ne.s32.totalorder %s46, %s49
    %p58 = scmp.eq.s32.totalorder %s29, 3
    %p59 = por %p57, %p58
    %p60 = scmp.ne.s32.totalorder %s49, %s50
    %p61 = scmp.eq.s32.totalorder %s29, 0
    %p62 = por %p60, %p61
    %p63 = scmp.ne.s32.totalorder %s49, %s50
    %p64 = scmp.eq.s32.totalorder %s30, 3
    %p65 = por %p63, %p64
    %p67 = scmp.ne.s32.totalorder %s50, %s66
    %p68 = scmp.eq.s32.totalorder %s30, 0
    %p69 = por %p67, %p68
    %s71 = sadd.s32 %s70, 1
    %p74 = scmp.eq.s32.totalorder %s24, 3
    %p75 = scmp.ne.s32.totalorder %s70, %s72
    %p76 = scmp.eq.s32.totalorder %s24, 0
    %p77 = por %p75, %p76
    %p78 = scmp.ne.s32.totalorder %s70, %s72
    %p79 = scmp.eq.s32.totalorder %s29, 3
    %p80 = por %p78, %p79
    %p81 = scmp.ne.s32.totalorder %s72, %s73
    %p82 = scmp.eq.s32.totalorder %s29, 0
    %p83 = por %p81, %p82
    %p84 = scmp.ne.s32.totalorder %s72, %s73
    %p85 = scmp.eq.s32.totalorder %s30, 3
    %p86 = por %p84, %p85
    %p88 = scmp.ne.s32.totalorder %s73, %s87
    %p89 = scmp.eq.s32.totalorder %s30, 0
    %p90 = por %p88, %p89
    %s92 = sadd.s32 %s91, 1
    %p95 = scmp.eq.s32.totalorder %s24, 3
    %p96 = scmp.ne.s32.totalorder %s91, %s93
    %p97 = scmp.eq.s32.totalorder %s24, 0
    %p98 = por %p96, %p97
    %p99 = scmp.ne.s32.totalorder %s91, %s93
    %p100 = scmp.eq.s32.totalorder %s29, 3
    %p101 = por %p99, %p100
    %p102 = scmp.ne.s32.totalorder %s93, %s94
    %p103 = scmp.eq.s32.totalorder %s29, 0
    %p104 = por %p102, %p103
    %p105 = scmp.ne.s32.totalorder %s93, %s94
    %p106 = scmp.eq.s32.totalorder %s30, 3
    %p107 = por %p105, %p106
    %p109 = scmp.ne.s32.totalorder %s94, %s108
    %p110 = scmp.eq.s32.totalorder %s30, 0
    %p111 = por %p109, %p110
    %s113 = sadd.s32 %s112, 1
    %p116 = scmp.eq.s32.totalorder %s24, 3
    %p117 = scmp.ne.s32.totalorder %s112, %s114
    %p118 = scmp.eq.s32.totalorder %s24, 0
    %p119 = por %p117, %p118
    %p120 = scmp.ne.s32.totalorder %s112, %s114
    %p121 = scmp.eq.s32.totalorder %s29, 3
    %p122 = por %p120, %p121
    %p123 = scmp.ne.s32.totalorder %s114, %s115
    %p124 = scmp.eq.s32.totalorder %s29, 0
    %p125 = por %p123, %p124
    %p126 = scmp.ne.s32.totalorder %s114, %s115
    %p127 = scmp.eq.s32.totalorder %s30, 3
    %p128 = por %p126, %p127
    %p130 = scmp.ne.s32.totalorder %s115, %s129
    %p131 = scmp.eq.s32.totalorder %s30, 0
    %p132 = por %p130, %p131
    %s134 = sadd.s32 %s133, 1
    %p137 = scmp.eq.s32.totalorder %s24, 3
    %p138 = scmp.ne.s32.totalorder %s133, %s135
    %p139 = scmp.eq.s32.totalorder %s24, 0
    %p140 = por %p138, %p139
    %p141 = scmp.ne.s32.totalorder %s133, %s135
    %p142 = scmp.eq.s32.totalorder %s29, 3
    %p143 = por %p141, %p142
    %p144 = scmp.ne.s32.totalorder %s135, %s136
    %p145 = scmp.eq.s32.totalorder %s29, 0
    %p146 = por %p144, %p145
    %p147 = scmp.ne.s32.totalorder %s135, %s136
    %p148 = scmp.eq.s32.totalorder %s30, 3
    %p149 = por %p147, %p148
    %p151 = scmp.ne.s32.totalorder %s136, %s150
    %p152 = scmp.eq.s32.totalorder %s30, 0
    %p153 = por %p151, %p152
    %s155 = sadd.s32 %s154, 1
    %p158 = scmp.eq.s32.totalorder %s24, 3
    %p159 = scmp.ne.s32.totalorder %s154, %s156
    %p160 = scmp.eq.s32.totalorder %s24, 0
    %p161 = por %p159, %p160
    %p162 = scmp.ne.s32.totalorder %s154, %s156
    %p163 = scmp.eq.s32.totalorder %s29, 3
    %p164 = por %p162, %p163
    %p165 = scmp.ne.s32.totalorder %s156, %s157
    %p166 = scmp.eq.s32.totalorder %s29, 0
    %p167 = por %p165, %p166
    %p168 = scmp.ne.s32.totalorder %s156, %s157
    %p169 = scmp.eq.s32.totalorder %s30, 3
    %p170 = por %p168, %p169
    %p172 = scmp.ne.s32.totalorder %s157, %s171
    %p173 = scmp.eq.s32.totalorder %s30, 0
    %p174 = por %p172, %p173
    %s176 = sadd.s32 %s175, 1
    %p179 = scmp.eq.s32.totalorder %s24, 3
    %p180 = scmp.ne.s32.totalorder %s175, %s177
    %p181 = scmp.eq.s32.totalorder %s24, 0
    %p182 = por %p180, %p181
    %p183 = scmp.ne.s32.totalorder %s175, %s177
    %p184 = scmp.eq.s32.totalorder %s29, 3
    %p185 = por %p183, %p184
    %p186 = scmp.ne.s32.totalorder %s177, %s178
    %p187 = scmp.eq.s32.totalorder %s29, 0
    %p188 = por %p186, %p187
    %p189 = scmp.ne.s32.totalorder %s177, %s178
    %p190 = scmp.eq.s32.totalorder %s30, 3
    %p191 = por %p189, %p190
    %p193 = scmp.ne.s32.totalorder %s178, %s192
    %p194 = scmp.eq.s32.totalorder %s30, 0
    %p195 = por %p193, %p194
    %s197 = sadd.s32 %s196, 1
    %p200 = scmp.eq.s32.totalorder %s24, 3
    %p201 = scmp.ne.s32.totalorder %s196, %s198
    %p202 = scmp.eq.s32.totalorder %s24, 0
    %p203 = por %p201, %p202
    %p204 = scmp.ne.s32.totalorder %s196, %s198
    %p205 = scmp.eq.s32.totalorder %s29, 3
    %p206 = por %p204, %p205
    %p207 = scmp.ne.s32.totalorder %s198, %s199
    %p208 = scmp.eq.s32.totalorder %s29, 0
    %p209 = por %p207, %p208
    %p210 = scmp.ne.s32.totalorder %s198, %s199
    %p211 = scmp.eq.s32.totalorder %s30, 3
    %p212 = por %p210, %p211
    %p214 = scmp.ne.s32.totalorder %s199, %s213
    %p215 = scmp.eq.s32.totalorder %s30, 0
    %p216 = por %p214, %p215
    %s217 = ssub.s32 %s32, %s39
    %p218 = scmp.eq.s32.totalorder %s217, 0
    %s220 = sadd.s32 %s219, 1
    %s221 = scalar_select %p218, %s219, %s220
    %p224 = pneg %p218
    %p225 = scmp.eq.s32.totalorder %s24, 3
    %p226 = por %p224, %p225
    %p227 = scmp.ne.s32.totalorder %s219, %s222
    %p228 = scmp.eq.s32.totalorder %s24, 0
    %p229 = por %p227, %p228
    %p230 = scmp.ne.s32.totalorder %s219, %s222
    %p231 = scmp.eq.s32.totalorder %s29, 3
    %p232 = por %p230, %p231
    %p233 = scmp.ne.s32.totalorder %s222, %s223
    %p234 = scmp.eq.s32.totalorder %s29, 0
    %p235 = por %p233, %p234
    %p236 = scmp.ne.s32.totalorder %s222, %s223
    %p237 = scmp.eq.s32.totalorder %s30, 3
    %p238 = por %p236, %p237
    %p240 = scmp.ne.s32.totalorder %s223, %s239
    %p241 = scmp.eq.s32.totalorder %s30, 0
    %p242 = por %p240, %p241
    %s243 = ssub.s32 %s32, %s39
    %p244 = scmp.eq.s32.totalorder %s243, 0
    %s246 = sadd.s32 %s245, 1
    %s247 = scalar_select %p244, %s245, %s246
    %p250 = pneg %p244
    %p251 = scmp.eq.s32.totalorder %s24, 3
    %p252 = por %p250, %p251
    %p253 = scmp.ne.s32.totalorder %s245, %s248
    %p254 = scmp.eq.s32.totalorder %s24, 0
    %p255 = por %p253, %p254
    %p256 = scmp.ne.s32.totalorder %s245, %s248
    %p257 = scmp.eq.s32.totalorder %s29, 3
    %p258 = por %p256, %p257
    %p259 = scmp.ne.s32.totalorder %s248, %s249
    %p260 = scmp.eq.s32.totalorder %s29, 0
    %p261 = por %p259, %p260
    %p262 = scmp.ne.s32.totalorder %s248, %s249
    %p263 = scmp.eq.s32.totalorder %s30, 3
    %p264 = por %p262, %p263
    %p266 = scmp.ne.s32.totalorder %s249, %s265
    %p267 = scmp.eq.s32.totalorder %s30, 0
    %p268 = por %p266, %p267
    %s269 = ssub.s32 %s32, %s39
    %p270 = scmp.eq.s32.totalorder %s269, 0
    %s272 = sadd.s32 %s271, 1
    %s273 = scalar_select %p270, %s271, %s272
    %p276 = pneg %p270
    %p277 = scmp.eq.s32.totalorder %s24, 3
    %p278 = por %p276, %p277
    %p279 = scmp.ne.s32.totalorder %s271, %s274
    %p280 = scmp.eq.s32.totalorder %s24, 0
    %p281 = por %p279, %p280
    %p282 = scmp.ne.s32.totalorder %s271, %s274
    %p283 = scmp.eq.s32.totalorder %s29, 3
    %p284 = por %p282, %p283
    %p285 = scmp.ne.s32.totalorder %s274, %s275
    %p286 = scmp.eq.s32.totalorder %s29, 0
    %p287 = por %p285, %p286
    %p288 = scmp.ne.s32.totalorder %s274, %s275
    %p289 = scmp.eq.s32.totalorder %s30, 3
    %p290 = por %p288, %p289
    %p292 = scmp.ne.s32.totalorder %s275, %s291
    %p293 = scmp.eq.s32.totalorder %s30, 0
    %p294 = por %p292, %p293
    %s295 = ssub.s32 %s32, %s39
    %p296 = scmp.eq.s32.totalorder %s295, 0
    %s298 = sadd.s32 %s297, 1
    %s299 = scalar_select %p296, %s297, %s298
    %p302 = pneg %p296
    %p303 = scmp.eq.s32.totalorder %s24, 3
    %p304 = por %p302, %p303
    %p305 = scmp.ne.s32.totalorder %s297, %s300
    %p306 = scmp.eq.s32.totalorder %s24, 0
    %p307 = por %p305, %p306
    %p308 = scmp.ne.s32.totalorder %s297, %s300
    %p309 = scmp.eq.s32.totalorder %s29, 3
    %p310 = por %p308, %p309
    %p311 = scmp.ne.s32.totalorder %s300, %s301
    %p312 = scmp.eq.s32.totalorder %s29, 0
    %p313 = por %p311, %p312
    %p314 = scmp.ne.s32.totalorder %s300, %s301
    %p315 = scmp.eq.s32.totalorder %s30, 3
    %p316 = por %p314, %p315
    %p318 = scmp.ne.s32.totalorder %s301, %s317
    %p319 = scmp.eq.s32.totalorder %s30, 0
    %p320 = por %p318, %p319
    %s321 = ssub.s32 %s32, %s39
    %p322 = scmp.eq.s32.totalorder %s321, 0
    %s324 = sadd.s32 %s323, 1
    %s325 = scalar_select %p322, %s323, %s324
    %p328 = pneg %p322
    %p329 = scmp.eq.s32.totalorder %s24, 3
    %p330 = por %p328, %p329
    %p331 = scmp.ne.s32.totalorder %s323, %s326
    %p332 = scmp.eq.s32.totalorder %s24, 0
    %p333 = por %p331, %p332
    %p334 = scmp.ne.s32.totalorder %s323, %s326
    %p335 = scmp.eq.s32.totalorder %s29, 3
    %p336 = por %p334, %p335
    %p337 = scmp.ne.s32.totalorder %s326, %s327
    %p338 = scmp.eq.s32.totalorder %s29, 0
    %p339 = por %p337, %p338
    %p340 = scmp.ne.s32.totalorder %s326, %s327
    %p341 = scmp.eq.s32.totalorder %s30, 3
    %p342 = por %p340, %p341
    %p344 = scmp.ne.s32.totalorder %s327, %s343
    %p345 = scmp.eq.s32.totalorder %s30, 0
    %p346 = por %p344, %p345
    %s347 = ssub.s32 %s32, %s39
    %p348 = scmp.eq.s32.totalorder %s347, 0
    %s350 = sadd.s32 %s349, 1
    %s351 = scalar_select %p348, %s349, %s350
    %p354 = pneg %p348
    %p355 = scmp.eq.s32.totalorder %s24, 3
    %p356 = por %p354, %p355
    %p357 = scmp.ne.s32.totalorder %s349, %s352
    %p358 = scmp.eq.s32.totalorder %s24, 0
    %p359 = por %p357, %p358
    %p360 = scmp.ne.s32.totalorder %s349, %s352
    %p361 = scmp.eq.s32.totalorder %s29, 3
    %p362 = por %p360, %p361
    %p363 = scmp.ne.s32.totalorder %s352, %s353
    %p364 = scmp.eq.s32.totalorder %s29, 0
    %p365 = por %p363, %p364
    %p366 = scmp.ne.s32.totalorder %s352, %s353
    %p367 = scmp.eq.s32.totalorder %s30, 3
    %p368 = por %p366, %p367
    %p370 = scmp.ne.s32.totalorder %s353, %s369
    %p371 = scmp.eq.s32.totalorder %s30, 0
    %p372 = por %p370, %p371
    %s373 = ssub.s32 %s32, %s39
    %s374 = ssub.s32 %s31, %s43
    %s375 = sor.u32 %s373, %s374
    %p376 = scmp.eq.s32.totalorder %s375, 0
    %s378 = sadd.s32 %s377, 1
    %s379 = scalar_select %p376, %s377, %s378
    %p382 = pneg %p376
    %p383 = scmp.eq.s32.totalorder %s24, 3
    %p384 = por %p382, %p383
    %p385 = scmp.ne.s32.totalorder %s377, %s380
    %p386 = scmp.eq.s32.totalorder %s24, 0
    %p387 = por %p385, %p386
    %p388 = scmp.ne.s32.totalorder %s377, %s380
    %p389 = scmp.eq.s32.totalorder %s29, 3
    %p390 = por %p388, %p389
    %p391 = scmp.ne.s32.totalorder %s380, %s381
    %p392 = scmp.eq.s32.totalorder %s29, 0
    %p393 = por %p391, %p392
    %p394 = scmp.ne.s32.totalorder %s380, %s381
    %p395 = scmp.eq.s32.totalorder %s30, 3
    %p396 = por %p394, %p395
    %p398 = scmp.ne.s32.totalorder %s381, %s397
    %p399 = scmp.eq.s32.totalorder %s30, 0
    %p400 = por %p398, %p399
    %s401 = ssub.s32 %s31, %s43
    %p402 = scmp.eq.s32.totalorder %s401, 0
    %s404 = sadd.s32 %s403, 1
    %s405 = scalar_select %p402, %s403, %s404
    %p408 = pneg %p402
    %p409 = scmp.eq.s32.totalorder %s24, 3
    %p410 = por %p408, %p409
    %p411 = scmp.ne.s32.totalorder %s403, %s406
    %p412 = scmp.eq.s32.totalorder %s24, 0
    %p413 = por %p411, %p412
    %p414 = scmp.ne.s32.totalorder %s403, %s406
    %p415 = scmp.eq.s32.totalorder %s29, 3
    %p416 = por %p414, %p415
    %p417 = scmp.ne.s32.totalorder %s406, %s407
    %p418 = scmp.eq.s32.totalorder %s29, 0
    %p419 = por %p417, %p418
    %p420 = scmp.ne.s32.totalorder %s406, %s407
    %p421 = scmp.eq.s32.totalorder %s30, 3
    %p422 = por %p420, %p421
    %p424 = scmp.ne.s32.totalorder %s407, %s423
    %p425 = scmp.eq.s32.totalorder %s30, 0
    %p426 = por %p424, %p425
    %p427 = scmp.le.s32.totalorder 1, %s24
    %p428 = scmp.lt.s32.totalorder %s24, 5
    %p429 = pnand %p427, %p428
    %p430 = pneg %p429
    // Predicated region
    $region9: #{dpd_forward.1} parent=5 // pred_check
      _
    $region10: #{dpd_forward.1} parent=5 // pred_check_branch
      %432 = sbr.rel (%p429) target = $region12
    $region11: #{dpd_forward.1} parent=5 // pred_region
      %s433 = ssub.s32 %s24, 1
      // Predicated region
      $region13: #{dpd_forward.1} parent=11 // pred_check
        %p434 = pneg %p83
      $region14: #{dpd_forward.1} parent=11 // pred_check_branch
        %436 = sbr.rel (%p434) target = $region16
      $region15: #{dpd_forward.1} parent=11 // pred_region
        _
      $region16: #{dpd_forward.1} parent=11 // pred_fallthru
        _
      // Predicated region
      $region17: #{dpd_forward.1} parent=11 // pred_check
        %p437 = pneg %p104
      $region18: #{dpd_forward.1} parent=11 // pred_check_branch
        %439 = sbr.rel (%p437) target = $region20
      $region19: #{dpd_forward.1} parent=11 // pred_region
        _
      $region20: #{dpd_forward.1} parent=11 // pred_fallthru
        _
      // Predicated region
      $region21: #{dpd_forward.1} parent=11 // pred_check
        %p440 = pneg %p125
      $region22: #{dpd_forward.1} parent=11 // pred_check_branch
        %442 = sbr.rel (%p440) target = $region24
      $region23: #{dpd_forward.1} parent=11 // pred_region
        _
      $region24: #{dpd_forward.1} parent=11 // pred_fallthru
        _
      // Predicated region
      $region25: #{dpd_forward.1} parent=11 // pred_check
        %p443 = pneg %p146
      $region26: #{dpd_forward.1} parent=11 // pred_check_branch
        %445 = sbr.rel (%p443) target = $region28
      $region27: #{dpd_forward.1} parent=11 // pred_region
        _
      $region28: #{dpd_forward.1} parent=11 // pred_fallthru
        _
      // Predicated region
      $region29: #{dpd_forward.1} parent=11 // pred_check
        %p446 = pneg %p167
      $region30: #{dpd_forward.1} parent=11 // pred_check_branch
        %448 = sbr.rel (%p446) target = $region32
      $region31: #{dpd_forward.1} parent=11 // pred_region
        _
      $region32: #{dpd_forward.1} parent=11 // pred_fallthru
        _
      // Predicated region
      $region33: #{dpd_forward.1} parent=11 // pred_check
        %p449 = pneg %p188
      $region34: #{dpd_forward.1} parent=11 // pred_check_branch
        %451 = sbr.rel (%p449) target = $region36
      $region35: #{dpd_forward.1} parent=11 // pred_region
        _
      $region36: #{dpd_forward.1} parent=11 // pred_fallthru
        _
      // Predicated region
      $region37: #{dpd_forward.1} parent=11 // pred_check
        %p452 = pneg %p209
      $region38: #{dpd_forward.1} parent=11 // pred_check_branch
        %454 = sbr.rel (%p452) target = $region40
      $region39: #{dpd_forward.1} parent=11 // pred_region
        _
      $region40: #{dpd_forward.1} parent=11 // pred_fallthru
        _
    $region12: #{dpd_forward.1} parent=5 // pred_fallthru
      _
    %p455 = scmp.lt.s32.totalorder %s24, 4
    // Predicated region
    $region41: #{dpd_forward.1} parent=5 // pred_check
      %p456 = pneg %p455
    $region42: #{dpd_forward.1} parent=5 // pred_check_branch
      %458 = sbr.rel (%p456) target = $region44
    $region43: #{dpd_forward.1} parent=5 // pred_region
      // Predicated region
      $region45: #{dpd_forward.1} parent=43 // pred_check
        %p459 = pneg %p56
      $region46: #{dpd_forward.1} parent=43 // pred_check_branch
        %461 = sbr.rel (%p459) target = $region48
      $region47: #{dpd_forward.1} parent=43 // pred_region
        %p462 = scmp.lt.s32.totalorder %s31, 1
        %s463 = scalar_select %p462, %s31, 1
        %s464 = smul.addr %s463, 7
        %s465 = smul.addr %s464, 8
        %s466 = scalar_lea.vmem %s0, %s465
      $region48: #{dpd_forward.1} parent=43 // pred_fallthru
        _
      // Predicated region
      $region49: #{dpd_forward.1} parent=43 // pred_check
        %p467 = pneg %p229
      $region50: #{dpd_forward.1} parent=43 // pred_check_branch
        %469 = sbr.rel (%p467) target = $region52
      $region51: #{dpd_forward.1} parent=43 // pred_region
        %p470 = scmp.lt.s32.totalorder %s32, 1
        %s471 = scalar_select %p470, %s32, 1
        %s472 = smul.addr %s471, 28
        %s473 = smul.addr %s472, 4
        %s474 = scalar_lea.vmem %s8, %s473
      $region52: #{dpd_forward.1} parent=43 // pred_fallthru
        _
      // Predicated region
      $region53: #{dpd_forward.1} parent=43 // pred_check
        %p475 = pneg %p255
      $region54: #{dpd_forward.1} parent=43 // pred_check_branch
        %477 = sbr.rel (%p475) target = $region56
      $region55: #{dpd_forward.1} parent=43 // pred_region
        %p478 = scmp.lt.s32.totalorder %s32, 1
        %s479 = scalar_select %p478, %s32, 1
        %s480 = smul.addr %s479, 8
        %s481 = smul.addr %s480, 4
        %s482 = scalar_lea.vmem %s9, %s481
      $region56: #{dpd_forward.1} parent=43 // pred_fallthru
        _
      // Predicated region
      $region57: #{dpd_forward.1} parent=43 // pred_check
        %p483 = pneg %p281
      $region58: #{dpd_forward.1} parent=43 // pred_check_branch
        %485 = sbr.rel (%p483) target = $region60
      $region59: #{dpd_forward.1} parent=43 // pred_region
        %p486 = scmp.lt.s32.totalorder %s32, 1
        %s487 = scalar_select %p486, %s32, 1
        %s488 = smul.addr %s487, 30
        %s489 = smul.addr %s488, 4
        %s490 = scalar_lea.vmem %s10, %s489
      $region60: #{dpd_forward.1} parent=43 // pred_fallthru
        _
      // Predicated region
      $region61: #{dpd_forward.1} parent=43 // pred_check
        %p491 = pneg %p307
      $region62: #{dpd_forward.1} parent=43 // pred_check_branch
        %493 = sbr.rel (%p491) target = $region64
      $region63: #{dpd_forward.1} parent=43 // pred_region
        %p494 = scmp.lt.s32.totalorder %s32, 1
        %s495 = scalar_select %p494, %s32, 1
        %s496 = smul.addr %s495, 3
        %s497 = smul.addr %s496, 8
        %s498 = scalar_lea.vmem %s11, %s497
      $region64: #{dpd_forward.1} parent=43 // pred_fallthru
        _
      // Predicated region
      $region65: #{dpd_forward.1} parent=43 // pred_check
        %p499 = pneg %p333
      $region66: #{dpd_forward.1} parent=43 // pred_check_branch
        %501 = sbr.rel (%p499) target = $region68
      $region67: #{dpd_forward.1} parent=43 // pred_region
        %p502 = scmp.lt.s32.totalorder %s32, 1
        %s503 = scalar_select %p502, %s32, 1
        %s504 = smul.addr %s503, 2
        %s505 = scalar_lea.vmem %s12, %s504
      $region68: #{dpd_forward.1} parent=43 // pred_fallthru
        _
      // Predicated region
      $region69: #{dpd_forward.1} parent=43 // pred_check
        %p506 = pneg %p359
      $region70: #{dpd_forward.1} parent=43 // pred_check_branch
        %508 = sbr.rel (%p506) target = $region72
      $region71: #{dpd_forward.1} parent=43 // pred_region
        %p509 = scmp.lt.s32.totalorder %s32, 1
        %s510 = scalar_select %p509, %s32, 1
        %s511 = smul.addr %s510, 8
        %s512 = scalar_lea.vmem %s13, %s511
      $region72: #{dpd_forward.1} parent=43 // pred_fallthru
        _
    $region44: #{dpd_forward.1} parent=5 // pred_fallthru
      _
    %p513 = scmp.le.s32.totalorder 1, %s24
    %p514 = scmp.lt.s32.totalorder %s24, 5
    %p515 = pnand %p513, %p514
    %p516 = pneg %p515
    // Predicated region
    $region73: #{dpd_forward.1} parent=5 // pred_check
      _
    $region74: #{dpd_forward.1} parent=5 // pred_check_branch
      %518 = sbr.rel (%p515) target = $region76
    $region75: #{dpd_forward.1} parent=5 // pred_region
      %s519 = ssub.s32 %s24, 1
      %p520 = scmp.lt.s32.totalorder %s33, 1
      %s521 = scalar_select %p520, %s33, 1
      %s522 = smul.addr %s521, 7
      %s523 = smul.addr %s522, 8
      %s524 = scalar_lea.vmem %s0, %s523
      %p525 = pneg %p62
      %p526 = pneg %p59
      %p527 = pneg %p83
      %p528 = pneg %p80
      %p529 = pneg %p104
      %p530 = pneg %p101
      %p531 = pneg %p125
      %p532 = pneg %p122
      %p533 = pneg %p146
      %p534 = pneg %p143
      %p535 = pneg %p167
      %p536 = pneg %p164
      %p537 = pneg %p188
      %p538 = pneg %p185
      %p539 = pneg %p209
      %p540 = pneg %p206
      %p541 = scmp.lt.s32.totalorder %s34, 1
      %s542 = scalar_select %p541, %s34, 1
      %s543 = smul.addr %s542, 28
      %s544 = smul.addr %s543, 4
      %s545 = scalar_lea.vmem %s8, %s544
      %p546 = pneg %p235
      %p547 = pneg %p232
      %p548 = scmp.lt.s32.totalorder %s34, 1
      %s549 = scalar_select %p548, %s34, 1
      %s550 = smul.addr %s549, 8
      %s551 = smul.addr %s550, 4
      %s552 = scalar_lea.vmem %s9, %s551
      %p553 = pneg %p261
      %p554 = pneg %p258
      %p555 = scmp.lt.s32.totalorder %s34, 1
      %s556 = scalar_select %p555, %s34, 1
      %s557 = smul.addr %s556, 30
      %s558 = smul.addr %s557, 4
      %s559 = scalar_lea.vmem %s10, %s558
      %p560 = pneg %p287
      %p561 = pneg %p284
      %p562 = scmp.lt.s32.totalorder %s34, 1
      %s563 = scalar_select %p562, %s34, 1
      %s564 = smul.addr %s563, 3
      %s565 = smul.addr %s564, 8
      %s566 = scalar_lea.vmem %s11, %s565
      %p567 = pneg %p313
      %p568 = pneg %p310
      %p569 = scmp.lt.s32.totalorder %s34, 1
      %s570 = scalar_select %p569, %s34, 1
      %s571 = smul.addr %s570, 2
      %s572 = scalar_lea.vmem %s12, %s571
      %p573 = pneg %p339
      %p574 = pneg %p336
      %p575 = scmp.lt.s32.totalorder %s34, 1
      %s576 = scalar_select %p575, %s34, 1
      %s577 = smul.addr %s576, 8
      %s578 = scalar_lea.vmem %s13, %s577
      %p579 = pneg %p365
      %p580 = pneg %p362
      %p581 = pneg %p393
      %p582 = pneg %p390
      %p583 = scmp.lt.s32.totalorder %s34, 1
      %s584 = scalar_select %p583, %s34, 1
      %p585 = scmp.lt.s32.totalorder %s33, 1
      %s586 = scalar_select %p585, %s33, 1
      %s587 = smul.addr %s586, 9
      %s588 = smul.addr %s584, 18
      %s589 = sadd.s32 %s587, %s588
      %s590 = smul.addr %s589, 8
      %s591 = scalar_lea.vmem %s14, %s590
      %p592 = pneg %p419
      %p593 = pneg %p416
      %p594 = scmp.lt.s32.totalorder %s33, 1
      %s595 = scalar_select %p594, %s33, 1
      %s596 = smul.addr %s595, 9
      %s597 = smul.addr %s596, 8
      %s598 = scalar_lea.vmem %s15, %s597
      %p599 = scmp.lt.s32.totalorder %s33, 1
      %s600 = scalar_select %p599, %s33, 1
      %s601 = smul.addr %s600, 7
      %s602 = smul.addr %s601, 8
      %s603 = scalar_lea.vmem %s0, %s602
      %p604 = scmp.lt.s32.totalorder %s34, 1
      %s605 = scalar_select %p604, %s34, 1
      %s606 = smul.addr %s605, 28
      %s607 = smul.addr %s606, 4
      %s608 = scalar_lea.vmem %s8, %s607
      %p609 = scmp.lt.s32.totalorder %s34, 1
      %s610 = scalar_select %p609, %s34, 1
      %s611 = smul.addr %s610, 8
      %s612 = smul.addr %s611, 4
      %s613 = scalar_lea.vmem %s9, %s612
      %p614 = scmp.lt.s32.totalorder %s34, 1
      %s615 = scalar_select %p614, %s34, 1
      %s616 = smul.addr %s615, 30
      %s617 = smul.addr %s616, 4
      %s618 = scalar_lea.vmem %s10, %s617
      %p619 = scmp.lt.s32.totalorder %s34, 1
      %s620 = scalar_select %p619, %s34, 1
      %s621 = smul.addr %s620, 3
      %s622 = smul.addr %s621, 8
      %s623 = scalar_lea.vmem %s11, %s622
      %p624 = scmp.lt.s32.totalorder %s34, 1
      %s625 = scalar_select %p624, %s34, 1
      %s626 = smul.addr %s625, 2
      %s627 = scalar_lea.vmem %s12, %s626
      %p628 = scmp.lt.s32.totalorder %s34, 1
      %s629 = scalar_select %p628, %s34, 1
      %s630 = smul.addr %s629, 8
      %s631 = scalar_lea.vmem %s13, %s630
      %p632 = scmp.lt.s32.totalorder %s34, 1
      %s633 = scalar_select %p632, %s34, 1
      %p634 = scmp.lt.s32.totalorder %s33, 1
      %s635 = scalar_select %p634, %s33, 1
      %s636 = smul.addr %s635, 9
      %s637 = smul.addr %s633, 18
      %s638 = sadd.s32 %s636, %s637
      %s639 = smul.addr %s638, 8
      %s640 = scalar_lea.vmem %s14, %s639
      %p641 = scmp.lt.s32.totalorder %s33, 1
      %s642 = scalar_select %p641, %s33, 1
      %s643 = smul.addr %s642, 9
      %s644 = smul.addr %s643, 8
      %s645 = scalar_lea.vmem %s15, %s644
      %p647 = scmp.eq.s32.totalorder %s34, 0
      // Predicated region
      $region77: #{dpd_forward.1} parent=75 // pred_check
        %p648 = pneg %p647
      $region78: #{dpd_forward.1} parent=75 // pred_check_branch
        %650 = sbr.rel (%p648) target = $region80
      $region79: #{dpd_forward.1} parent=75 // pred_region
        %v651 = vld [vmem:[%s2] sm:$0xff]
        %v652 = vld [vmem:[%s2 + $0x8] sm:$0xff]
        %v653 = vld [vmem:[%s2 + $0x10] sm:$0xff]
        %v654 = vld [vmem:[%s2 + $0x18] sm:$0xff]
        %v655 = vld [vmem:[%s2 + $0x20] sm:$0xff]
        %v656 = vld [vmem:[%s2 + $0x28] sm:$0xff]
        %v657 = vld [vmem:[%s2 + $0x30] sm:$0xff]
        %v658 = vld [vmem:[%s2 + $0x38] sm:$0xff]
        %v659 = vld [vmem:[%s2 + $0x40] sm:$0xff]
        %v660 = vld [vmem:[%s603] sm:$0xff]
        %v661 = vld [vmem:[%s603 + $0x8] sm:$0xff]
        %v662 = vld [vmem:[%s603 + $0x10] sm:$0xff]
        %v663 = vld [vmem:[%s603 + $0x18] sm:$0xff]
        %v664 = vld [vmem:[%s603 + $0x20] sm:$0xff]
        %v665 = vld [vmem:[%s603 + $0x28] sm:$0xff]
        %v666 = vld [vmem:[%s603 + $0x30] sm:$0x3f]
        %v667 = vld [vmem:[%s3] sm:$0xff]
        %v668 = vld [vmem:[%s3 + $0x8] sm:$0xff]
        %v669 = vld [vmem:[%s3 + $0x10] sm:$0xff]
        %v670 = vld [vmem:[%s3 + $0x18] sm:$0xff]
        %v671 = vld [vmem:[%s3 + $0x20] sm:$0xff]
        %v672 = vld [vmem:[%s3 + $0x28] sm:$0xff]
        %v673 = vld [vmem:[%s3 + $0x30] sm:$0xff]
        %v674 = vld [vmem:[%s3 + $0x38] sm:$0xff]
        %v675 = vld [vmem:[%s3 + $0x40] sm:$0xff]
        %v676 = vld [vmem:[%s1] sm:$0x3]
        %vm677 = vcmask 15360
        %v679 = vsel %vm677, %v667, 0
        %v682 = vsel %vm677, %v668, 0
        %v685 = vsel %vm677, %v669, 0
        %v688 = vsel %vm677, %v670, 0
        %v691 = vsel %vm677, %v671, 0
        %v694 = vsel %vm677, %v672, 0
        %v697 = vsel %vm677, %v673, 0
        %v700 = vsel %vm677, %v674, 0
        %v703 = vsel %vm677, %v675, 0
        %vm705 = vcmask 1041408
        %v707 = vsel %vm705, %v676, 0
        %709 = vmatpush.msra.mxu0 0.0
        %710 = vmatpush.msra.mxu0 0.0
        %711 = vmatpush.msra.mxu0 0.0
        %712 = vmatpush.msra.mxu0 0.0
        %713 = vmatpush.msra.mxu0 0.0
        %714 = vmatpush.msra.mxu0 0.0
        %715 = vmatpush.msra.mxu0 0.0
        %716 = vmatpush.msra.mxu0 0.0
        %717 = vmatpush.msra.mxu0 0.0
        %718 = vmatpush.msra.mxu0 0.0
        %719 = vmatpush.msra.mxu0 0.0
        %720 = vmatpush.msra.mxu0 0.0
        %721 = vmatpush.msra.mxu0 0.0
        %722 = vmatpush.msra.mxu0 0.0
        %723 = vmatpush.msra.mxu0 0.0
        %724 = vmatpush.msra.mxu0 %v707
        %725 = vmatmul.f32.gmra.mxu0 %v679
        %v726 = vpop.f32.mrf.mxu0
        %v727 = vadd.f32 0.0, %v726
        %728 = vmatmul.f32.gmra.mxu0 %v682
        %v729 = vpop.f32.mrf.mxu0
        %v730 = vadd.f32 0.0, %v729
        %731 = vmatmul.f32.gmra.mxu0 %v685
        %v732 = vpop.f32.mrf.mxu0
        %v733 = vadd.f32 0.0, %v732
        %734 = vmatmul.f32.gmra.mxu0 %v688
        %v735 = vpop.f32.mrf.mxu0
        %v736 = vadd.f32 0.0, %v735
        %737 = vmatmul.f32.gmra.mxu0 %v691
        %v738 = vpop.f32.mrf.mxu0
        %v739 = vadd.f32 0.0, %v738
        %740 = vmatmul.f32.gmra.mxu0 %v694
        %v741 = vpop.f32.mrf.mxu0
        %v742 = vadd.f32 0.0, %v741
        %743 = vmatmul.f32.gmra.mxu0 %v697
        %v744 = vpop.f32.mrf.mxu0
        %v745 = vadd.f32 0.0, %v744
        %746 = vmatmul.f32.gmra.mxu0 %v700
        %v747 = vpop.f32.mrf.mxu0
        %v748 = vadd.f32 0.0, %v747
        %749 = vmatmul.f32.gmra.mxu0 %v703
        %v750 = vpop.f32.mrf.mxu0
        %v751 = vadd.f32 0.0, %v750
        %752 = vdwg.mxu0
        %vm753 = vcmask 441344
        %v755 = vsel %vm753, %v651, 0
        %v758 = vsel %vm753, %v652, 0
        %v761 = vsel %vm753, %v653, 0
        %v764 = vsel %vm753, %v654, 0
        %v767 = vsel %vm753, %v655, 0
        %v770 = vsel %vm753, %v656, 0
        %v773 = vsel %vm753, %v657, 0
        %v776 = vsel %vm753, %v658, 0
        %v779 = vsel %vm753, %v659, 0
        %vm781 = vcmask 1045504
        %v783 = vsel %vm781, %v666, 0
        %785 = vmatpush.msra.mxu0 0.0
        %786 = vmatpush.msra.mxu0 0.0
        %787 = vmatpush.msra.mxu0 0.0
        %788 = vmatpush.msra.mxu0 0.0
        %789 = vmatpush.msra.mxu0 0.0
        %790 = vmatpush.msra.mxu0 0.0
        %791 = vmatpush.msra.mxu0 0.0
        %792 = vmatpush.msra.mxu0 0.0
        %793 = vmatpush.msra.mxu0 0.0
        %794 = vmatpush.msra.mxu0 %v783
        %795 = vmatpush.msra.mxu0 %v665
        %796 = vmatpush.msra.mxu0 %v664
        %797 = vmatpush.msra.mxu0 %v663
        %798 = vmatpush.msra.mxu0 %v662
        %799 = vmatpush.msra.mxu0 %v661
        %800 = vmatpush.msra.mxu0 %v660
        %801 = vmatmul.f32.gmra.mxu0 %v755
        %v802 = vpop.f32.mrf.mxu0
        %v803 = vadd.f32 %v727, %v802
        %804 = vmatmul.f32.gmra.mxu0 %v758
        %v805 = vpop.f32.mrf.mxu0
        %v806 = vadd.f32 %v730, %v805
        %807 = vmatmul.f32.gmra.mxu0 %v761
        %v808 = vpop.f32.mrf.mxu0
        %v809 = vadd.f32 %v733, %v808
        %810 = vmatmul.f32.gmra.mxu0 %v764
        %v811 = vpop.f32.mrf.mxu0
        %v812 = vadd.f32 %v736, %v811
        %813 = vmatmul.f32.gmra.mxu0 %v767
        %v814 = vpop.f32.mrf.mxu0
        %v815 = vadd.f32 %v739, %v814
        %816 = vmatmul.f32.gmra.mxu0 %v770
        %v817 = vpop.f32.mrf.mxu0
        %v818 = vadd.f32 %v742, %v817
        %819 = vmatmul.f32.gmra.mxu0 %v773
        %v820 = vpop.f32.mrf.mxu0
        %v821 = vadd.f32 %v745, %v820
        %822 = vmatmul.f32.gmra.mxu0 %v776
        %v823 = vpop.f32.mrf.mxu0
        %v824 = vadd.f32 %v748, %v823
        %825 = vmatmul.f32.gmra.mxu0 %v779
        %v826 = vpop.f32.mrf.mxu0
        %v827 = vadd.f32 %v751, %v826
        %828 = vdwg.mxu0
        %vm829 = vcmask 244736
        %830 = vst.msk [vmem:[#allocation2] sm:$0xff] %vm829, %v803
        %831 = vst.msk [vmem:[#allocation2 + $0x8] sm:$0xff] %vm829, %v806
        %832 = vst.msk [vmem:[#allocation2 + $0x10] sm:$0xff] %vm829, %v809
        %833 = vst.msk [vmem:[#allocation2 + $0x18] sm:$0xff] %vm829, %v812
        %834 = vst.msk [vmem:[#allocation2 + $0x20] sm:$0xff] %vm829, %v815
        %835 = vst.msk [vmem:[#allocation2 + $0x28] sm:$0xff] %vm829, %v818
        %836 = vst.msk [vmem:[#allocation2 + $0x30] sm:$0xff] %vm829, %v821
        %837 = vst.msk [vmem:[#allocation2 + $0x38] sm:$0xff] %vm829, %v824
        %838 = vst.msk [vmem:[#allocation2 + $0x40] sm:$0xff] %vm829, %v827
      $region80: #{dpd_forward.1} parent=75 // pred_fallthru
        _
      %v839 = vld [vmem:[#allocation2] sm:$0xff]
      %v840 = vld [vmem:[#allocation2 + $0x8] sm:$0xff]
      %v841 = vld [vmem:[#allocation2 + $0x10] sm:$0xff]
      %v842 = vld [vmem:[#allocation2 + $0x18] sm:$0xff]
      %v843 = vld [vmem:[#allocation2 + $0x20] sm:$0xff]
      %v844 = vld [vmem:[#allocation2 + $0x28] sm:$0xff]
      %v845 = vld [vmem:[#allocation2 + $0x30] sm:$0xff]
      %v846 = vld [vmem:[#allocation2 + $0x38] sm:$0xff]
      %v847 = vld [vmem:[#allocation2 + $0x40] sm:$0xff]
      %v848 = vld [vmem:[%s623] sm:$0x1]
      %v849 = vld [vmem:[%s623 + $0x1] sm:$0x1]
      %vm850 = vcmask 244736
      %v851 = vsel %vm850, %v839, 0.0
      %852 = vadd.xlane.f32.xlu0 %v851
      %v853 = vpop.xlane.xlu0 %852
      %v854 = vsel %vm850, %v840, 0.0
      %855 = vadd.xlane.f32.xlu0 %v854
      %v856 = vpop.xlane.xlu0 %855
      %v857 = vsel %vm850, %v841, 0.0
      %858 = vadd.xlane.f32.xlu0 %v857
      %v859 = vpop.xlane.xlu0 %858
      %v860 = vsel %vm850, %v842, 0.0
      %861 = vadd.xlane.f32.xlu0 %v860
      %v862 = vpop.xlane.xlu0 %861
      %v863 = vsel %vm850, %v843, 0.0
      %864 = vadd.xlane.f32.xlu0 %v863
      %v865 = vpop.xlane.xlu0 %864
      %v866 = vsel %vm850, %v844, 0.0
      %867 = vadd.xlane.f32.xlu0 %v866
      %v868 = vpop.xlane.xlu0 %867
      %v869 = vsel %vm850, %v845, 0.0
      %870 = vadd.xlane.f32.xlu0 %v869
      %v871 = vpop.xlane.xlu0 %870
      %v872 = vsel %vm850, %v846, 0.0
      %873 = vadd.xlane.f32.xlu0 %v872
      %v874 = vpop.xlane.xlu0 %873
      %v875 = vsel %vm850, %v847, 0.0
      %876 = vadd.xlane.f32.xlu0 %v875
      %v877 = vpop.xlane.xlu0 %876
      %v878 = vrcp.pop 30.0
      %v879 = vmul.f32 30.0, %v878
      %v880 = vsub.f32 1.0, %v879
      %v881 = vmul.f32 %v878, %v880
      %v882 = vadd.f32 %v878, %v881
      %vm883 = vweird.f32 %v878
      %v884 = vsel %vm883, %v878, %v882
      %v885 = vmul.f32 %v853, %v884
      %v886 = vmul.f32 %v856, %v884
      %v887 = vmul.f32 %v859, %v884
      %v888 = vmul.f32 %v862, %v884
      %v889 = vmul.f32 %v865, %v884
      %v890 = vmul.f32 %v868, %v884
      %v891 = vmul.f32 %v871, %v884
      %v892 = vmul.f32 %v874, %v884
      %v893 = vmul.f32 %v877, %v884
      %v894 = vsub.f32 %v839, %v885
      %v895 = vsub.f32 %v840, %v886
      %v896 = vsub.f32 %v841, %v887
      %v897 = vsub.f32 %v842, %v888
      %v898 = vsub.f32 %v843, %v889
      %v899 = vsub.f32 %v844, %v890
      %v900 = vsub.f32 %v845, %v891
      %v901 = vsub.f32 %v846, %v892
      %v902 = vsub.f32 %v847, %v893
      %v903 = vmul.f32 %v894, %v894
      %v904 = vmul.f32 %v895, %v895
      %v905 = vmul.f32 %v896, %v896
      %v906 = vmul.f32 %v897, %v897
      %v907 = vmul.f32 %v898, %v898
      %v908 = vmul.f32 %v899, %v899
      %v909 = vmul.f32 %v900, %v900
      %v910 = vmul.f32 %v901, %v901
      %v911 = vmul.f32 %v902, %v902
      %v912 = vsel %vm850, %v903, 0.0
      %913 = vadd.xlane.f32.xlu0 %v912
      %v914 = vpop.xlane.xlu0 %913
      %v915 = vsel %vm850, %v904, 0.0
      %916 = vadd.xlane.f32.xlu0 %v915
      %v917 = vpop.xlane.xlu0 %916
      %v918 = vsel %vm850, %v905, 0.0
      %919 = vadd.xlane.f32.xlu0 %v918
      %v920 = vpop.xlane.xlu0 %919
      %v921 = vsel %vm850, %v906, 0.0
      %922 = vadd.xlane.f32.xlu0 %v921
      %v923 = vpop.xlane.xlu0 %922
      %v924 = vsel %vm850, %v907, 0.0
      %925 = vadd.xlane.f32.xlu0 %v924
      %v926 = vpop.xlane.xlu0 %925
      %v927 = vsel %vm850, %v908, 0.0
      %928 = vadd.xlane.f32.xlu0 %v927
      %v929 = vpop.xlane.xlu0 %928
      %v930 = vsel %vm850, %v909, 0.0
      %931 = vadd.xlane.f32.xlu0 %v930
      %v932 = vpop.xlane.xlu0 %931
      %v933 = vsel %vm850, %v910, 0.0
      %934 = vadd.xlane.f32.xlu0 %v933
      %v935 = vpop.xlane.xlu0 %934
      %v936 = vsel %vm850, %v911, 0.0
      %937 = vadd.xlane.f32.xlu0 %v936
      %v938 = vpop.xlane.xlu0 %937
      %v939 = vmul.f32 %v914, %v884
      %v940 = vmul.f32 %v917, %v884
      %v941 = vmul.f32 %v920, %v884
      %v942 = vmul.f32 %v923, %v884
      %v943 = vmul.f32 %v926, %v884
      %v944 = vmul.f32 %v929, %v884
      %v945 = vmul.f32 %v932, %v884
      %v946 = vmul.f32 %v935, %v884
      %v947 = vmul.f32 %v938, %v884
      %v948 = vadd.f32 %v939, 1e-05
      %v949 = vadd.f32 %v940, 1e-05
      %v950 = vadd.f32 %v941, 1e-05
      %v951 = vadd.f32 %v942, 1e-05
      %v952 = vadd.f32 %v943, 1e-05
      %v953 = vadd.f32 %v944, 1e-05
      %v954 = vadd.f32 %v945, 1e-05
      %v955 = vadd.f32 %v946, 1e-05
      %v956 = vadd.f32 %v947, 1e-05
      %v957 = vrsqrt.pop %v948
      %v958 = vmul.f32 %v957, %v948
      %v959 = vmul.f32 %v958, %v957
      %v960 = vmul.f32 0.5, %v959
      %v961 = vsub.f32 1.5, %v960
      %v962 = vmul.f32 %v957, %v961
      %vm963 = vweird.f32 %v948
      %vm964 = vweird.f32 %v957
      %vm965 = vmor %vm963, %vm964
      %v966 = vsel %vm965, %v957, %v962
      %v967 = vrsqrt.pop %v949
      %v968 = vmul.f32 %v967, %v949
      %v969 = vmul.f32 %v968, %v967
      %v970 = vmul.f32 0.5, %v969
      %v971 = vsub.f32 1.5, %v970
      %v972 = vmul.f32 %v967, %v971
      %vm973 = vweird.f32 %v949
      %vm974 = vweird.f32 %v967
      %vm975 = vmor %vm973, %vm974
      %v976 = vsel %vm975, %v967, %v972
      %v977 = vrsqrt.pop %v950
      %v978 = vmul.f32 %v977, %v950
      %v979 = vmul.f32 %v978, %v977
      %v980 = vmul.f32 0.5, %v979
      %v981 = vsub.f32 1.5, %v980
      %v982 = vmul.f32 %v977, %v981
      %vm983 = vweird.f32 %v950
      %vm984 = vweird.f32 %v977
      %vm985 = vmor %vm983, %vm984
      %v986 = vsel %vm985, %v977, %v982
      %v987 = vrsqrt.pop %v951
      %v988 = vmul.f32 %v987, %v951
      %v989 = vmul.f32 %v988, %v987
      %v990 = vmul.f32 0.5, %v989
      %v991 = vsub.f32 1.5, %v990
      %v992 = vmul.f32 %v987, %v991
      %vm993 = vweird.f32 %v951
      %vm994 = vweird.f32 %v987
      %vm995 = vmor %vm993, %vm994
      %v996 = vsel %vm995, %v987, %v992
      %v997 = vrsqrt.pop %v952
      %v998 = vmul.f32 %v997, %v952
      %v999 = vmul.f32 %v998, %v997
      %v1000 = vmul.f32 0.5, %v999
      %v1001 = vsub.f32 1.5, %v1000
      %v1002 = vmul.f32 %v997, %v1001
      %vm1003 = vweird.f32 %v952
      %vm1004 = vweird.f32 %v997
      %vm1005 = vmor %vm1003, %vm1004
      %v1006 = vsel %vm1005, %v997, %v1002
      %v1007 = vrsqrt.pop %v953
      %v1008 = vmul.f32 %v1007, %v953
      %v1009 = vmul.f32 %v1008, %v1007
      %v1010 = vmul.f32 0.5, %v1009
      %v1011 = vsub.f32 1.5, %v1010
      %v1012 = vmul.f32 %v1007, %v1011
      %vm1013 = vweird.f32 %v953
      %vm1014 = vweird.f32 %v1007
      %vm1015 = vmor %vm1013, %vm1014
      %v1016 = vsel %vm1015, %v1007, %v1012
      %v1017 = vrsqrt.pop %v954
      %v1018 = vmul.f32 %v1017, %v954
      %v1019 = vmul.f32 %v1018, %v1017
      %v1020 = vmul.f32 0.5, %v1019
      %v1021 = vsub.f32 1.5, %v1020
      %v1022 = vmul.f32 %v1017, %v1021
      %vm1023 = vweird.f32 %v954
      %vm1024 = vweird.f32 %v1017
      %vm1025 = vmor %vm1023, %vm1024
      %v1026 = vsel %vm1025, %v1017, %v1022
      %v1027 = vrsqrt.pop %v955
      %v1028 = vmul.f32 %v1027, %v955
      %v1029 = vmul.f32 %v1028, %v1027
      %v1030 = vmul.f32 0.5, %v1029
      %v1031 = vsub.f32 1.5, %v1030
      %v1032 = vmul.f32 %v1027, %v1031
      %vm1033 = vweird.f32 %v955
      %vm1034 = vweird.f32 %v1027
      %vm1035 = vmor %vm1033, %vm1034
      %v1036 = vsel %vm1035, %v1027, %v1032
      %v1037 = vrsqrt.pop %v956
      %v1038 = vmul.f32 %v1037, %v956
      %v1039 = vmul.f32 %v1038, %v1037
      %v1040 = vmul.f32 0.5, %v1039
      %v1041 = vsub.f32 1.5, %v1040
      %v1042 = vmul.f32 %v1037, %v1041
      %vm1043 = vweird.f32 %v956
      %vm1044 = vweird.f32 %v1037
      %vm1045 = vmor %vm1043, %vm1044
      %v1046 = vsel %vm1045, %v1037, %v1042
      %v1047 = vmul.f32 %v894, %v966
      %v1048 = vmul.f32 %v895, %v976
      %v1049 = vmul.f32 %v896, %v986
      %v1050 = vmul.f32 %v897, %v996
      %v1051 = vmul.f32 %v898, %v1006
      %v1052 = vmul.f32 %v899, %v1016
      %v1053 = vmul.f32 %v900, %v1026
      %v1054 = vmul.f32 %v901, %v1036
      %v1055 = vmul.f32 %v902, %v1046
      %v1056 = vperm.slane %v848, 0
      %v1057 = vmul.f32 %v1047, %v1056
      %v1058 = vmul.f32 %v1048, %v1056
      %v1059 = vmul.f32 %v1049, %v1056
      %v1060 = vmul.f32 %v1050, %v1056
      %v1061 = vmul.f32 %v1051, %v1056
      %v1062 = vmul.f32 %v1052, %v1056
      %v1063 = vmul.f32 %v1053, %v1056
      %v1064 = vmul.f32 %v1054, %v1056
      %v1065 = vmul.f32 %v1055, %v1056
      %v1066 = vperm.slane %v849, 0
      %v1067 = vadd.f32 %v1057, %v1066
      %v1068 = vadd.f32 %v1058, %v1066
      %v1069 = vadd.f32 %v1059, %v1066
      %v1070 = vadd.f32 %v1060, %v1066
      %v1071 = vadd.f32 %v1061, %v1066
      %v1072 = vadd.f32 %v1062, %v1066
      %v1073 = vadd.f32 %v1063, %v1066
      %v1074 = vadd.f32 %v1064, %v1066
      %v1075 = vadd.f32 %v1065, %v1066
      %v1076 = vpack.c.bf16 %v1068, %v1067
      %v1077 = vpack.c.bf16 %v1070, %v1069
      %v1078 = vpack.c.bf16 %v1072, %v1071
      %v1079 = vpack.c.bf16 %v1074, %v1073
      %v1080 = vpack.c.bf16 %v1075, %v1075
      %v1081 = vld [vmem:[%s613] sm:$0xf]
      %v1082 = vld [vmem:[%s613 + $0x4] sm:$0xf]
      %v1083 = vld [vmem:[%s613 + $0x8] sm:$0xf]
      %v1084 = vld [vmem:[%s613 + $0xc] sm:$0x7]
      %v1085 = vld [vmem:[%s627] sm:$0x1]
      %v1086 = vperm.slane %v1085, 0
      %v1091 = vunpack.c.l.b16 %v1081
      %v1092 = vunpack.c.l.b16 %v1082
      %v1093 = vunpack.c.l.b16 %v1083
      %v1094 = vunpack.c.l.b16 %v1084
      %v1095 = vpack.c.b16 %v1092, %v1091
      %v1096 = vpack.c.b16 %v1094, %v1093
      %v1099 = vsel %vm850, %v1076, 0
      %v1102 = vsel %vm850, %v1077, 0
      %v1105 = vsel %vm850, %v1078, 0
      %v1108 = vsel %vm850, %v1079, 0
      %v1111 = vsel %vm850, %v1080, 0
      %vm1113 = vcmask 1046528
      %v1115 = vsel %vm1113, %v1096, 0
      %1117 = vmatpush.bf16.msra.mxu0 0
      %1118 = vmatpush.bf16.msra.mxu0 0
      %1119 = vmatpush.bf16.msra.mxu0 0
      %1120 = vmatpush.bf16.msra.mxu0 0
      %1121 = vmatpush.bf16.msra.mxu0 0
      %1122 = vmatpush.bf16.msra.mxu0 0
      %1123 = vmatpush.bf16.msra.mxu0 %v1115
      %1124 = vmatpush.bf16.msra.mxu0 %v1095
      %1125 = vmatmul.bf16.gmra.mxu0 %v1099
      %v1126 = vpop.f32.mrf.mxu0
      %v1127 = vadd.f32 %v1086, %v1126
      %v1128 = vpop.f32.mrf.mxu0
      %v1129 = vadd.f32 %v1086, %v1128
      %1130 = vmatmul.bf16.gmra.mxu0 %v1102
      %v1131 = vpop.f32.mrf.mxu0
      %v1132 = vadd.f32 %v1086, %v1131
      %v1133 = vpop.f32.mrf.mxu0
      %v1134 = vadd.f32 %v1086, %v1133
      %1135 = vmatmul.bf16.gmra.mxu0 %v1105
      %v1136 = vpop.f32.mrf.mxu0
      %v1137 = vadd.f32 %v1086, %v1136
      %v1138 = vpop.f32.mrf.mxu0
      %v1139 = vadd.f32 %v1086, %v1138
      %1140 = vmatmul.bf16.gmra.mxu0 %v1108
      %v1141 = vpop.f32.mrf.mxu0
      %v1142 = vadd.f32 %v1086, %v1141
      %v1143 = vpop.f32.mrf.mxu0
      %v1144 = vadd.f32 %v1086, %v1143
      %1145 = vmatmul.bf16.gmra.mxu0 %v1111
      %v1146 = vpop.f32.mrf.mxu0
      %v1147 = vadd.f32 %v1086, %v1146
      %v1148 = vpop.f32.mrf.mxu0
      %1149 = vdwg.mxu0
      %v1150 = vxor.u32 %v1127, 2147483648
      %v1151 = vxor.u32 %v1129, 2147483648
      %v1152 = vxor.u32 %v1132, 2147483648
      %v1153 = vxor.u32 %v1134, 2147483648
      %v1154 = vxor.u32 %v1137, 2147483648
      %v1155 = vxor.u32 %v1139, 2147483648
      %v1156 = vxor.u32 %v1142, 2147483648
      %v1157 = vxor.u32 %v1144, 2147483648
      %v1158 = vxor.u32 %v1147, 2147483648
      %v1159 = vmul.f32 %v1150, 1.442695
      %v1160 = vpow.pop %v1159
      %v1161 = vmul.f32 %v1151, 1.442695
      %v1162 = vpow.pop %v1161
      %v1163 = vmul.f32 %v1152, 1.442695
      %v1164 = vpow.pop %v1163
      %v1165 = vmul.f32 %v1153, 1.442695
      %v1166 = vpow.pop %v1165
      %v1167 = vmul.f32 %v1154, 1.442695
      %v1168 = vpow.pop %v1167
      %v1169 = vmul.f32 %v1155, 1.442695
      %v1170 = vpow.pop %v1169
      %v1171 = vmul.f32 %v1156, 1.442695
      %v1172 = vpow.pop %v1171
      %v1173 = vmul.f32 %v1157, 1.442695
      %v1174 = vpow.pop %v1173
      %v1175 = vmul.f32 %v1158, 1.442695
      %v1176 = vpow.pop %v1175
      %v1177 = vadd.f32 %v1160, 1.0
      %v1178 = vadd.f32 %v1162, 1.0
      %v1179 = vadd.f32 %v1164, 1.0
      %v1180 = vadd.f32 %v1166, 1.0
      %v1181 = vadd.f32 %v1168, 1.0
      %v1182 = vadd.f32 %v1170, 1.0
      %v1183 = vadd.f32 %v1172, 1.0
      %v1184 = vadd.f32 %v1174, 1.0
      %v1185 = vadd.f32 %v1176, 1.0
      %v1186 = vrcp.pop %v1177
      %v1187 = vmul.f32 %v1177, %v1186
      %v1188 = vsub.f32 1.0, %v1187
      %v1189 = vmul.f32 %v1186, %v1188
      %v1190 = vadd.f32 %v1186, %v1189
      %vm1191 = vweird.f32 %v1177
      %vm1192 = vweird.f32 %v1186
      %vm1193 = vmor %vm1191, %vm1192
      %v1194 = vsel %vm1193, %v1186, %v1190
      %v1195 = vand.u32 2147483647, %v1177
      %vm1196 = vcmp.eq.f32.partialorder %v1195, 8.507059e+37
      %v1197 = vand.u32 %v1177, 2147483648
      %v1198 = vor.u32 1.1754944e-38, %v1197
      %v1199 = vsel %vm1196, %v1198, %v1194
      %v1200 = vmul.f32 1.0, %v1199
      %v1201 = vrcp.pop %v1178
      %v1202 = vmul.f32 %v1178, %v1201
      %v1203 = vsub.f32 1.0, %v1202
      %v1204 = vmul.f32 %v1201, %v1203
      %v1205 = vadd.f32 %v1201, %v1204
      %vm1206 = vweird.f32 %v1178
      %vm1207 = vweird.f32 %v1201
      %vm1208 = vmor %vm1206, %vm1207
      %v1209 = vsel %vm1208, %v1201, %v1205
      %v1210 = vand.u32 2147483647, %v1178
      %vm1211 = vcmp.eq.f32.partialorder %v1210, 8.507059e+37
      %v1212 = vand.u32 %v1178, 2147483648
      %v1213 = vor.u32 1.1754944e-38, %v1212
      %v1214 = vsel %vm1211, %v1213, %v1209
      %v1215 = vmul.f32 1.0, %v1214
      %v1216 = vrcp.pop %v1179
      %v1217 = vmul.f32 %v1179, %v1216
      %v1218 = vsub.f32 1.0, %v1217
      %v1219 = vmul.f32 %v1216, %v1218
      %v1220 = vadd.f32 %v1216, %v1219
      %vm1221 = vweird.f32 %v1179
      %vm1222 = vweird.f32 %v1216
      %vm1223 = vmor %vm1221, %vm1222
      %v1224 = vsel %vm1223, %v1216, %v1220
      %v1225 = vand.u32 2147483647, %v1179
      %vm1226 = vcmp.eq.f32.partialorder %v1225, 8.507059e+37
      %v1227 = vand.u32 %v1179, 2147483648
      %v1228 = vor.u32 1.1754944e-38, %v1227
      %v1229 = vsel %vm1226, %v1228, %v1224
      %v1230 = vmul.f32 1.0, %v1229
      %v1231 = vrcp.pop %v1180
      %v1232 = vmul.f32 %v1180, %v1231
      %v1233 = vsub.f32 1.0, %v1232
      %v1234 = vmul.f32 %v1231, %v1233
      %v1235 = vadd.f32 %v1231, %v1234
      %vm1236 = vweird.f32 %v1180
      %vm1237 = vweird.f32 %v1231
      %vm1238 = vmor %vm1236, %vm1237
      %v1239 = vsel %vm1238, %v1231, %v1235
      %v1240 = vand.u32 2147483647, %v1180
      %vm1241 = vcmp.eq.f32.partialorder %v1240, 8.507059e+37
      %v1242 = vand.u32 %v1180, 2147483648
      %v1243 = vor.u32 1.1754944e-38, %v1242
      %v1244 = vsel %vm1241, %v1243, %v1239
      %v1245 = vmul.f32 1.0, %v1244
      %v1246 = vrcp.pop %v1181
      %v1247 = vmul.f32 %v1181, %v1246
      %v1248 = vsub.f32 1.0, %v1247
      %v1249 = vmul.f32 %v1246, %v1248
      %v1250 = vadd.f32 %v1246, %v1249
      %vm1251 = vweird.f32 %v1181
      %vm1252 = vweird.f32 %v1246
      %vm1253 = vmor %vm1251, %vm1252
      %v1254 = vsel %vm1253, %v1246, %v1250
      %v1255 = vand.u32 2147483647, %v1181
      %vm1256 = vcmp.eq.f32.partialorder %v1255, 8.507059e+37
      %v1257 = vand.u32 %v1181, 2147483648
      %v1258 = vor.u32 1.1754944e-38, %v1257
      %v1259 = vsel %vm1256, %v1258, %v1254
      %v1260 = vmul.f32 1.0, %v1259
      %v1261 = vrcp.pop %v1182
      %v1262 = vmul.f32 %v1182, %v1261
      %v1263 = vsub.f32 1.0, %v1262
      %v1264 = vmul.f32 %v1261, %v1263
      %v1265 = vadd.f32 %v1261, %v1264
      %vm1266 = vweird.f32 %v1182
      %vm1267 = vweird.f32 %v1261
      %vm1268 = vmor %vm1266, %vm1267
      %v1269 = vsel %vm1268, %v1261, %v1265
      %v1270 = vand.u32 2147483647, %v1182
      %vm1271 = vcmp.eq.f32.partialorder %v1270, 8.507059e+37
      %v1272 = vand.u32 %v1182, 2147483648
      %v1273 = vor.u32 1.1754944e-38, %v1272
      %v1274 = vsel %vm1271, %v1273, %v1269
      %v1275 = vmul.f32 1.0, %v1274
      %v1276 = vrcp.pop %v1183
      %v1277 = vmul.f32 %v1183, %v1276
      %v1278 = vsub.f32 1.0, %v1277
      %v1279 = vmul.f32 %v1276, %v1278
      %v1280 = vadd.f32 %v1276, %v1279
      %vm1281 = vweird.f32 %v1183
      %vm1282 = vweird.f32 %v1276
      %vm1283 = vmor %vm1281, %vm1282
      %v1284 = vsel %vm1283, %v1276, %v1280
      %v1285 = vand.u32 2147483647, %v1183
      %vm1286 = vcmp.eq.f32.partialorder %v1285, 8.507059e+37
      %v1287 = vand.u32 %v1183, 2147483648
      %v1288 = vor.u32 1.1754944e-38, %v1287
      %v1289 = vsel %vm1286, %v1288, %v1284
      %v1290 = vmul.f32 1.0, %v1289
      %v1291 = vrcp.pop %v1184
      %v1292 = vmul.f32 %v1184, %v1291
      %v1293 = vsub.f32 1.0, %v1292
      %v1294 = vmul.f32 %v1291, %v1293
      %v1295 = vadd.f32 %v1291, %v1294
      %vm1296 = vweird.f32 %v1184
      %vm1297 = vweird.f32 %v1291
      %vm1298 = vmor %vm1296, %vm1297
      %v1299 = vsel %vm1298, %v1291, %v1295
      %v1300 = vand.u32 2147483647, %v1184
      %vm1301 = vcmp.eq.f32.partialorder %v1300, 8.507059e+37
      %v1302 = vand.u32 %v1184, 2147483648
      %v1303 = vor.u32 1.1754944e-38, %v1302
      %v1304 = vsel %vm1301, %v1303, %v1299
      %v1305 = vmul.f32 1.0, %v1304
      %v1306 = vrcp.pop %v1185
      %v1307 = vmul.f32 %v1185, %v1306
      %v1308 = vsub.f32 1.0, %v1307
      %v1309 = vmul.f32 %v1306, %v1308
      %v1310 = vadd.f32 %v1306, %v1309
      %vm1311 = vweird.f32 %v1185
      %vm1312 = vweird.f32 %v1306
      %vm1313 = vmor %vm1311, %vm1312
      %v1314 = vsel %vm1313, %v1306, %v1310
      %v1315 = vand.u32 2147483647, %v1185
      %vm1316 = vcmp.eq.f32.partialorder %v1315, 8.507059e+37
      %v1317 = vand.u32 %v1185, 2147483648
      %v1318 = vor.u32 1.1754944e-38, %v1317
      %v1319 = vsel %vm1316, %v1318, %v1314
      %v1320 = vmul.f32 1.0, %v1319
      %v1321 = vmul.f32 %v1127, %v1200
      %v1322 = vmul.f32 %v1129, %v1215
      %v1323 = vmul.f32 %v1132, %v1230
      %v1324 = vmul.f32 %v1134, %v1245
      %v1325 = vmul.f32 %v1137, %v1260
      %v1326 = vmul.f32 %v1139, %v1275
      %v1327 = vmul.f32 %v1142, %v1290
      %v1328 = vmul.f32 %v1144, %v1305
      %v1329 = vmul.f32 %v1147, %v1320
      %v1330 = vpack.c.bf16 %v1322, %v1321
      %v1331 = vpack.c.bf16 %v1324, %v1323
      %v1332 = vpack.c.bf16 %v1326, %v1325
      %v1333 = vpack.c.bf16 %v1328, %v1327
      %v1334 = vpack.c.bf16 %v1329, %v1329
      %v1335 = vld [vmem:[%s618] sm:$0xf]
      %v1336 = vld [vmem:[%s618 + $0x4] sm:$0xf]
      %v1337 = vld [vmem:[%s618 + $0x8] sm:$0xf]
      %v1338 = vld [vmem:[%s618 + $0xc] sm:$0xf]
      %v1339 = vld [vmem:[%s618 + $0x10] sm:$0xf]
      %v1340 = vld [vmem:[%s618 + $0x14] sm:$0xf]
      %v1341 = vld [vmem:[%s618 + $0x18] sm:$0xf]
      %v1342 = vld [vmem:[%s618 + $0x1c] sm:$0xf]
      %v1343 = vld [vmem:[%s618 + $0x20] sm:$0xf]
      %v1344 = vld [vmem:[%s618 + $0x24] sm:$0xf]
      %v1345 = vld [vmem:[%s618 + $0x28] sm:$0xf]
      %v1346 = vld [vmem:[%s618 + $0x2c] sm:$0xf]
      %v1347 = vld [vmem:[%s618 + $0x30] sm:$0xf]
      %v1348 = vld [vmem:[%s618 + $0x34] sm:$0xf]
      %v1349 = vld [vmem:[%s618 + $0x38] sm:$0xf]
      %v1350 = vld [vmem:[%s623 + $0x2] sm:$0x1]
      %v1351 = vperm.slane %v1350, 0
      %v1367 = vunpack.c.l.b16 %v1335
      %v1368 = vunpack.c.l.b16 %v1336
      %v1369 = vunpack.c.l.b16 %v1337
      %v1370 = vunpack.c.l.b16 %v1338
      %v1371 = vunpack.c.l.b16 %v1339
      %v1372 = vunpack.c.l.b16 %v1340
      %v1373 = vunpack.c.l.b16 %v1341
      %v1374 = vunpack.c.l.b16 %v1342
      %v1375 = vunpack.c.l.b16 %v1343
      %v1376 = vunpack.c.l.b16 %v1344
      %v1377 = vunpack.c.l.b16 %v1345
      %v1378 = vunpack.c.l.b16 %v1346
      %v1379 = vunpack.c.l.b16 %v1347
      %v1380 = vunpack.c.l.b16 %v1348
      %v1381 = vunpack.c.l.b16 %v1349
      %v1382 = vpack.c.b16 %v1368, %v1367
      %v1383 = vpack.c.b16 %v1370, %v1369
      %v1384 = vpack.c.b16 %v1372, %v1371
      %v1385 = vpack.c.b16 %v1374, %v1373
      %v1386 = vpack.c.b16 %v1376, %v1375
      %v1387 = vpack.c.b16 %v1378, %v1377
      %v1388 = vpack.c.b16 %v1380, %v1379
      %v1389 = vpack.c.b16 %v1381, %v1381
      %vm1397 = vcmask 982016
      %v1399 = vsel %vm1397, %v1330, 0
      %v1402 = vsel %vm1397, %v1331, 0
      %v1405 = vsel %vm1397, %v1332, 0
      %v1408 = vsel %vm1397, %v1333, 0
      %v1411 = vsel %vm1397, %v1334, 0
      %vm1413 = vcmask 1043456
      %v1415 = vsel %vm1413, %v1389, 0
      %1417 = vmatpush.bf16.msra.mxu0 %v1415
      %1418 = vmatpush.bf16.msra.mxu0 %v1388
      %1419 = vmatpush.bf16.msra.mxu0 %v1387
      %1420 = vmatpush.bf16.msra.mxu0 %v1386
      %1421 = vmatpush.bf16.msra.mxu0 %v1385
      %1422 = vmatpush.bf16.msra.mxu0 %v1384
      %1423 = vmatpush.bf16.msra.mxu0 %v1383
      %1424 = vmatpush.bf16.msra.mxu0 %v1382
      %1425 = vmatmul.bf16.gmra.mxu0 %v1399
      %v1426 = vpop.f32.mrf.mxu0
      %v1427 = vadd.f32 %v1351, %v1426
      %v1428 = vpop.f32.mrf.mxu0
      %v1429 = vadd.f32 %v1351, %v1428
      %1430 = vmatmul.bf16.gmra.mxu0 %v1402
      %v1431 = vpop.f32.mrf.mxu0
      %v1432 = vadd.f32 %v1351, %v1431
      %v1433 = vpop.f32.mrf.mxu0
      %v1434 = vadd.f32 %v1351, %v1433
      %1435 = vmatmul.bf16.gmra.mxu0 %v1405
      %v1436 = vpop.f32.mrf.mxu0
      %v1437 = vadd.f32 %v1351, %v1436
      %v1438 = vpop.f32.mrf.mxu0
      %v1439 = vadd.f32 %v1351, %v1438
      %1440 = vmatmul.bf16.gmra.mxu0 %v1408
      %v1441 = vpop.f32.mrf.mxu0
      %v1442 = vadd.f32 %v1351, %v1441
      %v1443 = vpop.f32.mrf.mxu0
      %v1444 = vadd.f32 %v1351, %v1443
      %1445 = vmatmul.bf16.gmra.mxu0 %v1411
      %v1446 = vpop.f32.mrf.mxu0
      %v1447 = vadd.f32 %v1351, %v1446
      %v1448 = vpop.f32.mrf.mxu0
      %1449 = vdwg.mxu0
      %v1450 = vmul.f32 %v1427, 0.5
      %v1451 = vmul.f32 %v1429, 0.5
      %v1452 = vmul.f32 %v1432, 0.5
      %v1453 = vmul.f32 %v1434, 0.5
      %v1454 = vmul.f32 %v1437, 0.5
      %v1455 = vmul.f32 %v1439, 0.5
      %v1456 = vmul.f32 %v1442, 0.5
      %v1457 = vmul.f32 %v1444, 0.5
      %v1458 = vmul.f32 %v1447, 0.5
      %v1459 = vadd.f32 %v839, %v1450
      %v1460 = vadd.f32 %v840, %v1451
      %v1461 = vadd.f32 %v841, %v1452
      %v1462 = vadd.f32 %v842, %v1453
      %v1463 = vadd.f32 %v843, %v1454
      %v1464 = vadd.f32 %v844, %v1455
      %v1465 = vadd.f32 %v845, %v1456
      %v1466 = vadd.f32 %v846, %v1457
      %v1467 = vadd.f32 %v847, %v1458
      %v1468 = vld [vmem:[%s623 + $0x3] sm:$0x1]
      %v1469 = vld [vmem:[%s623 + $0x4] sm:$0x1]
      %v1470 = vsel %vm850, %v1459, 0.0
      %1471 = vadd.xlane.f32.xlu0 %v1470
      %v1472 = vpop.xlane.xlu0 %1471
      %v1473 = vsel %vm850, %v1460, 0.0
      %1474 = vadd.xlane.f32.xlu0 %v1473
      %v1475 = vpop.xlane.xlu0 %1474
      %v1476 = vsel %vm850, %v1461, 0.0
      %1477 = vadd.xlane.f32.xlu0 %v1476
      %v1478 = vpop.xlane.xlu0 %1477
      %v1479 = vsel %vm850, %v1462, 0.0
      %1480 = vadd.xlane.f32.xlu0 %v1479
      %v1481 = vpop.xlane.xlu0 %1480
      %v1482 = vsel %vm850, %v1463, 0.0
      %1483 = vadd.xlane.f32.xlu0 %v1482
      %v1484 = vpop.xlane.xlu0 %1483
      %v1485 = vsel %vm850, %v1464, 0.0
      %1486 = vadd.xlane.f32.xlu0 %v1485
      %v1487 = vpop.xlane.xlu0 %1486
      %v1488 = vsel %vm850, %v1465, 0.0
      %1489 = vadd.xlane.f32.xlu0 %v1488
      %v1490 = vpop.xlane.xlu0 %1489
      %v1491 = vsel %vm850, %v1466, 0.0
      %1492 = vadd.xlane.f32.xlu0 %v1491
      %v1493 = vpop.xlane.xlu0 %1492
      %v1494 = vsel %vm850, %v1467, 0.0
      %1495 = vadd.xlane.f32.xlu0 %v1494
      %v1496 = vpop.xlane.xlu0 %1495
      %v1497 = vmul.f32 %v1472, %v884
      %v1498 = vmul.f32 %v1475, %v884
      %v1499 = vmul.f32 %v1478, %v884
      %v1500 = vmul.f32 %v1481, %v884
      %v1501 = vmul.f32 %v1484, %v884
      %v1502 = vmul.f32 %v1487, %v884
      %v1503 = vmul.f32 %v1490, %v884
      %v1504 = vmul.f32 %v1493, %v884
      %v1505 = vmul.f32 %v1496, %v884
      %v1506 = vsub.f32 %v1459, %v1497
      %v1507 = vsub.f32 %v1460, %v1498
      %v1508 = vsub.f32 %v1461, %v1499
      %v1509 = vsub.f32 %v1462, %v1500
      %v1510 = vsub.f32 %v1463, %v1501
      %v1511 = vsub.f32 %v1464, %v1502
      %v1512 = vsub.f32 %v1465, %v1503
      %v1513 = vsub.f32 %v1466, %v1504
      %v1514 = vsub.f32 %v1467, %v1505
      %v1515 = vmul.f32 %v1506, %v1506
      %v1516 = vmul.f32 %v1507, %v1507
      %v1517 = vmul.f32 %v1508, %v1508
      %v1518 = vmul.f32 %v1509, %v1509
      %v1519 = vmul.f32 %v1510, %v1510
      %v1520 = vmul.f32 %v1511, %v1511
      %v1521 = vmul.f32 %v1512, %v1512
      %v1522 = vmul.f32 %v1513, %v1513
      %v1523 = vmul.f32 %v1514, %v1514
      %v1524 = vsel %vm850, %v1515, 0.0
      %1525 = vadd.xlane.f32.xlu0 %v1524
      %v1526 = vpop.xlane.xlu0 %1525
      %v1527 = vsel %vm850, %v1516, 0.0
      %1528 = vadd.xlane.f32.xlu0 %v1527
      %v1529 = vpop.xlane.xlu0 %1528
      %v1530 = vsel %vm850, %v1517, 0.0
      %1531 = vadd.xlane.f32.xlu0 %v1530
      %v1532 = vpop.xlane.xlu0 %1531
      %v1533 = vsel %vm850, %v1518, 0.0
      %1534 = vadd.xlane.f32.xlu0 %v1533
      %v1535 = vpop.xlane.xlu0 %1534
      %v1536 = vsel %vm850, %v1519, 0.0
      %1537 = vadd.xlane.f32.xlu0 %v1536
      %v1538 = vpop.xlane.xlu0 %1537
      %v1539 = vsel %vm850, %v1520, 0.0
      %1540 = vadd.xlane.f32.xlu0 %v1539
      %v1541 = vpop.xlane.xlu0 %1540
      %v1542 = vsel %vm850, %v1521, 0.0
      %1543 = vadd.xlane.f32.xlu0 %v1542
      %v1544 = vpop.xlane.xlu0 %1543
      %v1545 = vsel %vm850, %v1522, 0.0
      %1546 = vadd.xlane.f32.xlu0 %v1545
      %v1547 = vpop.xlane.xlu0 %1546
      %v1548 = vsel %vm850, %v1523, 0.0
      %1549 = vadd.xlane.f32.xlu0 %v1548
      %v1550 = vpop.xlane.xlu0 %1549
      %v1551 = vmul.f32 %v1526, %v884
      %v1552 = vmul.f32 %v1529, %v884
      %v1553 = vmul.f32 %v1532, %v884
      %v1554 = vmul.f32 %v1535, %v884
      %v1555 = vmul.f32 %v1538, %v884
      %v1556 = vmul.f32 %v1541, %v884
      %v1557 = vmul.f32 %v1544, %v884
      %v1558 = vmul.f32 %v1547, %v884
      %v1559 = vmul.f32 %v1550, %v884
      %v1560 = vadd.f32 %v1551, 1e-05
      %v1561 = vadd.f32 %v1552, 1e-05
      %v1562 = vadd.f32 %v1553, 1e-05
      %v1563 = vadd.f32 %v1554, 1e-05
      %v1564 = vadd.f32 %v1555, 1e-05
      %v1565 = vadd.f32 %v1556, 1e-05
      %v1566 = vadd.f32 %v1557, 1e-05
      %v1567 = vadd.f32 %v1558, 1e-05
      %v1568 = vadd.f32 %v1559, 1e-05
      %v1569 = vrsqrt.pop %v1560
      %v1570 = vmul.f32 %v1569, %v1560
      %v1571 = vmul.f32 %v1570, %v1569
      %v1572 = vmul.f32 0.5, %v1571
      %v1573 = vsub.f32 1.5, %v1572
      %v1574 = vmul.f32 %v1569, %v1573
      %vm1575 = vweird.f32 %v1560
      %vm1576 = vweird.f32 %v1569
      %vm1577 = vmor %vm1575, %vm1576
      %v1578 = vsel %vm1577, %v1569, %v1574
      %v1579 = vrsqrt.pop %v1561
      %v1580 = vmul.f32 %v1579, %v1561
      %v1581 = vmul.f32 %v1580, %v1579
      %v1582 = vmul.f32 0.5, %v1581
      %v1583 = vsub.f32 1.5, %v1582
      %v1584 = vmul.f32 %v1579, %v1583
      %vm1585 = vweird.f32 %v1561
      %vm1586 = vweird.f32 %v1579
      %vm1587 = vmor %vm1585, %vm1586
      %v1588 = vsel %vm1587, %v1579, %v1584
      %v1589 = vrsqrt.pop %v1562
      %v1590 = vmul.f32 %v1589, %v1562
      %v1591 = vmul.f32 %v1590, %v1589
      %v1592 = vmul.f32 0.5, %v1591
      %v1593 = vsub.f32 1.5, %v1592
      %v1594 = vmul.f32 %v1589, %v1593
      %vm1595 = vweird.f32 %v1562
      %vm1596 = vweird.f32 %v1589
      %vm1597 = vmor %vm1595, %vm1596
      %v1598 = vsel %vm1597, %v1589, %v1594
      %v1599 = vrsqrt.pop %v1563
      %v1600 = vmul.f32 %v1599, %v1563
      %v1601 = vmul.f32 %v1600, %v1599
      %v1602 = vmul.f32 0.5, %v1601
      %v1603 = vsub.f32 1.5, %v1602
      %v1604 = vmul.f32 %v1599, %v1603
      %vm1605 = vweird.f32 %v1563
      %vm1606 = vweird.f32 %v1599
      %vm1607 = vmor %vm1605, %vm1606
      %v1608 = vsel %vm1607, %v1599, %v1604
      %v1609 = vrsqrt.pop %v1564
      %v1610 = vmul.f32 %v1609, %v1564
      %v1611 = vmul.f32 %v1610, %v1609
      %v1612 = vmul.f32 0.5, %v1611
      %v1613 = vsub.f32 1.5, %v1612
      %v1614 = vmul.f32 %v1609, %v1613
      %vm1615 = vweird.f32 %v1564
      %vm1616 = vweird.f32 %v1609
      %vm1617 = vmor %vm1615, %vm1616
      %v1618 = vsel %vm1617, %v1609, %v1614
      %v1619 = vrsqrt.pop %v1565
      %v1620 = vmul.f32 %v1619, %v1565
      %v1621 = vmul.f32 %v1620, %v1619
      %v1622 = vmul.f32 0.5, %v1621
      %v1623 = vsub.f32 1.5, %v1622
      %v1624 = vmul.f32 %v1619, %v1623
      %vm1625 = vweird.f32 %v1565
      %vm1626 = vweird.f32 %v1619
      %vm1627 = vmor %vm1625, %vm1626
      %v1628 = vsel %vm1627, %v1619, %v1624
      %v1629 = vrsqrt.pop %v1566
      %v1630 = vmul.f32 %v1629, %v1566
      %v1631 = vmul.f32 %v1630, %v1629
      %v1632 = vmul.f32 0.5, %v1631
      %v1633 = vsub.f32 1.5, %v1632
      %v1634 = vmul.f32 %v1629, %v1633
      %vm1635 = vweird.f32 %v1566
      %vm1636 = vweird.f32 %v1629
      %vm1637 = vmor %vm1635, %vm1636
      %v1638 = vsel %vm1637, %v1629, %v1634
      %v1639 = vrsqrt.pop %v1567
      %v1640 = vmul.f32 %v1639, %v1567
      %v1641 = vmul.f32 %v1640, %v1639
      %v1642 = vmul.f32 0.5, %v1641
      %v1643 = vsub.f32 1.5, %v1642
      %v1644 = vmul.f32 %v1639, %v1643
      %vm1645 = vweird.f32 %v1567
      %vm1646 = vweird.f32 %v1639
      %vm1647 = vmor %vm1645, %vm1646
      %v1648 = vsel %vm1647, %v1639, %v1644
      %v1649 = vrsqrt.pop %v1568
      %v1650 = vmul.f32 %v1649, %v1568
      %v1651 = vmul.f32 %v1650, %v1649
      %v1652 = vmul.f32 0.5, %v1651
      %v1653 = vsub.f32 1.5, %v1652
      %v1654 = vmul.f32 %v1649, %v1653
      %vm1655 = vweird.f32 %v1568
      %vm1656 = vweird.f32 %v1649
      %vm1657 = vmor %vm1655, %vm1656
      %v1658 = vsel %vm1657, %v1649, %v1654
      %v1659 = vmul.f32 %v1506, %v1578
      %v1660 = vmul.f32 %v1507, %v1588
      %v1661 = vmul.f32 %v1508, %v1598
      %v1662 = vmul.f32 %v1509, %v1608
      %v1663 = vmul.f32 %v1510, %v1618
      %v1664 = vmul.f32 %v1511, %v1628
      %v1665 = vmul.f32 %v1512, %v1638
      %v1666 = vmul.f32 %v1513, %v1648
      %v1667 = vmul.f32 %v1514, %v1658
      %v1668 = vperm.slane %v1468, 0
      %v1669 = vmul.f32 %v1659, %v1668
      %v1670 = vmul.f32 %v1660, %v1668
      %v1671 = vmul.f32 %v1661, %v1668
      %v1672 = vmul.f32 %v1662, %v1668
      %v1673 = vmul.f32 %v1663, %v1668
      %v1674 = vmul.f32 %v1664, %v1668
      %v1675 = vmul.f32 %v1665, %v1668
      %v1676 = vmul.f32 %v1666, %v1668
      %v1677 = vmul.f32 %v1667, %v1668
      %v1678 = vperm.slane %v1469, 0
      %v1679 = vadd.f32 %v1669, %v1678
      %v1680 = vadd.f32 %v1670, %v1678
      %v1681 = vadd.f32 %v1671, %v1678
      %v1682 = vadd.f32 %v1672, %v1678
      %v1683 = vadd.f32 %v1673, %v1678
      %v1684 = vadd.f32 %v1674, %v1678
      %v1685 = vadd.f32 %v1675, %v1678
      %v1686 = vadd.f32 %v1676, %v1678
      %v1687 = vadd.f32 %v1677, %v1678
      %v1688 = vpack.c.bf16 %v1680, %v1679
      %v1689 = vpack.c.bf16 %v1682, %v1681
      %v1690 = vpack.c.bf16 %v1684, %v1683
      %v1691 = vpack.c.bf16 %v1686, %v1685
      %v1692 = vpack.c.bf16 %v1687, %v1687
      %v1693 = vld [vmem:[%s608] sm:$0xf]
      %v1694 = vld [vmem:[%s608 + $0x4] sm:$0xf]
      %v1695 = vld [vmem:[%s608 + $0x8] sm:$0xf]
      %v1696 = vld [vmem:[%s608 + $0xc] sm:$0x7]
      %v1697 = vld [vmem:[%s623 + $0x5] sm:$0x1]
      %v1698 = vperm.slane %v1697, 0
      %v1703 = vunpack.c.l.b16 %v1693
      %v1704 = vunpack.c.l.b16 %v1694
      %v1705 = vunpack.c.l.b16 %v1695
      %v1706 = vunpack.c.l.b16 %v1696
      %v1707 = vpack.c.b16 %v1704, %v1703
      %v1708 = vpack.c.b16 %v1706, %v1705
      %v1711 = vsel %vm850, %v1688, 0
      %v1714 = vsel %vm850, %v1689, 0
      %v1717 = vsel %vm850, %v1690, 0
      %v1720 = vsel %vm850, %v1691, 0
      %v1723 = vsel %vm850, %v1692, 0
      %v1726 = vsel %vm1113, %v1708, 0
      %1728 = vmatpush.bf16.msra.mxu0 0
      %1729 = vmatpush.bf16.msra.mxu0 0
      %1730 = vmatpush.bf16.msra.mxu0 0
      %1731 = vmatpush.bf16.msra.mxu0 0
      %1732 = vmatpush.bf16.msra.mxu0 0
      %1733 = vmatpush.bf16.msra.mxu0 0
      %1734 = vmatpush.bf16.msra.mxu0 %v1726
      %1735 = vmatpush.bf16.msra.mxu0 %v1707
      %1736 = vmatmul.bf16.gmra.mxu0 %v1711
      %v1737 = vpop.f32.mrf.mxu0
      %v1738 = vadd.f32 %v1698, %v1737
      %v1739 = vpop.f32.mrf.mxu0
      %v1740 = vadd.f32 %v1698, %v1739
      %1741 = vmatmul.bf16.gmra.mxu0 %v1714
      %v1742 = vpop.f32.mrf.mxu0
      %v1743 = vadd.f32 %v1698, %v1742
      %v1744 = vpop.f32.mrf.mxu0
      %v1745 = vadd.f32 %v1698, %v1744
      %1746 = vmatmul.bf16.gmra.mxu0 %v1717
      %v1747 = vpop.f32.mrf.mxu0
      %v1748 = vadd.f32 %v1698, %v1747
      %v1749 = vpop.f32.mrf.mxu0
      %v1750 = vadd.f32 %v1698, %v1749
      %1751 = vmatmul.bf16.gmra.mxu0 %v1720
      %v1752 = vpop.f32.mrf.mxu0
      %v1753 = vadd.f32 %v1698, %v1752
      %v1754 = vpop.f32.mrf.mxu0
      %v1755 = vadd.f32 %v1698, %v1754
      %1756 = vmatmul.bf16.gmra.mxu0 %v1723
      %v1757 = vpop.f32.mrf.mxu0
      %v1758 = vadd.f32 %v1698, %v1757
      %v1759 = vpop.f32.mrf.mxu0
      %1760 = vdwg.mxu0
      %s1761 = scalar_lea.vmem %s608, 16
      %v1762 = vld [vmem:[%s1761] sm:$0xf]
      %v1763 = vld [vmem:[%s1761 + $0x4] sm:$0xf]
      %v1764 = vld [vmem:[%s1761 + $0x8] sm:$0xf]
      %v1765 = vld [vmem:[%s1761 + $0xc] sm:$0x7]
      %v1766 = vld [vmem:[%s623 + $0x6] sm:$0x1]
      %v1767 = vperm.slane %v1766, 0
      %v1772 = vunpack.c.l.b16 %v1762
      %v1773 = vunpack.c.l.b16 %v1763
      %v1774 = vunpack.c.l.b16 %v1764
      %v1775 = vunpack.c.l.b16 %v1765
      %v1776 = vpack.c.b16 %v1773, %v1772
      %v1777 = vpack.c.b16 %v1775, %v1774
      %v1780 = vsel %vm1113, %v1777, 0
      %1782 = vmatpush.bf16.msra.mxu0 0
      %1783 = vmatpush.bf16.msra.mxu0 0
      %1784 = vmatpush.bf16.msra.mxu0 0
      %1785 = vmatpush.bf16.msra.mxu0 0
      %1786 = vmatpush.bf16.msra.mxu0 0
      %1787 = vmatpush.bf16.msra.mxu0 0
      %1788 = vmatpush.bf16.msra.mxu0 %v1780
      %1789 = vmatpush.bf16.msra.mxu0 %v1776
      %1790 = vmatmul.bf16.gmra.mxu0 %v1711
      %v1791 = vpop.f32.mrf.mxu0
      %v1792 = vadd.f32 %v1767, %v1791
      %v1793 = vpop.f32.mrf.mxu0
      %v1794 = vadd.f32 %v1767, %v1793
      %1795 = vmatmul.bf16.gmra.mxu0 %v1714
      %v1796 = vpop.f32.mrf.mxu0
      %v1797 = vadd.f32 %v1767, %v1796
      %v1798 = vpop.f32.mrf.mxu0
      %v1799 = vadd.f32 %v1767, %v1798
      %1800 = vmatmul.bf16.gmra.mxu0 %v1717
      %v1801 = vpop.f32.mrf.mxu0
      %v1802 = vadd.f32 %v1767, %v1801
      %v1803 = vpop.f32.mrf.mxu0
      %v1804 = vadd.f32 %v1767, %v1803
      %1805 = vmatmul.bf16.gmra.mxu0 %v1720
      %v1806 = vpop.f32.mrf.mxu0
      %v1807 = vadd.f32 %v1767, %v1806
      %v1808 = vpop.f32.mrf.mxu0
      %v1809 = vadd.f32 %v1767, %v1808
      %1810 = vmatmul.bf16.gmra.mxu0 %v1723
      %v1811 = vpop.f32.mrf.mxu0
      %v1812 = vadd.f32 %v1767, %v1811
      %v1813 = vpop.f32.mrf.mxu0
      %1814 = vdwg.mxu0
      %s1815 = scalar_lea.vmem %s608, 32
      %v1816 = vld [vmem:[%s1815] sm:$0xf]
      %v1817 = vld [vmem:[%s1815 + $0x4] sm:$0xf]
      %v1818 = vld [vmem:[%s1815 + $0x8] sm:$0xf]
      %v1819 = vld [vmem:[%s1815 + $0xc] sm:$0x7]
      %v1820 = vld [vmem:[%s623 + $0x7] sm:$0x1]
      %v1821 = vperm.slane %v1820, 0
      %v1826 = vunpack.c.l.b16 %v1816
      %v1827 = vunpack.c.l.b16 %v1817
      %v1828 = vunpack.c.l.b16 %v1818
      %v1829 = vunpack.c.l.b16 %v1819
      %v1830 = vpack.c.b16 %v1827, %v1826
      %v1831 = vpack.c.b16 %v1829, %v1828
      %v1834 = vsel %vm1113, %v1831, 0
      %1836 = vmatpush.bf16.msra.mxu0 0
      %1837 = vmatpush.bf16.msra.mxu0 0
      %1838 = vmatpush.bf16.msra.mxu0 0
      %1839 = vmatpush.bf16.msra.mxu0 0
      %1840 = vmatpush.bf16.msra.mxu0 0
      %1841 = vmatpush.bf16.msra.mxu0 0
      %1842 = vmatpush.bf16.msra.mxu0 %v1834
      %1843 = vmatpush.bf16.msra.mxu0 %v1830
      %1844 = vmatmul.bf16.gmra.mxu0 %v1711
      %v1845 = vpop.f32.mrf.mxu0
      %v1846 = vadd.f32 %v1821, %v1845
      %v1847 = vpop.f32.mrf.mxu0
      %v1848 = vadd.f32 %v1821, %v1847
      %1849 = vmatmul.bf16.gmra.mxu0 %v1714
      %v1850 = vpop.f32.mrf.mxu0
      %v1851 = vadd.f32 %v1821, %v1850
      %v1852 = vpop.f32.mrf.mxu0
      %v1853 = vadd.f32 %v1821, %v1852
      %1854 = vmatmul.bf16.gmra.mxu0 %v1717
      %v1855 = vpop.f32.mrf.mxu0
      %v1856 = vadd.f32 %v1821, %v1855
      %v1857 = vpop.f32.mrf.mxu0
      %v1858 = vadd.f32 %v1821, %v1857
      %1859 = vmatmul.bf16.gmra.mxu0 %v1720
      %v1860 = vpop.f32.mrf.mxu0
      %v1861 = vadd.f32 %v1821, %v1860
      %v1862 = vpop.f32.mrf.mxu0
      %v1863 = vadd.f32 %v1821, %v1862
      %1864 = vmatmul.bf16.gmra.mxu0 %v1723
      %v1865 = vpop.f32.mrf.mxu0
      %v1866 = vadd.f32 %v1821, %v1865
      %v1867 = vpop.f32.mrf.mxu0
      %1868 = vdwg.mxu0
      %v1869 = vpack.c.bf16 %v1740, %v1738
      %v1870 = vpack.c.bf16 %v1745, %v1743
      %v1871 = vpack.c.bf16 %v1750, %v1748
      %v1872 = vpack.c.bf16 %v1755, %v1753
      %v1873 = vpack.c.bf16 %v1758, %v1758
      %v1874 = vpack.c.bf16 %v1794, %v1792
      %v1875 = vpack.c.bf16 %v1799, %v1797
      %v1876 = vpack.c.bf16 %v1804, %v1802
      %v1877 = vpack.c.bf16 %v1809, %v1807
      %v1878 = vpack.c.bf16 %v1812, %v1812
      %v1880 = vsel %vm850, %v1869, 0
      %v1883 = vsel %vm850, %v1870, 0
      %v1886 = vsel %vm850, %v1871, 0
      %v1889 = vsel %vm850, %v1872, 0
      %v1892 = vsel %vm850, %v1873, 0
      %v1895 = vsel %vm850, %v1874, 0
      %v1898 = vsel %vm850, %v1875, 0
      %v1901 = vsel %vm850, %v1876, 0
      %v1904 = vsel %vm850, %v1877, 0
      %v1907 = vsel %vm850, %v1878, 0
      %1909 = vmatpush.bf16.xpose.msra.mxu0 0
      %1910 = vmatpush.bf16.xpose.msra.mxu0 0
      %1911 = vmatpush.bf16.xpose.msra.mxu0 0
      %1912 = vmatpush.bf16.xpose.msra.mxu0 %v1907
      %1913 = vmatpush.bf16.xpose.msra.mxu0 %v1904
      %1914 = vmatpush.bf16.xpose.msra.mxu0 %v1901
      %1915 = vmatpush.bf16.xpose.msra.mxu0 %v1898
      %1916 = vmatpush.bf16.xpose.msra.mxu0 %v1895
      %1917 = vmatmul.bf16.gmra.mxu0 %v1880
      %v1918 = vpop.f32.mrf.mxu0
      %v1919 = vadd.f32 0.0, %v1918
      %v1920 = vpop.f32.mrf.mxu0
      %v1921 = vadd.f32 0.0, %v1920
      %1922 = vmatmul.bf16.gmra.mxu0 %v1883
      %v1923 = vpop.f32.mrf.mxu0
      %v1924 = vadd.f32 0.0, %v1923
      %v1925 = vpop.f32.mrf.mxu0
      %v1926 = vadd.f32 0.0, %v1925
      %1927 = vmatmul.bf16.gmra.mxu0 %v1886
      %v1928 = vpop.f32.mrf.mxu0
      %v1929 = vadd.f32 0.0, %v1928
      %v1930 = vpop.f32.mrf.mxu0
      %v1931 = vadd.f32 0.0, %v1930
      %1932 = vmatmul.bf16.gmra.mxu0 %v1889
      %v1933 = vpop.f32.mrf.mxu0
      %v1934 = vadd.f32 0.0, %v1933
      %v1935 = vpop.f32.mrf.mxu0
      %v1936 = vadd.f32 0.0, %v1935
      %1937 = vmatmul.bf16.gmra.mxu0 %v1892
      %v1938 = vpop.f32.mrf.mxu0
      %v1939 = vadd.f32 0.0, %v1938
      %v1940 = vpop.f32.mrf.mxu0
      %1941 = vdwg.mxu0
      %v1942 = vmul.f32 %v1919, 0.18257418
      %v1943 = vmul.f32 %v1921, 0.18257418
      %v1944 = vmul.f32 %v1924, 0.18257418
      %v1945 = vmul.f32 %v1926, 0.18257418
      %v1946 = vmul.f32 %v1929, 0.18257418
      %v1947 = vmul.f32 %v1931, 0.18257418
      %v1948 = vmul.f32 %v1934, 0.18257418
      %v1949 = vmul.f32 %v1936, 0.18257418
      %v1950 = vmul.f32 %v1939, 0.18257418
      %v1951 = vld [vmem:[%s4] sm:$0xff]
      %v1952 = vld [vmem:[%s4 + $0x8] sm:$0xff]
      %v1953 = vld [vmem:[%s4 + $0x10] sm:$0xff]
      %v1954 = vld [vmem:[%s4 + $0x18] sm:$0xff]
      %v1955 = vld [vmem:[%s4 + $0x20] sm:$0xff]
      %v1956 = vld [vmem:[%s4 + $0x28] sm:$0xff]
      %v1957 = vld [vmem:[%s4 + $0x30] sm:$0xff]
      %v1958 = vld [vmem:[%s4 + $0x38] sm:$0xff]
      %v1959 = vld [vmem:[%s4 + $0x40] sm:$0xff]
      %v1960 = vadd.f32 %v1942, %v1951
      %v1961 = vadd.f32 %v1943, %v1952
      %v1962 = vadd.f32 %v1944, %v1953
      %v1963 = vadd.f32 %v1945, %v1954
      %v1964 = vadd.f32 %v1946, %v1955
      %v1965 = vadd.f32 %v1947, %v1956
      %v1966 = vadd.f32 %v1948, %v1957
      %v1967 = vadd.f32 %v1949, %v1958
      %v1968 = vadd.f32 %v1950, %v1959
      %vm1969 = vcmask 588800
      %v1970 = vsel %vm1969, %v1960, -inf
      %1971 = vmax.xlane.f32.xlu0 %v1970
      %v1972 = vpop.xlane.xlu0 %1971
      %v1973 = vsel %vm1969, %v1961, -inf
      %1974 = vmax.xlane.f32.xlu0 %v1973
      %v1975 = vpop.xlane.xlu0 %1974
      %v1976 = vsel %vm1969, %v1962, -inf
      %1977 = vmax.xlane.f32.xlu0 %v1976
      %v1978 = vpop.xlane.xlu0 %1977
      %v1979 = vsel %vm1969, %v1963, -inf
      %1980 = vmax.xlane.f32.xlu0 %v1979
      %v1981 = vpop.xlane.xlu0 %1980
      %v1982 = vsel %vm1969, %v1964, -inf
      %1983 = vmax.xlane.f32.xlu0 %v1982
      %v1984 = vpop.xlane.xlu0 %1983
      %v1985 = vsel %vm1969, %v1965, -inf
      %1986 = vmax.xlane.f32.xlu0 %v1985
      %v1987 = vpop.xlane.xlu0 %1986
      %v1988 = vsel %vm1969, %v1966, -inf
      %1989 = vmax.xlane.f32.xlu0 %v1988
      %v1990 = vpop.xlane.xlu0 %1989
      %v1991 = vsel %vm1969, %v1967, -inf
      %1992 = vmax.xlane.f32.xlu0 %v1991
      %v1993 = vpop.xlane.xlu0 %1992
      %v1994 = vsel %vm1969, %v1968, -inf
      %1995 = vmax.xlane.f32.xlu0 %v1994
      %v1996 = vpop.xlane.xlu0 %1995
      %v1997 = vsub.f32 %v1960, %v1972
      %v1998 = vsub.f32 %v1961, %v1975
      %v1999 = vsub.f32 %v1962, %v1978
      %v2000 = vsub.f32 %v1963, %v1981
      %v2001 = vsub.f32 %v1964, %v1984
      %v2002 = vsub.f32 %v1965, %v1987
      %v2003 = vsub.f32 %v1966, %v1990
      %v2004 = vsub.f32 %v1967, %v1993
      %v2005 = vsub.f32 %v1968, %v1996
      %v2006 = vmul.f32 %v1997, 1.442695
      %v2007 = vpow.pop %v2006
      %v2008 = vmul.f32 %v1998, 1.442695
      %v2009 = vpow.pop %v2008
      %v2010 = vmul.f32 %v1999, 1.442695
      %v2011 = vpow.pop %v2010
      %v2012 = vmul.f32 %v2000, 1.442695
      %v2013 = vpow.pop %v2012
      %v2014 = vmul.f32 %v2001, 1.442695
      %v2015 = vpow.pop %v2014
      %v2016 = vmul.f32 %v2002, 1.442695
      %v2017 = vpow.pop %v2016
      %v2018 = vmul.f32 %v2003, 1.442695
      %v2019 = vpow.pop %v2018
      %v2020 = vmul.f32 %v2004, 1.442695
      %v2021 = vpow.pop %v2020
      %v2022 = vmul.f32 %v2005, 1.442695
      %v2023 = vpow.pop %v2022
      %v2024 = vsel %vm1969, %v2007, 0.0
      %2025 = vadd.xlane.f32.xlu0 %v2024
      %v2026 = vpop.xlane.xlu0 %2025
      %v2027 = vsel %vm1969, %v2009, 0.0
      %2028 = vadd.xlane.f32.xlu0 %v2027
      %v2029 = vpop.xlane.xlu0 %2028
      %v2030 = vsel %vm1969, %v2011, 0.0
      %2031 = vadd.xlane.f32.xlu0 %v2030
      %v2032 = vpop.xlane.xlu0 %2031
      %v2033 = vsel %vm1969, %v2013, 0.0
      %2034 = vadd.xlane.f32.xlu0 %v2033
      %v2035 = vpop.xlane.xlu0 %2034
      %v2036 = vsel %vm1969, %v2015, 0.0
      %2037 = vadd.xlane.f32.xlu0 %v2036
      %v2038 = vpop.xlane.xlu0 %2037
      %v2039 = vsel %vm1969, %v2017, 0.0
      %2040 = vadd.xlane.f32.xlu0 %v2039
      %v2041 = vpop.xlane.xlu0 %2040
      %v2042 = vsel %vm1969, %v2019, 0.0
      %2043 = vadd.xlane.f32.xlu0 %v2042
      %v2044 = vpop.xlane.xlu0 %2043
      %v2045 = vsel %vm1969, %v2021, 0.0
      %2046 = vadd.xlane.f32.xlu0 %v2045
      %v2047 = vpop.xlane.xlu0 %2046
      %v2048 = vsel %vm1969, %v2023, 0.0
      %2049 = vadd.xlane.f32.xlu0 %v2048
      %v2050 = vpop.xlane.xlu0 %2049
      %v2051 = vrcp.pop %v2026
      %v2052 = vrcp.pop %v2029
      %v2053 = vrcp.pop %v2032
      %v2054 = vrcp.pop %v2035
      %v2055 = vrcp.pop %v2038
      %v2056 = vrcp.pop %v2041
      %v2057 = vrcp.pop %v2044
      %v2058 = vrcp.pop %v2047
      %v2059 = vrcp.pop %v2050
      %v2060 = vmul.f32 %v2007, %v2051
      %v2061 = vmul.f32 %v2009, %v2052
      %v2062 = vmul.f32 %v2011, %v2053
      %v2063 = vmul.f32 %v2013, %v2054
      %v2064 = vmul.f32 %v2015, %v2055
      %v2065 = vmul.f32 %v2017, %v2056
      %v2066 = vmul.f32 %v2019, %v2057
      %v2067 = vmul.f32 %v2021, %v2058
      %v2068 = vmul.f32 %v2023, %v2059
      %v2069 = vpack.c.bf16 %v2061, %v2060
      %v2070 = vpack.c.bf16 %v2063, %v2062
      %v2071 = vpack.c.bf16 %v2065, %v2064
      %v2072 = vpack.c.bf16 %v2067, %v2066
      %v2073 = vpack.c.bf16 %v2068, %v2068
      %v2074 = vpack.c.bf16 %v1848, %v1846
      %v2075 = vpack.c.bf16 %v1853, %v1851
      %v2076 = vpack.c.bf16 %v1858, %v1856
      %v2077 = vpack.c.bf16 %v1863, %v1861
      %v2078 = vpack.c.bf16 %v1866, %v1866
      %v2080 = vsel %vm1969, %v2069, 0
      %v2083 = vsel %vm1969, %v2070, 0
      %v2086 = vsel %vm1969, %v2071, 0
      %v2089 = vsel %vm1969, %v2072, 0
      %v2092 = vsel %vm1969, %v2073, 0
      %v2095 = vsel %vm1413, %v2078, 0
      %2097 = vmatpush.bf16.msra.mxu0 0
      %2098 = vmatpush.bf16.msra.mxu0 0
      %2099 = vmatpush.bf16.msra.mxu0 0
      %2100 = vmatpush.bf16.msra.mxu0 %v2095
      %2101 = vmatpush.bf16.msra.mxu0 %v2077
      %2102 = vmatpush.bf16.msra.mxu0 %v2076
      %2103 = vmatpush.bf16.msra.mxu0 %v2075
      %2104 = vmatpush.bf16.msra.mxu0 %v2074
      %2105 = vmatmul.bf16.gmra.mxu0 %v2080
      %v2106 = vpop.f32.mrf.mxu0
      %v2107 = vadd.f32 0.0, %v2106
      %v2108 = vpop.f32.mrf.mxu0
      %v2109 = vadd.f32 0.0, %v2108
      %2110 = vmatmul.bf16.gmra.mxu0 %v2083
      %v2111 = vpop.f32.mrf.mxu0
      %v2112 = vadd.f32 0.0, %v2111
      %v2113 = vpop.f32.mrf.mxu0
      %v2114 = vadd.f32 0.0, %v2113
      %2115 = vmatmul.bf16.gmra.mxu0 %v2086
      %v2116 = vpop.f32.mrf.mxu0
      %v2117 = vadd.f32 0.0, %v2116
      %v2118 = vpop.f32.mrf.mxu0
      %v2119 = vadd.f32 0.0, %v2118
      %2120 = vmatmul.bf16.gmra.mxu0 %v2089
      %v2121 = vpop.f32.mrf.mxu0
      %v2122 = vadd.f32 0.0, %v2121
      %v2123 = vpop.f32.mrf.mxu0
      %v2124 = vadd.f32 0.0, %v2123
      %2125 = vmatmul.bf16.gmra.mxu0 %v2092
      %v2126 = vpop.f32.mrf.mxu0
      %v2127 = vadd.f32 0.0, %v2126
      %v2128 = vpop.f32.mrf.mxu0
      %2129 = vdwg.mxu0
      %v2130 = vpack.c.bf16 %v2109, %v2107
      %v2131 = vpack.c.bf16 %v2114, %v2112
      %v2132 = vpack.c.bf16 %v2119, %v2117
      %v2133 = vpack.c.bf16 %v2124, %v2122
      %v2134 = vpack.c.bf16 %v2127, %v2127
      %s2135 = scalar_lea.vmem %s608, 48
      %v2136 = vld [vmem:[%s2135] sm:$0xf]
      %v2137 = vld [vmem:[%s2135 + $0x4] sm:$0xf]
      %v2138 = vld [vmem:[%s2135 + $0x8] sm:$0xf]
      %v2139 = vld [vmem:[%s2135 + $0xc] sm:$0x7]
      %v2140 = vld [vmem:[%s623 + $0x8] sm:$0x1]
      %v2141 = vperm.slane %v2140, 0
      %v2146 = vunpack.c.l.b16 %v2136
      %v2147 = vunpack.c.l.b16 %v2137
      %v2148 = vunpack.c.l.b16 %v2138
      %v2149 = vunpack.c.l.b16 %v2139
      %v2150 = vpack.c.b16 %v2147, %v2146
      %v2151 = vpack.c.b16 %v2149, %v2148
      %v2154 = vsel %vm850, %v2130, 0
      %v2157 = vsel %vm850, %v2131, 0
      %v2160 = vsel %vm850, %v2132, 0
      %v2163 = vsel %vm850, %v2133, 0
      %v2166 = vsel %vm850, %v2134, 0
      %v2169 = vsel %vm1113, %v2151, 0
      %2171 = vmatpush.bf16.msra.mxu0 0
      %2172 = vmatpush.bf16.msra.mxu0 0
      %2173 = vmatpush.bf16.msra.mxu0 0
      %2174 = vmatpush.bf16.msra.mxu0 0
      %2175 = vmatpush.bf16.msra.mxu0 0
      %2176 = vmatpush.bf16.msra.mxu0 0
      %2177 = vmatpush.bf16.msra.mxu0 %v2169
      %2178 = vmatpush.bf16.msra.mxu0 %v2150
      %2179 = vmatmul.bf16.gmra.mxu0 %v2154
      %v2180 = vpop.f32.mrf.mxu0
      %v2181 = vadd.f32 %v2141, %v2180
      %v2182 = vpop.f32.mrf.mxu0
      %v2183 = vadd.f32 %v2141, %v2182
      %2184 = vmatmul.bf16.gmra.mxu0 %v2157
      %v2185 = vpop.f32.mrf.mxu0
      %v2186 = vadd.f32 %v2141, %v2185
      %v2187 = vpop.f32.mrf.mxu0
      %v2188 = vadd.f32 %v2141, %v2187
      %2189 = vmatmul.bf16.gmra.mxu0 %v2160
      %v2190 = vpop.f32.mrf.mxu0
      %v2191 = vadd.f32 %v2141, %v2190
      %v2192 = vpop.f32.mrf.mxu0
      %v2193 = vadd.f32 %v2141, %v2192
      %2194 = vmatmul.bf16.gmra.mxu0 %v2163
      %v2195 = vpop.f32.mrf.mxu0
      %v2196 = vadd.f32 %v2141, %v2195
      %v2197 = vpop.f32.mrf.mxu0
      %v2198 = vadd.f32 %v2141, %v2197
      %2199 = vmatmul.bf16.gmra.mxu0 %v2166
      %v2200 = vpop.f32.mrf.mxu0
      %v2201 = vadd.f32 %v2141, %v2200
      %v2202 = vpop.f32.mrf.mxu0
      %2203 = vdwg.mxu0
      %v2204 = vadd.f32 %v1459, %v2181
      %v2205 = vadd.f32 %v1460, %v2183
      %v2206 = vadd.f32 %v1461, %v2186
      %v2207 = vadd.f32 %v1462, %v2188
      %v2208 = vadd.f32 %v1463, %v2191
      %v2209 = vadd.f32 %v1464, %v2193
      %v2210 = vadd.f32 %v1465, %v2196
      %v2211 = vadd.f32 %v1466, %v2198
      %v2212 = vadd.f32 %v1467, %v2201
      %v2213 = vld [vmem:[%s623 + $0x9] sm:$0x1]
      %v2214 = vld [vmem:[%s623 + $0xa] sm:$0x1]
      %v2215 = vsel %vm850, %v2204, 0.0
      %2216 = vadd.xlane.f32.xlu0 %v2215
      %v2217 = vpop.xlane.xlu0 %2216
      %v2218 = vsel %vm850, %v2205, 0.0
      %2219 = vadd.xlane.f32.xlu0 %v2218
      %v2220 = vpop.xlane.xlu0 %2219
      %v2221 = vsel %vm850, %v2206, 0.0
      %2222 = vadd.xlane.f32.xlu0 %v2221
      %v2223 = vpop.xlane.xlu0 %2222
      %v2224 = vsel %vm850, %v2207, 0.0
      %2225 = vadd.xlane.f32.xlu0 %v2224
      %v2226 = vpop.xlane.xlu0 %2225
      %v2227 = vsel %vm850, %v2208, 0.0
      %2228 = vadd.xlane.f32.xlu0 %v2227
      %v2229 = vpop.xlane.xlu0 %2228
      %v2230 = vsel %vm850, %v2209, 0.0
      %2231 = vadd.xlane.f32.xlu0 %v2230
      %v2232 = vpop.xlane.xlu0 %2231
      %v2233 = vsel %vm850, %v2210, 0.0
      %2234 = vadd.xlane.f32.xlu0 %v2233
      %v2235 = vpop.xlane.xlu0 %2234
      %v2236 = vsel %vm850, %v2211, 0.0
      %2237 = vadd.xlane.f32.xlu0 %v2236
      %v2238 = vpop.xlane.xlu0 %2237
      %v2239 = vsel %vm850, %v2212, 0.0
      %2240 = vadd.xlane.f32.xlu0 %v2239
      %v2241 = vpop.xlane.xlu0 %2240
      %v2242 = vmul.f32 %v2217, %v884
      %v2243 = vmul.f32 %v2220, %v884
      %v2244 = vmul.f32 %v2223, %v884
      %v2245 = vmul.f32 %v2226, %v884
      %v2246 = vmul.f32 %v2229, %v884
      %v2247 = vmul.f32 %v2232, %v884
      %v2248 = vmul.f32 %v2235, %v884
      %v2249 = vmul.f32 %v2238, %v884
      %v2250 = vmul.f32 %v2241, %v884
      %v2251 = vsub.f32 %v2204, %v2242
      %v2252 = vsub.f32 %v2205, %v2243
      %v2253 = vsub.f32 %v2206, %v2244
      %v2254 = vsub.f32 %v2207, %v2245
      %v2255 = vsub.f32 %v2208, %v2246
      %v2256 = vsub.f32 %v2209, %v2247
      %v2257 = vsub.f32 %v2210, %v2248
      %v2258 = vsub.f32 %v2211, %v2249
      %v2259 = vsub.f32 %v2212, %v2250
      %v2260 = vmul.f32 %v2251, %v2251
      %v2261 = vmul.f32 %v2252, %v2252
      %v2262 = vmul.f32 %v2253, %v2253
      %v2263 = vmul.f32 %v2254, %v2254
      %v2264 = vmul.f32 %v2255, %v2255
      %v2265 = vmul.f32 %v2256, %v2256
      %v2266 = vmul.f32 %v2257, %v2257
      %v2267 = vmul.f32 %v2258, %v2258
      %v2268 = vmul.f32 %v2259, %v2259
      %v2269 = vsel %vm850, %v2260, 0.0
      %2270 = vadd.xlane.f32.xlu0 %v2269
      %v2271 = vpop.xlane.xlu0 %2270
      %v2272 = vsel %vm850, %v2261, 0.0
      %2273 = vadd.xlane.f32.xlu0 %v2272
      %v2274 = vpop.xlane.xlu0 %2273
      %v2275 = vsel %vm850, %v2262, 0.0
      %2276 = vadd.xlane.f32.xlu0 %v2275
      %v2277 = vpop.xlane.xlu0 %2276
      %v2278 = vsel %vm850, %v2263, 0.0
      %2279 = vadd.xlane.f32.xlu0 %v2278
      %v2280 = vpop.xlane.xlu0 %2279
      %v2281 = vsel %vm850, %v2264, 0.0
      %2282 = vadd.xlane.f32.xlu0 %v2281
      %v2283 = vpop.xlane.xlu0 %2282
      %v2284 = vsel %vm850, %v2265, 0.0
      %2285 = vadd.xlane.f32.xlu0 %v2284
      %v2286 = vpop.xlane.xlu0 %2285
      %v2287 = vsel %vm850, %v2266, 0.0
      %2288 = vadd.xlane.f32.xlu0 %v2287
      %v2289 = vpop.xlane.xlu0 %2288
      %v2290 = vsel %vm850, %v2267, 0.0
      %2291 = vadd.xlane.f32.xlu0 %v2290
      %v2292 = vpop.xlane.xlu0 %2291
      %v2293 = vsel %vm850, %v2268, 0.0
      %2294 = vadd.xlane.f32.xlu0 %v2293
      %v2295 = vpop.xlane.xlu0 %2294
      %v2296 = vmul.f32 %v2271, %v884
      %v2297 = vmul.f32 %v2274, %v884
      %v2298 = vmul.f32 %v2277, %v884
      %v2299 = vmul.f32 %v2280, %v884
      %v2300 = vmul.f32 %v2283, %v884
      %v2301 = vmul.f32 %v2286, %v884
      %v2302 = vmul.f32 %v2289, %v884
      %v2303 = vmul.f32 %v2292, %v884
      %v2304 = vmul.f32 %v2295, %v884
      %v2305 = vadd.f32 %v2296, 1e-05
      %v2306 = vadd.f32 %v2297, 1e-05
      %v2307 = vadd.f32 %v2298, 1e-05
      %v2308 = vadd.f32 %v2299, 1e-05
      %v2309 = vadd.f32 %v2300, 1e-05
      %v2310 = vadd.f32 %v2301, 1e-05
      %v2311 = vadd.f32 %v2302, 1e-05
      %v2312 = vadd.f32 %v2303, 1e-05
      %v2313 = vadd.f32 %v2304, 1e-05
      %v2314 = vrsqrt.pop %v2305
      %v2315 = vmul.f32 %v2314, %v2305
      %v2316 = vmul.f32 %v2315, %v2314
      %v2317 = vmul.f32 0.5, %v2316
      %v2318 = vsub.f32 1.5, %v2317
      %v2319 = vmul.f32 %v2314, %v2318
      %vm2320 = vweird.f32 %v2305
      %vm2321 = vweird.f32 %v2314
      %vm2322 = vmor %vm2320, %vm2321
      %v2323 = vsel %vm2322, %v2314, %v2319
      %v2324 = vrsqrt.pop %v2306
      %v2325 = vmul.f32 %v2324, %v2306
      %v2326 = vmul.f32 %v2325, %v2324
      %v2327 = vmul.f32 0.5, %v2326
      %v2328 = vsub.f32 1.5, %v2327
      %v2329 = vmul.f32 %v2324, %v2328
      %vm2330 = vweird.f32 %v2306
      %vm2331 = vweird.f32 %v2324
      %vm2332 = vmor %vm2330, %vm2331
      %v2333 = vsel %vm2332, %v2324, %v2329
      %v2334 = vrsqrt.pop %v2307
      %v2335 = vmul.f32 %v2334, %v2307
      %v2336 = vmul.f32 %v2335, %v2334
      %v2337 = vmul.f32 0.5, %v2336
      %v2338 = vsub.f32 1.5, %v2337
      %v2339 = vmul.f32 %v2334, %v2338
      %vm2340 = vweird.f32 %v2307
      %vm2341 = vweird.f32 %v2334
      %vm2342 = vmor %vm2340, %vm2341
      %v2343 = vsel %vm2342, %v2334, %v2339
      %v2344 = vrsqrt.pop %v2308
      %v2345 = vmul.f32 %v2344, %v2308
      %v2346 = vmul.f32 %v2345, %v2344
      %v2347 = vmul.f32 0.5, %v2346
      %v2348 = vsub.f32 1.5, %v2347
      %v2349 = vmul.f32 %v2344, %v2348
      %vm2350 = vweird.f32 %v2308
      %vm2351 = vweird.f32 %v2344
      %vm2352 = vmor %vm2350, %vm2351
      %v2353 = vsel %vm2352, %v2344, %v2349
      %v2354 = vrsqrt.pop %v2309
      %v2355 = vmul.f32 %v2354, %v2309
      %v2356 = vmul.f32 %v2355, %v2354
      %v2357 = vmul.f32 0.5, %v2356
      %v2358 = vsub.f32 1.5, %v2357
      %v2359 = vmul.f32 %v2354, %v2358
      %vm2360 = vweird.f32 %v2309
      %vm2361 = vweird.f32 %v2354
      %vm2362 = vmor %vm2360, %vm2361
      %v2363 = vsel %vm2362, %v2354, %v2359
      %v2364 = vrsqrt.pop %v2310
      %v2365 = vmul.f32 %v2364, %v2310
      %v2366 = vmul.f32 %v2365, %v2364
      %v2367 = vmul.f32 0.5, %v2366
      %v2368 = vsub.f32 1.5, %v2367
      %v2369 = vmul.f32 %v2364, %v2368
      %vm2370 = vweird.f32 %v2310
      %vm2371 = vweird.f32 %v2364
      %vm2372 = vmor %vm2370, %vm2371
      %v2373 = vsel %vm2372, %v2364, %v2369
      %v2374 = vrsqrt.pop %v2311
      %v2375 = vmul.f32 %v2374, %v2311
      %v2376 = vmul.f32 %v2375, %v2374
      %v2377 = vmul.f32 0.5, %v2376
      %v2378 = vsub.f32 1.5, %v2377
      %v2379 = vmul.f32 %v2374, %v2378
      %vm2380 = vweird.f32 %v2311
      %vm2381 = vweird.f32 %v2374
      %vm2382 = vmor %vm2380, %vm2381
      %v2383 = vsel %vm2382, %v2374, %v2379
      %v2384 = vrsqrt.pop %v2312
      %v2385 = vmul.f32 %v2384, %v2312
      %v2386 = vmul.f32 %v2385, %v2384
      %v2387 = vmul.f32 0.5, %v2386
      %v2388 = vsub.f32 1.5, %v2387
      %v2389 = vmul.f32 %v2384, %v2388
      %vm2390 = vweird.f32 %v2312
      %vm2391 = vweird.f32 %v2384
      %vm2392 = vmor %vm2390, %vm2391
      %v2393 = vsel %vm2392, %v2384, %v2389
      %v2394 = vrsqrt.pop %v2313
      %v2395 = vmul.f32 %v2394, %v2313
      %v2396 = vmul.f32 %v2395, %v2394
      %v2397 = vmul.f32 0.5, %v2396
      %v2398 = vsub.f32 1.5, %v2397
      %v2399 = vmul.f32 %v2394, %v2398
      %vm2400 = vweird.f32 %v2313
      %vm2401 = vweird.f32 %v2394
      %vm2402 = vmor %vm2400, %vm2401
      %v2403 = vsel %vm2402, %v2394, %v2399
      %v2404 = vmul.f32 %v2251, %v2323
      %v2405 = vmul.f32 %v2252, %v2333
      %v2406 = vmul.f32 %v2253, %v2343
      %v2407 = vmul.f32 %v2254, %v2353
      %v2408 = vmul.f32 %v2255, %v2363
      %v2409 = vmul.f32 %v2256, %v2373
      %v2410 = vmul.f32 %v2257, %v2383
      %v2411 = vmul.f32 %v2258, %v2393
      %v2412 = vmul.f32 %v2259, %v2403
      %v2413 = vperm.slane %v2213, 0
      %v2414 = vmul.f32 %v2404, %v2413
      %v2415 = vmul.f32 %v2405, %v2413
      %v2416 = vmul.f32 %v2406, %v2413
      %v2417 = vmul.f32 %v2407, %v2413
      %v2418 = vmul.f32 %v2408, %v2413
      %v2419 = vmul.f32 %v2409, %v2413
      %v2420 = vmul.f32 %v2410, %v2413
      %v2421 = vmul.f32 %v2411, %v2413
      %v2422 = vmul.f32 %v2412, %v2413
      %v2423 = vperm.slane %v2214, 0
      %v2424 = vadd.f32 %v2414, %v2423
      %v2425 = vadd.f32 %v2415, %v2423
      %v2426 = vadd.f32 %v2416, %v2423
      %v2427 = vadd.f32 %v2417, %v2423
      %v2428 = vadd.f32 %v2418, %v2423
      %v2429 = vadd.f32 %v2419, %v2423
      %v2430 = vadd.f32 %v2420, %v2423
      %v2431 = vadd.f32 %v2421, %v2423
      %v2432 = vadd.f32 %v2422, %v2423
      %v2433 = vpack.c.bf16 %v2425, %v2424
      %v2434 = vpack.c.bf16 %v2427, %v2426
      %v2435 = vpack.c.bf16 %v2429, %v2428
      %v2436 = vpack.c.bf16 %v2431, %v2430
      %v2437 = vpack.c.bf16 %v2432, %v2432
      %s2438 = scalar_lea.vmem %s608, 64
      %v2439 = vld [vmem:[%s2438] sm:$0xf]
      %v2440 = vld [vmem:[%s2438 + $0x4] sm:$0xf]
      %v2441 = vld [vmem:[%s2438 + $0x8] sm:$0xf]
      %v2442 = vld [vmem:[%s2438 + $0xc] sm:$0x7]
      %v2443 = vld [vmem:[%s623 + $0xb] sm:$0x1]
      %v2444 = vperm.slane %v2443, 0
      %v2449 = vunpack.c.l.b16 %v2439
      %v2450 = vunpack.c.l.b16 %v2440
      %v2451 = vunpack.c.l.b16 %v2441
      %v2452 = vunpack.c.l.b16 %v2442
      %v2453 = vpack.c.b16 %v2450, %v2449
      %v2454 = vpack.c.b16 %v2452, %v2451
      %v2457 = vsel %vm850, %v2433, 0
      %v2460 = vsel %vm850, %v2434, 0
      %v2463 = vsel %vm850, %v2435, 0
      %v2466 = vsel %vm850, %v2436, 0
      %v2469 = vsel %vm850, %v2437, 0
      %v2472 = vsel %vm1113, %v2454, 0
      %2474 = vmatpush.bf16.msra.mxu0 0
      %2475 = vmatpush.bf16.msra.mxu0 0
      %2476 = vmatpush.bf16.msra.mxu0 0
      %2477 = vmatpush.bf16.msra.mxu0 0
      %2478 = vmatpush.bf16.msra.mxu0 0
      %2479 = vmatpush.bf16.msra.mxu0 0
      %2480 = vmatpush.bf16.msra.mxu0 %v2472
      %2481 = vmatpush.bf16.msra.mxu0 %v2453
      %2482 = vmatmul.bf16.gmra.mxu0 %v2457
      %v2483 = vpop.f32.mrf.mxu0
      %v2484 = vadd.f32 %v2444, %v2483
      %v2485 = vpop.f32.mrf.mxu0
      %v2486 = vadd.f32 %v2444, %v2485
      %2487 = vmatmul.bf16.gmra.mxu0 %v2460
      %v2488 = vpop.f32.mrf.mxu0
      %v2489 = vadd.f32 %v2444, %v2488
      %v2490 = vpop.f32.mrf.mxu0
      %v2491 = vadd.f32 %v2444, %v2490
      %2492 = vmatmul.bf16.gmra.mxu0 %v2463
      %v2493 = vpop.f32.mrf.mxu0
      %v2494 = vadd.f32 %v2444, %v2493
      %v2495 = vpop.f32.mrf.mxu0
      %v2496 = vadd.f32 %v2444, %v2495
      %2497 = vmatmul.bf16.gmra.mxu0 %v2466
      %v2498 = vpop.f32.mrf.mxu0
      %v2499 = vadd.f32 %v2444, %v2498
      %v2500 = vpop.f32.mrf.mxu0
      %v2501 = vadd.f32 %v2444, %v2500
      %2502 = vmatmul.bf16.gmra.mxu0 %v2469
      %v2503 = vpop.f32.mrf.mxu0
      %v2504 = vadd.f32 %v2444, %v2503
      %v2505 = vpop.f32.mrf.mxu0
      %2506 = vdwg.mxu0
      %s2507 = scalar_lea.vmem %s608, 80
      %v2508 = vld [vmem:[%s2507] sm:$0xf]
      %v2509 = vld [vmem:[%s2507 + $0x4] sm:$0xf]
      %v2510 = vld [vmem:[%s2507 + $0x8] sm:$0xf]
      %v2511 = vld [vmem:[%s2507 + $0xc] sm:$0x7]
      %v2512 = vld [vmem:[%s623 + $0xc] sm:$0x1]
      %v2513 = vperm.slane %v2512, 0
      %v2518 = vunpack.c.l.b16 %v2508
      %v2519 = vunpack.c.l.b16 %v2509
      %v2520 = vunpack.c.l.b16 %v2510
      %v2521 = vunpack.c.l.b16 %v2511
      %v2522 = vpack.c.b16 %v2519, %v2518
      %v2523 = vpack.c.b16 %v2521, %v2520
      %v2526 = vsel %vm1113, %v2523, 0
      %2528 = vmatpush.bf16.msra.mxu0 0
      %2529 = vmatpush.bf16.msra.mxu0 0
      %2530 = vmatpush.bf16.msra.mxu0 0
      %2531 = vmatpush.bf16.msra.mxu0 0
      %2532 = vmatpush.bf16.msra.mxu0 0
      %2533 = vmatpush.bf16.msra.mxu0 0
      %2534 = vmatpush.bf16.msra.mxu0 %v2526
      %2535 = vmatpush.bf16.msra.mxu0 %v2522
      %2536 = vmatmul.bf16.gmra.mxu0 %v2457
      %v2537 = vpop.f32.mrf.mxu0
      %v2538 = vadd.f32 %v2513, %v2537
      %v2539 = vpop.f32.mrf.mxu0
      %v2540 = vadd.f32 %v2513, %v2539
      %2541 = vmatmul.bf16.gmra.mxu0 %v2460
      %v2542 = vpop.f32.mrf.mxu0
      %v2543 = vadd.f32 %v2513, %v2542
      %v2544 = vpop.f32.mrf.mxu0
      %v2545 = vadd.f32 %v2513, %v2544
      %2546 = vmatmul.bf16.gmra.mxu0 %v2463
      %v2547 = vpop.f32.mrf.mxu0
      %v2548 = vadd.f32 %v2513, %v2547
      %v2549 = vpop.f32.mrf.mxu0
      %v2550 = vadd.f32 %v2513, %v2549
      %2551 = vmatmul.bf16.gmra.mxu0 %v2466
      %v2552 = vpop.f32.mrf.mxu0
      %v2553 = vadd.f32 %v2513, %v2552
      %v2554 = vpop.f32.mrf.mxu0
      %v2555 = vadd.f32 %v2513, %v2554
      %2556 = vmatmul.bf16.gmra.mxu0 %v2469
      %v2557 = vpop.f32.mrf.mxu0
      %v2558 = vadd.f32 %v2513, %v2557
      %v2559 = vpop.f32.mrf.mxu0
      %2560 = vdwg.mxu0
      %v2561 = vxor.u32 %v2538, 2147483648
      %v2562 = vxor.u32 %v2540, 2147483648
      %v2563 = vxor.u32 %v2543, 2147483648
      %v2564 = vxor.u32 %v2545, 2147483648
      %v2565 = vxor.u32 %v2548, 2147483648
      %v2566 = vxor.u32 %v2550, 2147483648
      %v2567 = vxor.u32 %v2553, 2147483648
      %v2568 = vxor.u32 %v2555, 2147483648
      %v2569 = vxor.u32 %v2558, 2147483648
      %v2570 = vmul.f32 %v2561, 1.442695
      %v2571 = vpow.pop %v2570
      %v2572 = vmul.f32 %v2562, 1.442695
      %v2573 = vpow.pop %v2572
      %v2574 = vmul.f32 %v2563, 1.442695
      %v2575 = vpow.pop %v2574
      %v2576 = vmul.f32 %v2564, 1.442695
      %v2577 = vpow.pop %v2576
      %v2578 = vmul.f32 %v2565, 1.442695
      %v2579 = vpow.pop %v2578
      %v2580 = vmul.f32 %v2566, 1.442695
      %v2581 = vpow.pop %v2580
      %v2582 = vmul.f32 %v2567, 1.442695
      %v2583 = vpow.pop %v2582
      %v2584 = vmul.f32 %v2568, 1.442695
      %v2585 = vpow.pop %v2584
      %v2586 = vmul.f32 %v2569, 1.442695
      %v2587 = vpow.pop %v2586
      %v2588 = vadd.f32 %v2571, 1.0
      %v2589 = vadd.f32 %v2573, 1.0
      %v2590 = vadd.f32 %v2575, 1.0
      %v2591 = vadd.f32 %v2577, 1.0
      %v2592 = vadd.f32 %v2579, 1.0
      %v2593 = vadd.f32 %v2581, 1.0
      %v2594 = vadd.f32 %v2583, 1.0
      %v2595 = vadd.f32 %v2585, 1.0
      %v2596 = vadd.f32 %v2587, 1.0
      %v2597 = vrcp.pop %v2588
      %v2598 = vmul.f32 %v2588, %v2597
      %v2599 = vsub.f32 1.0, %v2598
      %v2600 = vmul.f32 %v2597, %v2599
      %v2601 = vadd.f32 %v2597, %v2600
      %vm2602 = vweird.f32 %v2588
      %vm2603 = vweird.f32 %v2597
      %vm2604 = vmor %vm2602, %vm2603
      %v2605 = vsel %vm2604, %v2597, %v2601
      %v2606 = vand.u32 2147483647, %v2588
      %vm2607 = vcmp.eq.f32.partialorder %v2606, 8.507059e+37
      %v2608 = vand.u32 %v2588, 2147483648
      %v2609 = vor.u32 1.1754944e-38, %v2608
      %v2610 = vsel %vm2607, %v2609, %v2605
      %v2611 = vmul.f32 1.0, %v2610
      %v2612 = vrcp.pop %v2589
      %v2613 = vmul.f32 %v2589, %v2612
      %v2614 = vsub.f32 1.0, %v2613
      %v2615 = vmul.f32 %v2612, %v2614
      %v2616 = vadd.f32 %v2612, %v2615
      %vm2617 = vweird.f32 %v2589
      %vm2618 = vweird.f32 %v2612
      %vm2619 = vmor %vm2617, %vm2618
      %v2620 = vsel %vm2619, %v2612, %v2616
      %v2621 = vand.u32 2147483647, %v2589
      %vm2622 = vcmp.eq.f32.partialorder %v2621, 8.507059e+37
      %v2623 = vand.u32 %v2589, 2147483648
      %v2624 = vor.u32 1.1754944e-38, %v2623
      %v2625 = vsel %vm2622, %v2624, %v2620
      %v2626 = vmul.f32 1.0, %v2625
      %v2627 = vrcp.pop %v2590
      %v2628 = vmul.f32 %v2590, %v2627
      %v2629 = vsub.f32 1.0, %v2628
      %v2630 = vmul.f32 %v2627, %v2629
      %v2631 = vadd.f32 %v2627, %v2630
      %vm2632 = vweird.f32 %v2590
      %vm2633 = vweird.f32 %v2627
      %vm2634 = vmor %vm2632, %vm2633
      %v2635 = vsel %vm2634, %v2627, %v2631
      %v2636 = vand.u32 2147483647, %v2590
      %vm2637 = vcmp.eq.f32.partialorder %v2636, 8.507059e+37
      %v2638 = vand.u32 %v2590, 2147483648
      %v2639 = vor.u32 1.1754944e-38, %v2638
      %v2640 = vsel %vm2637, %v2639, %v2635
      %v2641 = vmul.f32 1.0, %v2640
      %v2642 = vrcp.pop %v2591
      %v2643 = vmul.f32 %v2591, %v2642
      %v2644 = vsub.f32 1.0, %v2643
      %v2645 = vmul.f32 %v2642, %v2644
      %v2646 = vadd.f32 %v2642, %v2645
      %vm2647 = vweird.f32 %v2591
      %vm2648 = vweird.f32 %v2642
      %vm2649 = vmor %vm2647, %vm2648
      %v2650 = vsel %vm2649, %v2642, %v2646
      %v2651 = vand.u32 2147483647, %v2591
      %vm2652 = vcmp.eq.f32.partialorder %v2651, 8.507059e+37
      %v2653 = vand.u32 %v2591, 2147483648
      %v2654 = vor.u32 1.1754944e-38, %v2653
      %v2655 = vsel %vm2652, %v2654, %v2650
      %v2656 = vmul.f32 1.0, %v2655
      %v2657 = vrcp.pop %v2592
      %v2658 = vmul.f32 %v2592, %v2657
      %v2659 = vsub.f32 1.0, %v2658
      %v2660 = vmul.f32 %v2657, %v2659
      %v2661 = vadd.f32 %v2657, %v2660
      %vm2662 = vweird.f32 %v2592
      %vm2663 = vweird.f32 %v2657
      %vm2664 = vmor %vm2662, %vm2663
      %v2665 = vsel %vm2664, %v2657, %v2661
      %v2666 = vand.u32 2147483647, %v2592
      %vm2667 = vcmp.eq.f32.partialorder %v2666, 8.507059e+37
      %v2668 = vand.u32 %v2592, 2147483648
      %v2669 = vor.u32 1.1754944e-38, %v2668
      %v2670 = vsel %vm2667, %v2669, %v2665
      %v2671 = vmul.f32 1.0, %v2670
      %v2672 = vrcp.pop %v2593
      %v2673 = vmul.f32 %v2593, %v2672
      %v2674 = vsub.f32 1.0, %v2673
      %v2675 = vmul.f32 %v2672, %v2674
      %v2676 = vadd.f32 %v2672, %v2675
      %vm2677 = vweird.f32 %v2593
      %vm2678 = vweird.f32 %v2672
      %vm2679 = vmor %vm2677, %vm2678
      %v2680 = vsel %vm2679, %v2672, %v2676
      %v2681 = vand.u32 2147483647, %v2593
      %vm2682 = vcmp.eq.f32.partialorder %v2681, 8.507059e+37
      %v2683 = vand.u32 %v2593, 2147483648
      %v2684 = vor.u32 1.1754944e-38, %v2683
      %v2685 = vsel %vm2682, %v2684, %v2680
      %v2686 = vmul.f32 1.0, %v2685
      %v2687 = vrcp.pop %v2594
      %v2688 = vmul.f32 %v2594, %v2687
      %v2689 = vsub.f32 1.0, %v2688
      %v2690 = vmul.f32 %v2687, %v2689
      %v2691 = vadd.f32 %v2687, %v2690
      %vm2692 = vweird.f32 %v2594
      %vm2693 = vweird.f32 %v2687
      %vm2694 = vmor %vm2692, %vm2693
      %v2695 = vsel %vm2694, %v2687, %v2691
      %v2696 = vand.u32 2147483647, %v2594
      %vm2697 = vcmp.eq.f32.partialorder %v2696, 8.507059e+37
      %v2698 = vand.u32 %v2594, 2147483648
      %v2699 = vor.u32 1.1754944e-38, %v2698
      %v2700 = vsel %vm2697, %v2699, %v2695
      %v2701 = vmul.f32 1.0, %v2700
      %v2702 = vrcp.pop %v2595
      %v2703 = vmul.f32 %v2595, %v2702
      %v2704 = vsub.f32 1.0, %v2703
      %v2705 = vmul.f32 %v2702, %v2704
      %v2706 = vadd.f32 %v2702, %v2705
      %vm2707 = vweird.f32 %v2595
      %vm2708 = vweird.f32 %v2702
      %vm2709 = vmor %vm2707, %vm2708
      %v2710 = vsel %vm2709, %v2702, %v2706
      %v2711 = vand.u32 2147483647, %v2595
      %vm2712 = vcmp.eq.f32.partialorder %v2711, 8.507059e+37
      %v2713 = vand.u32 %v2595, 2147483648
      %v2714 = vor.u32 1.1754944e-38, %v2713
      %v2715 = vsel %vm2712, %v2714, %v2710
      %v2716 = vmul.f32 1.0, %v2715
      %v2717 = vrcp.pop %v2596
      %v2718 = vmul.f32 %v2596, %v2717
      %v2719 = vsub.f32 1.0, %v2718
      %v2720 = vmul.f32 %v2717, %v2719
      %v2721 = vadd.f32 %v2717, %v2720
      %vm2722 = vweird.f32 %v2596
      %vm2723 = vweird.f32 %v2717
      %vm2724 = vmor %vm2722, %vm2723
      %v2725 = vsel %vm2724, %v2717, %v2721
      %v2726 = vand.u32 2147483647, %v2596
      %vm2727 = vcmp.eq.f32.partialorder %v2726, 8.507059e+37
      %v2728 = vand.u32 %v2596, 2147483648
      %v2729 = vor.u32 1.1754944e-38, %v2728
      %v2730 = vsel %vm2727, %v2729, %v2725
      %v2731 = vmul.f32 1.0, %v2730
      %v2732 = vmul.f32 %v2484, %v2611
      %v2733 = vmul.f32 %v2486, %v2626
      %v2734 = vmul.f32 %v2489, %v2641
      %v2735 = vmul.f32 %v2491, %v2656
      %v2736 = vmul.f32 %v2494, %v2671
      %v2737 = vmul.f32 %v2496, %v2686
      %v2738 = vmul.f32 %v2499, %v2701
      %v2739 = vmul.f32 %v2501, %v2716
      %v2740 = vmul.f32 %v2504, %v2731
      %v2741 = vrot.slane %v2732, 5
      %v2742 = vrot.slane %v2733, 5
      %v2743 = vrot.slane %v2734, 5
      %v2744 = vrot.slane %v2735, 5
      %v2745 = vrot.slane %v2736, 5
      %v2746 = vrot.slane %v2737, 5
      %v2747 = vrot.slane %v2738, 5
      %v2748 = vrot.slane %v2739, 5
      %v2749 = vrot.slane %v2740, 5
      %v2750 = vlaneseq
      %v2751 = vshrl.u32 %v2750, 7
      %vm2752 = vcmp.lt.s32.totalorder %v2751, 3
      %v2753 = vsel %vm2752, %v2748, %v2749
      %v2754 = vsel %vm2752, %v2747, %v2748
      %v2755 = vsel %vm2752, %v2746, %v2747
      %v2756 = vsel %vm2752, %v2745, %v2746
      %v2757 = vsel %vm2752, %v2744, %v2745
      %v2758 = vsel %vm2752, %v2743, %v2744
      %v2759 = vsel %vm2752, %v2742, %v2743
      %v2760 = vsel %vm2752, %v2741, %v2742
      %v2761 = vsel %vm2752, %v2749, %v2741
      %v2762 = vld [vmem:[%s5] sm:$0xff]
      %v2763 = vld [vmem:[%s5 + $0x8] sm:$0xff]
      %v2764 = vld [vmem:[%s5 + $0x10] sm:$0xff]
      %v2765 = vld [vmem:[%s5 + $0x18] sm:$0xff]
      %v2766 = vld [vmem:[%s5 + $0x20] sm:$0xff]
      %v2767 = vld [vmem:[%s5 + $0x28] sm:$0xff]
      %v2768 = vld [vmem:[%s5 + $0x30] sm:$0xff]
      %v2769 = vld [vmem:[%s5 + $0x38] sm:$0xff]
      %v2770 = vld [vmem:[%s5 + $0x40] sm:$0xff]
      %v2771 = vld [vmem:[%s631] sm:$0x1]
      %2773 = vset.pattern.permute.xlu0 0
      %2774 = vperm.xlu0 %2773, %v2762
      %v2775 = vpop.permute.xlu0 %2774
      %2778 = vset.pattern.permute.xlu0 0
      %2779 = vperm.xlu0 %2778, %v2763
      %v2780 = vpop.permute.xlu0 %2779
      %2783 = vset.pattern.permute.xlu0 0
      %2784 = vperm.xlu0 %2783, %v2764
      %v2785 = vpop.permute.xlu0 %2784
      %2788 = vset.pattern.permute.xlu0 0
      %2789 = vperm.xlu0 %2788, %v2765
      %v2790 = vpop.permute.xlu0 %2789
      %2793 = vset.pattern.permute.xlu0 0
      %2794 = vperm.xlu0 %2793, %v2766
      %v2795 = vpop.permute.xlu0 %2794
      %2798 = vset.pattern.permute.xlu0 0
      %2799 = vperm.xlu0 %2798, %v2767
      %v2800 = vpop.permute.xlu0 %2799
      %2803 = vset.pattern.permute.xlu0 0
      %2804 = vperm.xlu0 %2803, %v2768
      %v2805 = vpop.permute.xlu0 %2804
      %2808 = vset.pattern.permute.xlu0 0
      %2809 = vperm.xlu0 %2808, %v2769
      %v2810 = vpop.permute.xlu0 %2809
      %2813 = vset.pattern.permute.xlu0 0
      %2814 = vperm.xlu0 %2813, %v2770
      %v2815 = vpop.permute.xlu0 %2814
      %v2817 = vperm.slane %v2771, 0
      %v2818 = vmul.f32 %v2775, %v2817
      %v2819 = vmul.f32 %v2780, %v2817
      %v2820 = vmul.f32 %v2785, %v2817
      %v2821 = vmul.f32 %v2790, %v2817
      %v2822 = vmul.f32 %v2795, %v2817
      %v2823 = vmul.f32 %v2800, %v2817
      %v2824 = vmul.f32 %v2805, %v2817
      %v2825 = vmul.f32 %v2810, %v2817
      %v2826 = vmul.f32 %v2815, %v2817
      %v2827 = vmul.f32 %v2761, %v2818
      %v2828 = vmul.f32 %v2760, %v2819
      %v2829 = vmul.f32 %v2759, %v2820
      %v2830 = vmul.f32 %v2758, %v2821
      %v2831 = vmul.f32 %v2757, %v2822
      %v2832 = vmul.f32 %v2756, %v2823
      %v2833 = vmul.f32 %v2755, %v2824
      %v2834 = vmul.f32 %v2754, %v2825
      %v2835 = vmul.f32 %v2753, %v2826
      %v2836 = vadd.f32 %v2827, 0.0
      %v2837 = vadd.f32 %v2828, 0.0
      %v2838 = vadd.f32 %v2829, 0.0
      %v2839 = vadd.f32 %v2830, 0.0
      %v2840 = vadd.f32 %v2831, 0.0
      %v2841 = vadd.f32 %v2832, 0.0
      %v2842 = vadd.f32 %v2833, 0.0
      %v2843 = vadd.f32 %v2834, 0.0
      %v2844 = vadd.f32 %v2835, 0.0
      %v2845 = vrot.slane %v2732, 6
      %v2846 = vrot.slane %v2733, 6
      %v2847 = vrot.slane %v2734, 6
      %v2848 = vrot.slane %v2735, 6
      %v2849 = vrot.slane %v2736, 6
      %v2850 = vrot.slane %v2737, 6
      %v2851 = vrot.slane %v2738, 6
      %v2852 = vrot.slane %v2739, 6
      %v2853 = vrot.slane %v2740, 6
      %vm2854 = vcmp.lt.s32.totalorder %v2751, 2
      %v2855 = vsel %vm2854, %v2852, %v2853
      %v2856 = vsel %vm2854, %v2851, %v2852
      %v2857 = vsel %vm2854, %v2850, %v2851
      %v2858 = vsel %vm2854, %v2849, %v2850
      %v2859 = vsel %vm2854, %v2848, %v2849
      %v2860 = vsel %vm2854, %v2847, %v2848
      %v2861 = vsel %vm2854, %v2846, %v2847
      %v2862 = vsel %vm2854, %v2845, %v2846
      %v2863 = vsel %vm2854, %v2853, %v2845
      %s2864 = scalar_lea.vmem %s5, 72
      %v2865 = vld [vmem:[%s2864] sm:$0xff]
      %v2866 = vld [vmem:[%s2864 + $0x8] sm:$0xff]
      %v2867 = vld [vmem:[%s2864 + $0x10] sm:$0xff]
      %v2868 = vld [vmem:[%s2864 + $0x18] sm:$0xff]
      %v2869 = vld [vmem:[%s2864 + $0x20] sm:$0xff]
      %v2870 = vld [vmem:[%s2864 + $0x28] sm:$0xff]
      %v2871 = vld [vmem:[%s2864 + $0x30] sm:$0xff]
      %v2872 = vld [vmem:[%s2864 + $0x38] sm:$0xff]
      %v2873 = vld [vmem:[%s2864 + $0x40] sm:$0xff]
      %v2874 = vld [vmem:[%s631 + $0x1] sm:$0x1]
      %2876 = vset.pattern.permute.xlu0 0
      %2877 = vperm.xlu0 %2876, %v2865
      %v2878 = vpop.permute.xlu0 %2877
      %2881 = vset.pattern.permute.xlu0 0
      %2882 = vperm.xlu0 %2881, %v2866
      %v2883 = vpop.permute.xlu0 %2882
      %2886 = vset.pattern.permute.xlu0 0
      %2887 = vperm.xlu0 %2886, %v2867
      %v2888 = vpop.permute.xlu0 %2887
      %2891 = vset.pattern.permute.xlu0 0
      %2892 = vperm.xlu0 %2891, %v2868
      %v2893 = vpop.permute.xlu0 %2892
      %2896 = vset.pattern.permute.xlu0 0
      %2897 = vperm.xlu0 %2896, %v2869
      %v2898 = vpop.permute.xlu0 %2897
      %2901 = vset.pattern.permute.xlu0 0
      %2902 = vperm.xlu0 %2901, %v2870
      %v2903 = vpop.permute.xlu0 %2902
      %2906 = vset.pattern.permute.xlu0 0
      %2907 = vperm.xlu0 %2906, %v2871
      %v2908 = vpop.permute.xlu0 %2907
      %2911 = vset.pattern.permute.xlu0 0
      %2912 = vperm.xlu0 %2911, %v2872
      %v2913 = vpop.permute.xlu0 %2912
      %2916 = vset.pattern.permute.xlu0 0
      %2917 = vperm.xlu0 %2916, %v2873
      %v2918 = vpop.permute.xlu0 %2917
      %v2920 = vperm.slane %v2874, 0
      %v2921 = vmul.f32 %v2878, %v2920
      %v2922 = vmul.f32 %v2883, %v2920
      %v2923 = vmul.f32 %v2888, %v2920
      %v2924 = vmul.f32 %v2893, %v2920
      %v2925 = vmul.f32 %v2898, %v2920
      %v2926 = vmul.f32 %v2903, %v2920
      %v2927 = vmul.f32 %v2908, %v2920
      %v2928 = vmul.f32 %v2913, %v2920
      %v2929 = vmul.f32 %v2918, %v2920
      %v2930 = vmul.f32 %v2863, %v2921
      %v2931 = vmul.f32 %v2862, %v2922
      %v2932 = vmul.f32 %v2861, %v2923
      %v2933 = vmul.f32 %v2860, %v2924
      %v2934 = vmul.f32 %v2859, %v2925
      %v2935 = vmul.f32 %v2858, %v2926
      %v2936 = vmul.f32 %v2857, %v2927
      %v2937 = vmul.f32 %v2856, %v2928
      %v2938 = vmul.f32 %v2855, %v2929
      %v2939 = vadd.f32 %v2836, %v2930
      %v2940 = vadd.f32 %v2837, %v2931
      %v2941 = vadd.f32 %v2838, %v2932
      %v2942 = vadd.f32 %v2839, %v2933
      %v2943 = vadd.f32 %v2840, %v2934
      %v2944 = vadd.f32 %v2841, %v2935
      %v2945 = vadd.f32 %v2842, %v2936
      %v2946 = vadd.f32 %v2843, %v2937
      %v2947 = vadd.f32 %v2844, %v2938
      %v2948 = vrot.slane %v2732, 7
      %v2949 = vrot.slane %v2733, 7
      %v2950 = vrot.slane %v2734, 7
      %v2951 = vrot.slane %v2735, 7
      %v2952 = vrot.slane %v2736, 7
      %v2953 = vrot.slane %v2737, 7
      %v2954 = vrot.slane %v2738, 7
      %v2955 = vrot.slane %v2739, 7
      %v2956 = vrot.slane %v2740, 7
      %vm2957 = vcmp.lt.s32.totalorder %v2751, 1
      %v2958 = vsel %vm2957, %v2955, %v2956
      %v2959 = vsel %vm2957, %v2954, %v2955
      %v2960 = vsel %vm2957, %v2953, %v2954
      %v2961 = vsel %vm2957, %v2952, %v2953
      %v2962 = vsel %vm2957, %v2951, %v2952
      %v2963 = vsel %vm2957, %v2950, %v2951
      %v2964 = vsel %vm2957, %v2949, %v2950
      %v2965 = vsel %vm2957, %v2948, %v2949
      %v2966 = vsel %vm2957, %v2956, %v2948
      %s2967 = scalar_lea.vmem %s5, 144
      %v2968 = vld [vmem:[%s2967] sm:$0xff]
      %v2969 = vld [vmem:[%s2967 + $0x8] sm:$0xff]
      %v2970 = vld [vmem:[%s2967 + $0x10] sm:$0xff]
      %v2971 = vld [vmem:[%s2967 + $0x18] sm:$0xff]
      %v2972 = vld [vmem:[%s2967 + $0x20] sm:$0xff]
      %v2973 = vld [vmem:[%s2967 + $0x28] sm:$0xff]
      %v2974 = vld [vmem:[%s2967 + $0x30] sm:$0xff]
      %v2975 = vld [vmem:[%s2967 + $0x38] sm:$0xff]
      %v2976 = vld [vmem:[%s2967 + $0x40] sm:$0xff]
      %v2977 = vld [vmem:[%s631 + $0x2] sm:$0x1]
      %2979 = vset.pattern.permute.xlu0 0
      %2980 = vperm.xlu0 %2979, %v2968
      %v2981 = vpop.permute.xlu0 %2980
      %2984 = vset.pattern.permute.xlu0 0
      %2985 = vperm.xlu0 %2984, %v2969
      %v2986 = vpop.permute.xlu0 %2985
      %2989 = vset.pattern.permute.xlu0 0
      %2990 = vperm.xlu0 %2989, %v2970
      %v2991 = vpop.permute.xlu0 %2990
      %2994 = vset.pattern.permute.xlu0 0
      %2995 = vperm.xlu0 %2994, %v2971
      %v2996 = vpop.permute.xlu0 %2995
      %2999 = vset.pattern.permute.xlu0 0
      %3000 = vperm.xlu0 %2999, %v2972
      %v3001 = vpop.permute.xlu0 %3000
      %3004 = vset.pattern.permute.xlu0 0
      %3005 = vperm.xlu0 %3004, %v2973
      %v3006 = vpop.permute.xlu0 %3005
      %3009 = vset.pattern.permute.xlu0 0
      %3010 = vperm.xlu0 %3009, %v2974
      %v3011 = vpop.permute.xlu0 %3010
      %3014 = vset.pattern.permute.xlu0 0
      %3015 = vperm.xlu0 %3014, %v2975
      %v3016 = vpop.permute.xlu0 %3015
      %3019 = vset.pattern.permute.xlu0 0
      %3020 = vperm.xlu0 %3019, %v2976
      %v3021 = vpop.permute.xlu0 %3020
      %v3023 = vperm.slane %v2977, 0
      %v3024 = vmul.f32 %v2981, %v3023
      %v3025 = vmul.f32 %v2986, %v3023
      %v3026 = vmul.f32 %v2991, %v3023
      %v3027 = vmul.f32 %v2996, %v3023
      %v3028 = vmul.f32 %v3001, %v3023
      %v3029 = vmul.f32 %v3006, %v3023
      %v3030 = vmul.f32 %v3011, %v3023
      %v3031 = vmul.f32 %v3016, %v3023
      %v3032 = vmul.f32 %v3021, %v3023
      %v3033 = vmul.f32 %v2966, %v3024
      %v3034 = vmul.f32 %v2965, %v3025
      %v3035 = vmul.f32 %v2964, %v3026
      %v3036 = vmul.f32 %v2963, %v3027
      %v3037 = vmul.f32 %v2962, %v3028
      %v3038 = vmul.f32 %v2961, %v3029
      %v3039 = vmul.f32 %v2960, %v3030
      %v3040 = vmul.f32 %v2959, %v3031
      %v3041 = vmul.f32 %v2958, %v3032
      %v3042 = vadd.f32 %v2939, %v3033
      %v3043 = vadd.f32 %v2940, %v3034
      %v3044 = vadd.f32 %v2941, %v3035
      %v3045 = vadd.f32 %v2942, %v3036
      %v3046 = vadd.f32 %v2943, %v3037
      %v3047 = vadd.f32 %v2944, %v3038
      %v3048 = vadd.f32 %v2945, %v3039
      %v3049 = vadd.f32 %v2946, %v3040
      %v3050 = vadd.f32 %v2947, %v3041
      %s3051 = scalar_lea.vmem %s5, 216
      %v3052 = vld [vmem:[%s3051] sm:$0xff]
      %v3053 = vld [vmem:[%s3051 + $0x8] sm:$0xff]
      %v3054 = vld [vmem:[%s3051 + $0x10] sm:$0xff]
      %v3055 = vld [vmem:[%s3051 + $0x18] sm:$0xff]
      %v3056 = vld [vmem:[%s3051 + $0x20] sm:$0xff]
      %v3057 = vld [vmem:[%s3051 + $0x28] sm:$0xff]
      %v3058 = vld [vmem:[%s3051 + $0x30] sm:$0xff]
      %v3059 = vld [vmem:[%s3051 + $0x38] sm:$0xff]
      %v3060 = vld [vmem:[%s3051 + $0x40] sm:$0xff]
      %v3061 = vld [vmem:[%s631 + $0x3] sm:$0x1]
      %3063 = vset.pattern.permute.xlu0 0
      %3064 = vperm.xlu0 %3063, %v3052
      %v3065 = vpop.permute.xlu0 %3064
      %3068 = vset.pattern.permute.xlu0 0
      %3069 = vperm.xlu0 %3068, %v3053
      %v3070 = vpop.permute.xlu0 %3069
      %3073 = vset.pattern.permute.xlu0 0
      %3074 = vperm.xlu0 %3073, %v3054
      %v3075 = vpop.permute.xlu0 %3074
      %3078 = vset.pattern.permute.xlu0 0
      %3079 = vperm.xlu0 %3078, %v3055
      %v3080 = vpop.permute.xlu0 %3079
      %3083 = vset.pattern.permute.xlu0 0
      %3084 = vperm.xlu0 %3083, %v3056
      %v3085 = vpop.permute.xlu0 %3084
      %3088 = vset.pattern.permute.xlu0 0
      %3089 = vperm.xlu0 %3088, %v3057
      %v3090 = vpop.permute.xlu0 %3089
      %3093 = vset.pattern.permute.xlu0 0
      %3094 = vperm.xlu0 %3093, %v3058
      %v3095 = vpop.permute.xlu0 %3094
      %3098 = vset.pattern.permute.xlu0 0
      %3099 = vperm.xlu0 %3098, %v3059
      %v3100 = vpop.permute.xlu0 %3099
      %3103 = vset.pattern.permute.xlu0 0
      %3104 = vperm.xlu0 %3103, %v3060
      %v3105 = vpop.permute.xlu0 %3104
      %v3107 = vperm.slane %v3061, 0
      %v3108 = vmul.f32 %v3065, %v3107
      %v3109 = vmul.f32 %v3070, %v3107
      %v3110 = vmul.f32 %v3075, %v3107
      %v3111 = vmul.f32 %v3080, %v3107
      %v3112 = vmul.f32 %v3085, %v3107
      %v3113 = vmul.f32 %v3090, %v3107
      %v3114 = vmul.f32 %v3095, %v3107
      %v3115 = vmul.f32 %v3100, %v3107
      %v3116 = vmul.f32 %v3105, %v3107
      %v3117 = vmul.f32 %v2732, %v3108
      %v3118 = vmul.f32 %v2733, %v3109
      %v3119 = vmul.f32 %v2734, %v3110
      %v3120 = vmul.f32 %v2735, %v3111
      %v3121 = vmul.f32 %v2736, %v3112
      %v3122 = vmul.f32 %v2737, %v3113
      %v3123 = vmul.f32 %v2738, %v3114
      %v3124 = vmul.f32 %v2739, %v3115
      %v3125 = vmul.f32 %v2740, %v3116
      %v3126 = vadd.f32 %v3042, %v3117
      %v3127 = vadd.f32 %v3043, %v3118
      %v3128 = vadd.f32 %v3044, %v3119
      %v3129 = vadd.f32 %v3045, %v3120
      %v3130 = vadd.f32 %v3046, %v3121
      %v3131 = vadd.f32 %v3047, %v3122
      %v3132 = vadd.f32 %v3048, %v3123
      %v3133 = vadd.f32 %v3049, %v3124
      %v3134 = vadd.f32 %v3050, %v3125
      %v3135 = vrot.slane %v2732, 1
      %v3136 = vrot.slane %v2733, 1
      %v3137 = vrot.slane %v2734, 1
      %v3138 = vrot.slane %v2735, 1
      %v3139 = vrot.slane %v2736, 1
      %v3140 = vrot.slane %v2737, 1
      %v3141 = vrot.slane %v2738, 1
      %v3142 = vrot.slane %v2739, 1
      %v3143 = vrot.slane %v2740, 1
      %vm3144 = vcmp.lt.s32.totalorder %v2751, 7
      %v3145 = vsel %vm3144, %v3142, %v3143
      %v3146 = vsel %vm3144, %v3141, %v3142
      %v3147 = vsel %vm3144, %v3140, %v3141
      %v3148 = vsel %vm3144, %v3139, %v3140
      %v3149 = vsel %vm3144, %v3138, %v3139
      %v3150 = vsel %vm3144, %v3137, %v3138
      %v3151 = vsel %vm3144, %v3136, %v3137
      %v3152 = vsel %vm3144, %v3135, %v3136
      %v3153 = vsel %vm3144, %v3143, %v3135
      %s3154 = scalar_lea.vmem %s5, 288
      %v3155 = vld [vmem:[%s3154] sm:$0xff]
      %v3156 = vld [vmem:[%s3154 + $0x8] sm:$0xff]
      %v3157 = vld [vmem:[%s3154 + $0x10] sm:$0xff]
      %v3158 = vld [vmem:[%s3154 + $0x18] sm:$0xff]
      %v3159 = vld [vmem:[%s3154 + $0x20] sm:$0xff]
      %v3160 = vld [vmem:[%s3154 + $0x28] sm:$0xff]
      %v3161 = vld [vmem:[%s3154 + $0x30] sm:$0xff]
      %v3162 = vld [vmem:[%s3154 + $0x38] sm:$0xff]
      %v3163 = vld [vmem:[%s3154 + $0x40] sm:$0xff]
      %v3164 = vld [vmem:[%s631 + $0x4] sm:$0x1]
      %3166 = vset.pattern.permute.xlu0 0
      %3167 = vperm.xlu0 %3166, %v3155
      %v3168 = vpop.permute.xlu0 %3167
      %3171 = vset.pattern.permute.xlu0 0
      %3172 = vperm.xlu0 %3171, %v3156
      %v3173 = vpop.permute.xlu0 %3172
      %3176 = vset.pattern.permute.xlu0 0
      %3177 = vperm.xlu0 %3176, %v3157
      %v3178 = vpop.permute.xlu0 %3177
      %3181 = vset.pattern.permute.xlu0 0
      %3182 = vperm.xlu0 %3181, %v3158
      %v3183 = vpop.permute.xlu0 %3182
      %3186 = vset.pattern.permute.xlu0 0
      %3187 = vperm.xlu0 %3186, %v3159
      %v3188 = vpop.permute.xlu0 %3187
      %3191 = vset.pattern.permute.xlu0 0
      %3192 = vperm.xlu0 %3191, %v3160
      %v3193 = vpop.permute.xlu0 %3192
      %3196 = vset.pattern.permute.xlu0 0
      %3197 = vperm.xlu0 %3196, %v3161
      %v3198 = vpop.permute.xlu0 %3197
      %3201 = vset.pattern.permute.xlu0 0
      %3202 = vperm.xlu0 %3201, %v3162
      %v3203 = vpop.permute.xlu0 %3202
      %3206 = vset.pattern.permute.xlu0 0
      %3207 = vperm.xlu0 %3206, %v3163
      %v3208 = vpop.permute.xlu0 %3207
      %v3210 = vperm.slane %v3164, 0
      %v3211 = vmul.f32 %v3168, %v3210
      %v3212 = vmul.f32 %v3173, %v3210
      %v3213 = vmul.f32 %v3178, %v3210
      %v3214 = vmul.f32 %v3183, %v3210
      %v3215 = vmul.f32 %v3188, %v3210
      %v3216 = vmul.f32 %v3193, %v3210
      %v3217 = vmul.f32 %v3198, %v3210
      %v3218 = vmul.f32 %v3203, %v3210
      %v3219 = vmul.f32 %v3208, %v3210
      %v3220 = vmul.f32 %v3152, %v3211
      %v3221 = vmul.f32 %v3151, %v3212
      %v3222 = vmul.f32 %v3150, %v3213
      %v3223 = vmul.f32 %v3149, %v3214
      %v3224 = vmul.f32 %v3148, %v3215
      %v3225 = vmul.f32 %v3147, %v3216
      %v3226 = vmul.f32 %v3146, %v3217
      %v3227 = vmul.f32 %v3145, %v3218
      %v3228 = vmul.f32 %v3153, %v3219
      %v3229 = vadd.f32 %v3126, %v3220
      %v3230 = vadd.f32 %v3127, %v3221
      %v3231 = vadd.f32 %v3128, %v3222
      %v3232 = vadd.f32 %v3129, %v3223
      %v3233 = vadd.f32 %v3130, %v3224
      %v3234 = vadd.f32 %v3131, %v3225
      %v3235 = vadd.f32 %v3132, %v3226
      %v3236 = vadd.f32 %v3133, %v3227
      %v3237 = vadd.f32 %v3134, %v3228
      %v3238 = vrot.slane %v2732, 2
      %v3239 = vrot.slane %v2733, 2
      %v3240 = vrot.slane %v2734, 2
      %v3241 = vrot.slane %v2735, 2
      %v3242 = vrot.slane %v2736, 2
      %v3243 = vrot.slane %v2737, 2
      %v3244 = vrot.slane %v2738, 2
      %v3245 = vrot.slane %v2739, 2
      %v3246 = vrot.slane %v2740, 2
      %vm3247 = vcmp.lt.s32.totalorder %v2751, 6
      %v3248 = vsel %vm3247, %v3245, %v3246
      %v3249 = vsel %vm3247, %v3244, %v3245
      %v3250 = vsel %vm3247, %v3243, %v3244
      %v3251 = vsel %vm3247, %v3242, %v3243
      %v3252 = vsel %vm3247, %v3241, %v3242
      %v3253 = vsel %vm3247, %v3240, %v3241
      %v3254 = vsel %vm3247, %v3239, %v3240
      %v3255 = vsel %vm3247, %v3238, %v3239
      %v3256 = vsel %vm3247, %v3246, %v3238
      %s3257 = scalar_lea.vmem %s5, 360
      %v3258 = vld [vmem:[%s3257] sm:$0xff]
      %v3259 = vld [vmem:[%s3257 + $0x8] sm:$0xff]
      %v3260 = vld [vmem:[%s3257 + $0x10] sm:$0xff]
      %v3261 = vld [vmem:[%s3257 + $0x18] sm:$0xff]
      %v3262 = vld [vmem:[%s3257 + $0x20] sm:$0xff]
      %v3263 = vld [vmem:[%s3257 + $0x28] sm:$0xff]
      %v3264 = vld [vmem:[%s3257 + $0x30] sm:$0xff]
      %v3265 = vld [vmem:[%s3257 + $0x38] sm:$0xff]
      %v3266 = vld [vmem:[%s3257 + $0x40] sm:$0xff]
      %v3267 = vld [vmem:[%s631 + $0x5] sm:$0x1]
      %3269 = vset.pattern.permute.xlu0 0
      %3270 = vperm.xlu0 %3269, %v3258
      %v3271 = vpop.permute.xlu0 %3270
      %3274 = vset.pattern.permute.xlu0 0
      %3275 = vperm.xlu0 %3274, %v3259
      %v3276 = vpop.permute.xlu0 %3275
      %3279 = vset.pattern.permute.xlu0 0
      %3280 = vperm.xlu0 %3279, %v3260
      %v3281 = vpop.permute.xlu0 %3280
      %3284 = vset.pattern.permute.xlu0 0
      %3285 = vperm.xlu0 %3284, %v3261
      %v3286 = vpop.permute.xlu0 %3285
      %3289 = vset.pattern.permute.xlu0 0
      %3290 = vperm.xlu0 %3289, %v3262
      %v3291 = vpop.permute.xlu0 %3290
      %3294 = vset.pattern.permute.xlu0 0
      %3295 = vperm.xlu0 %3294, %v3263
      %v3296 = vpop.permute.xlu0 %3295
      %3299 = vset.pattern.permute.xlu0 0
      %3300 = vperm.xlu0 %3299, %v3264
      %v3301 = vpop.permute.xlu0 %3300
      %3304 = vset.pattern.permute.xlu0 0
      %3305 = vperm.xlu0 %3304, %v3265
      %v3306 = vpop.permute.xlu0 %3305
      %3309 = vset.pattern.permute.xlu0 0
      %3310 = vperm.xlu0 %3309, %v3266
      %v3311 = vpop.permute.xlu0 %3310
      %v3313 = vperm.slane %v3267, 0
      %v3314 = vmul.f32 %v3271, %v3313
      %v3315 = vmul.f32 %v3276, %v3313
      %v3316 = vmul.f32 %v3281, %v3313
      %v3317 = vmul.f32 %v3286, %v3313
      %v3318 = vmul.f32 %v3291, %v3313
      %v3319 = vmul.f32 %v3296, %v3313
      %v3320 = vmul.f32 %v3301, %v3313
      %v3321 = vmul.f32 %v3306, %v3313
      %v3322 = vmul.f32 %v3311, %v3313
      %v3323 = vmul.f32 %v3255, %v3314
      %v3324 = vmul.f32 %v3254, %v3315
      %v3325 = vmul.f32 %v3253, %v3316
      %v3326 = vmul.f32 %v3252, %v3317
      %v3327 = vmul.f32 %v3251, %v3318
      %v3328 = vmul.f32 %v3250, %v3319
      %v3329 = vmul.f32 %v3249, %v3320
      %v3330 = vmul.f32 %v3248, %v3321
      %v3331 = vmul.f32 %v3256, %v3322
      %v3332 = vadd.f32 %v3229, %v3323
      %v3333 = vadd.f32 %v3230, %v3324
      %v3334 = vadd.f32 %v3231, %v3325
      %v3335 = vadd.f32 %v3232, %v3326
      %v3336 = vadd.f32 %v3233, %v3327
      %v3337 = vadd.f32 %v3234, %v3328
      %v3338 = vadd.f32 %v3235, %v3329
      %v3339 = vadd.f32 %v3236, %v3330
      %v3340 = vadd.f32 %v3237, %v3331
      %v3341 = vrot.slane %v2732, 3
      %v3342 = vrot.slane %v2733, 3
      %v3343 = vrot.slane %v2734, 3
      %v3344 = vrot.slane %v2735, 3
      %v3345 = vrot.slane %v2736, 3
      %v3346 = vrot.slane %v2737, 3
      %v3347 = vrot.slane %v2738, 3
      %v3348 = vrot.slane %v2739, 3
      %v3349 = vrot.slane %v2740, 3
      %vm3350 = vcmp.lt.s32.totalorder %v2751, 5
      %v3351 = vsel %vm3350, %v3348, %v3349
      %v3352 = vsel %vm3350, %v3347, %v3348
      %v3353 = vsel %vm3350, %v3346, %v3347
      %v3354 = vsel %vm3350, %v3345, %v3346
      %v3355 = vsel %vm3350, %v3344, %v3345
      %v3356 = vsel %vm3350, %v3343, %v3344
      %v3357 = vsel %vm3350, %v3342, %v3343
      %v3358 = vsel %vm3350, %v3341, %v3342
      %v3359 = vsel %vm3350, %v3349, %v3341
      %s3360 = scalar_lea.vmem %s5, 432
      %v3361 = vld [vmem:[%s3360] sm:$0xff]
      %v3362 = vld [vmem:[%s3360 + $0x8] sm:$0xff]
      %v3363 = vld [vmem:[%s3360 + $0x10] sm:$0xff]
      %v3364 = vld [vmem:[%s3360 + $0x18] sm:$0xff]
      %v3365 = vld [vmem:[%s3360 + $0x20] sm:$0xff]
      %v3366 = vld [vmem:[%s3360 + $0x28] sm:$0xff]
      %v3367 = vld [vmem:[%s3360 + $0x30] sm:$0xff]
      %v3368 = vld [vmem:[%s3360 + $0x38] sm:$0xff]
      %v3369 = vld [vmem:[%s3360 + $0x40] sm:$0xff]
      %v3370 = vld [vmem:[%s631 + $0x6] sm:$0x1]
      %3372 = vset.pattern.permute.xlu0 0
      %3373 = vperm.xlu0 %3372, %v3361
      %v3374 = vpop.permute.xlu0 %3373
      %3377 = vset.pattern.permute.xlu0 0
      %3378 = vperm.xlu0 %3377, %v3362
      %v3379 = vpop.permute.xlu0 %3378
      %3382 = vset.pattern.permute.xlu0 0
      %3383 = vperm.xlu0 %3382, %v3363
      %v3384 = vpop.permute.xlu0 %3383
      %3387 = vset.pattern.permute.xlu0 0
      %3388 = vperm.xlu0 %3387, %v3364
      %v3389 = vpop.permute.xlu0 %3388
      %3392 = vset.pattern.permute.xlu0 0
      %3393 = vperm.xlu0 %3392, %v3365
      %v3394 = vpop.permute.xlu0 %3393
      %3397 = vset.pattern.permute.xlu0 0
      %3398 = vperm.xlu0 %3397, %v3366
      %v3399 = vpop.permute.xlu0 %3398
      %3402 = vset.pattern.permute.xlu0 0
      %3403 = vperm.xlu0 %3402, %v3367
      %v3404 = vpop.permute.xlu0 %3403
      %3407 = vset.pattern.permute.xlu0 0
      %3408 = vperm.xlu0 %3407, %v3368
      %v3409 = vpop.permute.xlu0 %3408
      %3412 = vset.pattern.permute.xlu0 0
      %3413 = vperm.xlu0 %3412, %v3369
      %v3414 = vpop.permute.xlu0 %3413
      %v3416 = vperm.slane %v3370, 0
      %v3417 = vmul.f32 %v3374, %v3416
      %v3418 = vmul.f32 %v3379, %v3416
      %v3419 = vmul.f32 %v3384, %v3416
      %v3420 = vmul.f32 %v3389, %v3416
      %v3421 = vmul.f32 %v3394, %v3416
      %v3422 = vmul.f32 %v3399, %v3416
      %v3423 = vmul.f32 %v3404, %v3416
      %v3424 = vmul.f32 %v3409, %v3416
      %v3425 = vmul.f32 %v3414, %v3416
      %v3426 = vmul.f32 %v3358, %v3417
      %v3427 = vmul.f32 %v3357, %v3418
      %v3428 = vmul.f32 %v3356, %v3419
      %v3429 = vmul.f32 %v3355, %v3420
      %v3430 = vmul.f32 %v3354, %v3421
      %v3431 = vmul.f32 %v3353, %v3422
      %v3432 = vmul.f32 %v3352, %v3423
      %v3433 = vmul.f32 %v3351, %v3424
      %v3434 = vmul.f32 %v3359, %v3425
      %v3435 = vadd.f32 %v3332, %v3426
      %v3436 = vadd.f32 %v3333, %v3427
      %v3437 = vadd.f32 %v3334, %v3428
      %v3438 = vadd.f32 %v3335, %v3429
      %v3439 = vadd.f32 %v3336, %v3430
      %v3440 = vadd.f32 %v3337, %v3431
      %v3441 = vadd.f32 %v3338, %v3432
      %v3442 = vadd.f32 %v3339, %v3433
      %v3443 = vadd.f32 %v3340, %v3434
      %v3444 = vxor.u32 %v3435, 2147483648
      %v3445 = vxor.u32 %v3436, 2147483648
      %v3446 = vxor.u32 %v3437, 2147483648
      %v3447 = vxor.u32 %v3438, 2147483648
      %v3448 = vxor.u32 %v3439, 2147483648
      %v3449 = vxor.u32 %v3440, 2147483648
      %v3450 = vxor.u32 %v3441, 2147483648
      %v3451 = vxor.u32 %v3442, 2147483648
      %v3452 = vxor.u32 %v3443, 2147483648
      %v3453 = vmul.f32 %v3444, 1.442695
      %v3454 = vpow.pop %v3453
      %v3455 = vmul.f32 %v3445, 1.442695
      %v3456 = vpow.pop %v3455
      %v3457 = vmul.f32 %v3446, 1.442695
      %v3458 = vpow.pop %v3457
      %v3459 = vmul.f32 %v3447, 1.442695
      %v3460 = vpow.pop %v3459
      %v3461 = vmul.f32 %v3448, 1.442695
      %v3462 = vpow.pop %v3461
      %v3463 = vmul.f32 %v3449, 1.442695
      %v3464 = vpow.pop %v3463
      %v3465 = vmul.f32 %v3450, 1.442695
      %v3466 = vpow.pop %v3465
      %v3467 = vmul.f32 %v3451, 1.442695
      %v3468 = vpow.pop %v3467
      %v3469 = vmul.f32 %v3452, 1.442695
      %v3470 = vpow.pop %v3469
      %v3471 = vadd.f32 %v3454, 1.0
      %v3472 = vadd.f32 %v3456, 1.0
      %v3473 = vadd.f32 %v3458, 1.0
      %v3474 = vadd.f32 %v3460, 1.0
      %v3475 = vadd.f32 %v3462, 1.0
      %v3476 = vadd.f32 %v3464, 1.0
      %v3477 = vadd.f32 %v3466, 1.0
      %v3478 = vadd.f32 %v3468, 1.0
      %v3479 = vadd.f32 %v3470, 1.0
      %v3480 = vrcp.pop %v3471
      %v3481 = vmul.f32 %v3471, %v3480
      %v3482 = vsub.f32 1.0, %v3481
      %v3483 = vmul.f32 %v3480, %v3482
      %v3484 = vadd.f32 %v3480, %v3483
      %vm3485 = vweird.f32 %v3471
      %vm3486 = vweird.f32 %v3480
      %vm3487 = vmor %vm3485, %vm3486
      %v3488 = vsel %vm3487, %v3480, %v3484
      %v3489 = vand.u32 2147483647, %v3471
      %vm3490 = vcmp.eq.f32.partialorder %v3489, 8.507059e+37
      %v3491 = vand.u32 %v3471, 2147483648
      %v3492 = vor.u32 1.1754944e-38, %v3491
      %v3493 = vsel %vm3490, %v3492, %v3488
      %v3494 = vmul.f32 1.0, %v3493
      %v3495 = vrcp.pop %v3472
      %v3496 = vmul.f32 %v3472, %v3495
      %v3497 = vsub.f32 1.0, %v3496
      %v3498 = vmul.f32 %v3495, %v3497
      %v3499 = vadd.f32 %v3495, %v3498
      %vm3500 = vweird.f32 %v3472
      %vm3501 = vweird.f32 %v3495
      %vm3502 = vmor %vm3500, %vm3501
      %v3503 = vsel %vm3502, %v3495, %v3499
      %v3504 = vand.u32 2147483647, %v3472
      %vm3505 = vcmp.eq.f32.partialorder %v3504, 8.507059e+37
      %v3506 = vand.u32 %v3472, 2147483648
      %v3507 = vor.u32 1.1754944e-38, %v3506
      %v3508 = vsel %vm3505, %v3507, %v3503
      %v3509 = vmul.f32 1.0, %v3508
      %v3510 = vrcp.pop %v3473
      %v3511 = vmul.f32 %v3473, %v3510
      %v3512 = vsub.f32 1.0, %v3511
      %v3513 = vmul.f32 %v3510, %v3512
      %v3514 = vadd.f32 %v3510, %v3513
      %vm3515 = vweird.f32 %v3473
      %vm3516 = vweird.f32 %v3510
      %vm3517 = vmor %vm3515, %vm3516
      %v3518 = vsel %vm3517, %v3510, %v3514
      %v3519 = vand.u32 2147483647, %v3473
      %vm3520 = vcmp.eq.f32.partialorder %v3519, 8.507059e+37
      %v3521 = vand.u32 %v3473, 2147483648
      %v3522 = vor.u32 1.1754944e-38, %v3521
      %v3523 = vsel %vm3520, %v3522, %v3518
      %v3524 = vmul.f32 1.0, %v3523
      %v3525 = vrcp.pop %v3474
      %v3526 = vmul.f32 %v3474, %v3525
      %v3527 = vsub.f32 1.0, %v3526
      %v3528 = vmul.f32 %v3525, %v3527
      %v3529 = vadd.f32 %v3525, %v3528
      %vm3530 = vweird.f32 %v3474
      %vm3531 = vweird.f32 %v3525
      %vm3532 = vmor %vm3530, %vm3531
      %v3533 = vsel %vm3532, %v3525, %v3529
      %v3534 = vand.u32 2147483647, %v3474
      %vm3535 = vcmp.eq.f32.partialorder %v3534, 8.507059e+37
      %v3536 = vand.u32 %v3474, 2147483648
      %v3537 = vor.u32 1.1754944e-38, %v3536
      %v3538 = vsel %vm3535, %v3537, %v3533
      %v3539 = vmul.f32 1.0, %v3538
      %v3540 = vrcp.pop %v3475
      %v3541 = vmul.f32 %v3475, %v3540
      %v3542 = vsub.f32 1.0, %v3541
      %v3543 = vmul.f32 %v3540, %v3542
      %v3544 = vadd.f32 %v3540, %v3543
      %vm3545 = vweird.f32 %v3475
      %vm3546 = vweird.f32 %v3540
      %vm3547 = vmor %vm3545, %vm3546
      %v3548 = vsel %vm3547, %v3540, %v3544
      %v3549 = vand.u32 2147483647, %v3475
      %vm3550 = vcmp.eq.f32.partialorder %v3549, 8.507059e+37
      %v3551 = vand.u32 %v3475, 2147483648
      %v3552 = vor.u32 1.1754944e-38, %v3551
      %v3553 = vsel %vm3550, %v3552, %v3548
      %v3554 = vmul.f32 1.0, %v3553
      %v3555 = vrcp.pop %v3476
      %v3556 = vmul.f32 %v3476, %v3555
      %v3557 = vsub.f32 1.0, %v3556
      %v3558 = vmul.f32 %v3555, %v3557
      %v3559 = vadd.f32 %v3555, %v3558
      %vm3560 = vweird.f32 %v3476
      %vm3561 = vweird.f32 %v3555
      %vm3562 = vmor %vm3560, %vm3561
      %v3563 = vsel %vm3562, %v3555, %v3559
      %v3564 = vand.u32 2147483647, %v3476
      %vm3565 = vcmp.eq.f32.partialorder %v3564, 8.507059e+37
      %v3566 = vand.u32 %v3476, 2147483648
      %v3567 = vor.u32 1.1754944e-38, %v3566
      %v3568 = vsel %vm3565, %v3567, %v3563
      %v3569 = vmul.f32 1.0, %v3568
      %v3570 = vrcp.pop %v3477
      %v3571 = vmul.f32 %v3477, %v3570
      %v3572 = vsub.f32 1.0, %v3571
      %v3573 = vmul.f32 %v3570, %v3572
      %v3574 = vadd.f32 %v3570, %v3573
      %vm3575 = vweird.f32 %v3477
      %vm3576 = vweird.f32 %v3570
      %vm3577 = vmor %vm3575, %vm3576
      %v3578 = vsel %vm3577, %v3570, %v3574
      %v3579 = vand.u32 2147483647, %v3477
      %vm3580 = vcmp.eq.f32.partialorder %v3579, 8.507059e+37
      %v3581 = vand.u32 %v3477, 2147483648
      %v3582 = vor.u32 1.1754944e-38, %v3581
      %v3583 = vsel %vm3580, %v3582, %v3578
      %v3584 = vmul.f32 1.0, %v3583
      %v3585 = vrcp.pop %v3478
      %v3586 = vmul.f32 %v3478, %v3585
      %v3587 = vsub.f32 1.0, %v3586
      %v3588 = vmul.f32 %v3585, %v3587
      %v3589 = vadd.f32 %v3585, %v3588
      %vm3590 = vweird.f32 %v3478
      %vm3591 = vweird.f32 %v3585
      %vm3592 = vmor %vm3590, %vm3591
      %v3593 = vsel %vm3592, %v3585, %v3589
      %v3594 = vand.u32 2147483647, %v3478
      %vm3595 = vcmp.eq.f32.partialorder %v3594, 8.507059e+37
      %v3596 = vand.u32 %v3478, 2147483648
      %v3597 = vor.u32 1.1754944e-38, %v3596
      %v3598 = vsel %vm3595, %v3597, %v3593
      %v3599 = vmul.f32 1.0, %v3598
      %v3600 = vrcp.pop %v3479
      %v3601 = vmul.f32 %v3479, %v3600
      %v3602 = vsub.f32 1.0, %v3601
      %v3603 = vmul.f32 %v3600, %v3602
      %v3604 = vadd.f32 %v3600, %v3603
      %vm3605 = vweird.f32 %v3479
      %vm3606 = vweird.f32 %v3600
      %vm3607 = vmor %vm3605, %vm3606
      %v3608 = vsel %vm3607, %v3600, %v3604
      %v3609 = vand.u32 2147483647, %v3479
      %vm3610 = vcmp.eq.f32.partialorder %v3609, 8.507059e+37
      %v3611 = vand.u32 %v3479, 2147483648
      %v3612 = vor.u32 1.1754944e-38, %v3611
      %v3613 = vsel %vm3610, %v3612, %v3608
      %v3614 = vmul.f32 1.0, %v3613
      %v3615 = vmul.f32 %v3435, %v3494
      %v3616 = vmul.f32 %v3436, %v3509
      %v3617 = vmul.f32 %v3437, %v3524
      %v3618 = vmul.f32 %v3438, %v3539
      %v3619 = vmul.f32 %v3439, %v3554
      %v3620 = vmul.f32 %v3440, %v3569
      %v3621 = vmul.f32 %v3441, %v3584
      %v3622 = vmul.f32 %v3442, %v3599
      %v3623 = vmul.f32 %v3443, %v3614
      %v3624 = vpack.c.bf16 %v3616, %v3615
      %v3625 = vpack.c.bf16 %v3618, %v3617
      %v3626 = vpack.c.bf16 %v3620, %v3619
      %v3627 = vpack.c.bf16 %v3622, %v3621
      %v3628 = vpack.c.bf16 %v3623, %v3623
      %s3629 = scalar_lea.vmem %s608, 96
      %v3630 = vld [vmem:[%s3629] sm:$0xf]
      %v3631 = vld [vmem:[%s3629 + $0x4] sm:$0xf]
      %v3632 = vld [vmem:[%s3629 + $0x8] sm:$0xf]
      %v3633 = vld [vmem:[%s3629 + $0xc] sm:$0x7]
      %v3634 = vld [vmem:[%s623 + $0xd] sm:$0x1]
      %v3635 = vperm.slane %v3634, 0
      %v3640 = vunpack.c.l.b16 %v3630
      %v3641 = vunpack.c.l.b16 %v3631
      %v3642 = vunpack.c.l.b16 %v3632
      %v3643 = vunpack.c.l.b16 %v3633
      %v3644 = vpack.c.b16 %v3641, %v3640
      %v3645 = vpack.c.b16 %v3643, %v3642
      %v3648 = vsel %vm850, %v3624, 0
      %v3651 = vsel %vm850, %v3625, 0
      %v3654 = vsel %vm850, %v3626, 0
      %v3657 = vsel %vm850, %v3627, 0
      %v3660 = vsel %vm850, %v3628, 0
      %v3663 = vsel %vm1113, %v3645, 0
      %3665 = vmatpush.bf16.msra.mxu0 0
      %3666 = vmatpush.bf16.msra.mxu0 0
      %3667 = vmatpush.bf16.msra.mxu0 0
      %3668 = vmatpush.bf16.msra.mxu0 0
      %3669 = vmatpush.bf16.msra.mxu0 0
      %3670 = vmatpush.bf16.msra.mxu0 0
      %3671 = vmatpush.bf16.msra.mxu0 %v3663
      %3672 = vmatpush.bf16.msra.mxu0 %v3644
      %3673 = vmatmul.bf16.gmra.mxu0 %v3648
      %v3674 = vpop.f32.mrf.mxu0
      %v3675 = vadd.f32 %v3635, %v3674
      %v3676 = vpop.f32.mrf.mxu0
      %v3677 = vadd.f32 %v3635, %v3676
      %3678 = vmatmul.bf16.gmra.mxu0 %v3651
      %v3679 = vpop.f32.mrf.mxu0
      %v3680 = vadd.f32 %v3635, %v3679
      %v3681 = vpop.f32.mrf.mxu0
      %v3682 = vadd.f32 %v3635, %v3681
      %3683 = vmatmul.bf16.gmra.mxu0 %v3654
      %v3684 = vpop.f32.mrf.mxu0
      %v3685 = vadd.f32 %v3635, %v3684
      %v3686 = vpop.f32.mrf.mxu0
      %v3687 = vadd.f32 %v3635, %v3686
      %3688 = vmatmul.bf16.gmra.mxu0 %v3657
      %v3689 = vpop.f32.mrf.mxu0
      %v3690 = vadd.f32 %v3635, %v3689
      %v3691 = vpop.f32.mrf.mxu0
      %v3692 = vadd.f32 %v3635, %v3691
      %3693 = vmatmul.bf16.gmra.mxu0 %v3660
      %v3694 = vpop.f32.mrf.mxu0
      %v3695 = vadd.f32 %v3635, %v3694
      %v3696 = vpop.f32.mrf.mxu0
      %3697 = vdwg.mxu0
      %v3698 = vadd.f32 %v2204, %v3675
      %v3699 = vadd.f32 %v2205, %v3677
      %v3700 = vadd.f32 %v2206, %v3680
      %v3701 = vadd.f32 %v2207, %v3682
      %v3702 = vadd.f32 %v2208, %v3685
      %v3703 = vadd.f32 %v2209, %v3687
      %v3704 = vadd.f32 %v2210, %v3690
      %v3705 = vadd.f32 %v2211, %v3692
      %v3706 = vadd.f32 %v2212, %v3695
      %v3707 = vld [vmem:[%s623 + $0xe] sm:$0x1]
      %v3708 = vld [vmem:[%s623 + $0xf] sm:$0x1]
      %v3709 = vsel %vm850, %v3698, 0.0
      %3710 = vadd.xlane.f32.xlu0 %v3709
      %v3711 = vpop.xlane.xlu0 %3710
      %v3712 = vsel %vm850, %v3699, 0.0
      %3713 = vadd.xlane.f32.xlu0 %v3712
      %v3714 = vpop.xlane.xlu0 %3713
      %v3715 = vsel %vm850, %v3700, 0.0
      %3716 = vadd.xlane.f32.xlu0 %v3715
      %v3717 = vpop.xlane.xlu0 %3716
      %v3718 = vsel %vm850, %v3701, 0.0
      %3719 = vadd.xlane.f32.xlu0 %v3718
      %v3720 = vpop.xlane.xlu0 %3719
      %v3721 = vsel %vm850, %v3702, 0.0
      %3722 = vadd.xlane.f32.xlu0 %v3721
      %v3723 = vpop.xlane.xlu0 %3722
      %v3724 = vsel %vm850, %v3703, 0.0
      %3725 = vadd.xlane.f32.xlu0 %v3724
      %v3726 = vpop.xlane.xlu0 %3725
      %v3727 = vsel %vm850, %v3704, 0.0
      %3728 = vadd.xlane.f32.xlu0 %v3727
      %v3729 = vpop.xlane.xlu0 %3728
      %v3730 = vsel %vm850, %v3705, 0.0
      %3731 = vadd.xlane.f32.xlu0 %v3730
      %v3732 = vpop.xlane.xlu0 %3731
      %v3733 = vsel %vm850, %v3706, 0.0
      %3734 = vadd.xlane.f32.xlu0 %v3733
      %v3735 = vpop.xlane.xlu0 %3734
      %v3736 = vmul.f32 %v3711, %v884
      %v3737 = vmul.f32 %v3714, %v884
      %v3738 = vmul.f32 %v3717, %v884
      %v3739 = vmul.f32 %v3720, %v884
      %v3740 = vmul.f32 %v3723, %v884
      %v3741 = vmul.f32 %v3726, %v884
      %v3742 = vmul.f32 %v3729, %v884
      %v3743 = vmul.f32 %v3732, %v884
      %v3744 = vmul.f32 %v3735, %v884
      %v3745 = vsub.f32 %v3698, %v3736
      %v3746 = vsub.f32 %v3699, %v3737
      %v3747 = vsub.f32 %v3700, %v3738
      %v3748 = vsub.f32 %v3701, %v3739
      %v3749 = vsub.f32 %v3702, %v3740
      %v3750 = vsub.f32 %v3703, %v3741
      %v3751 = vsub.f32 %v3704, %v3742
      %v3752 = vsub.f32 %v3705, %v3743
      %v3753 = vsub.f32 %v3706, %v3744
      %v3754 = vmul.f32 %v3745, %v3745
      %v3755 = vmul.f32 %v3746, %v3746
      %v3756 = vmul.f32 %v3747, %v3747
      %v3757 = vmul.f32 %v3748, %v3748
      %v3758 = vmul.f32 %v3749, %v3749
      %v3759 = vmul.f32 %v3750, %v3750
      %v3760 = vmul.f32 %v3751, %v3751
      %v3761 = vmul.f32 %v3752, %v3752
      %v3762 = vmul.f32 %v3753, %v3753
      %v3763 = vsel %vm850, %v3754, 0.0
      %3764 = vadd.xlane.f32.xlu0 %v3763
      %v3765 = vpop.xlane.xlu0 %3764
      %v3766 = vsel %vm850, %v3755, 0.0
      %3767 = vadd.xlane.f32.xlu0 %v3766
      %v3768 = vpop.xlane.xlu0 %3767
      %v3769 = vsel %vm850, %v3756, 0.0
      %3770 = vadd.xlane.f32.xlu0 %v3769
      %v3771 = vpop.xlane.xlu0 %3770
      %v3772 = vsel %vm850, %v3757, 0.0
      %3773 = vadd.xlane.f32.xlu0 %v3772
      %v3774 = vpop.xlane.xlu0 %3773
      %v3775 = vsel %vm850, %v3758, 0.0
      %3776 = vadd.xlane.f32.xlu0 %v3775
      %v3777 = vpop.xlane.xlu0 %3776
      %v3778 = vsel %vm850, %v3759, 0.0
      %3779 = vadd.xlane.f32.xlu0 %v3778
      %v3780 = vpop.xlane.xlu0 %3779
      %v3781 = vsel %vm850, %v3760, 0.0
      %3782 = vadd.xlane.f32.xlu0 %v3781
      %v3783 = vpop.xlane.xlu0 %3782
      %v3784 = vsel %vm850, %v3761, 0.0
      %3785 = vadd.xlane.f32.xlu0 %v3784
      %v3786 = vpop.xlane.xlu0 %3785
      %v3787 = vsel %vm850, %v3762, 0.0
      %3788 = vadd.xlane.f32.xlu0 %v3787
      %v3789 = vpop.xlane.xlu0 %3788
      %v3790 = vmul.f32 %v3765, %v884
      %v3791 = vmul.f32 %v3768, %v884
      %v3792 = vmul.f32 %v3771, %v884
      %v3793 = vmul.f32 %v3774, %v884
      %v3794 = vmul.f32 %v3777, %v884
      %v3795 = vmul.f32 %v3780, %v884
      %v3796 = vmul.f32 %v3783, %v884
      %v3797 = vmul.f32 %v3786, %v884
      %v3798 = vmul.f32 %v3789, %v884
      %v3799 = vadd.f32 %v3790, 1e-05
      %v3800 = vadd.f32 %v3791, 1e-05
      %v3801 = vadd.f32 %v3792, 1e-05
      %v3802 = vadd.f32 %v3793, 1e-05
      %v3803 = vadd.f32 %v3794, 1e-05
      %v3804 = vadd.f32 %v3795, 1e-05
      %v3805 = vadd.f32 %v3796, 1e-05
      %v3806 = vadd.f32 %v3797, 1e-05
      %v3807 = vadd.f32 %v3798, 1e-05
      %v3808 = vrsqrt.pop %v3799
      %v3809 = vmul.f32 %v3808, %v3799
      %v3810 = vmul.f32 %v3809, %v3808
      %v3811 = vmul.f32 0.5, %v3810
      %v3812 = vsub.f32 1.5, %v3811
      %v3813 = vmul.f32 %v3808, %v3812
      %vm3814 = vweird.f32 %v3799
      %vm3815 = vweird.f32 %v3808
      %vm3816 = vmor %vm3814, %vm3815
      %v3817 = vsel %vm3816, %v3808, %v3813
      %v3818 = vrsqrt.pop %v3800
      %v3819 = vmul.f32 %v3818, %v3800
      %v3820 = vmul.f32 %v3819, %v3818
      %v3821 = vmul.f32 0.5, %v3820
      %v3822 = vsub.f32 1.5, %v3821
      %v3823 = vmul.f32 %v3818, %v3822
      %vm3824 = vweird.f32 %v3800
      %vm3825 = vweird.f32 %v3818
      %vm3826 = vmor %vm3824, %vm3825
      %v3827 = vsel %vm3826, %v3818, %v3823
      %v3828 = vrsqrt.pop %v3801
      %v3829 = vmul.f32 %v3828, %v3801
      %v3830 = vmul.f32 %v3829, %v3828
      %v3831 = vmul.f32 0.5, %v3830
      %v3832 = vsub.f32 1.5, %v3831
      %v3833 = vmul.f32 %v3828, %v3832
      %vm3834 = vweird.f32 %v3801
      %vm3835 = vweird.f32 %v3828
      %vm3836 = vmor %vm3834, %vm3835
      %v3837 = vsel %vm3836, %v3828, %v3833
      %v3838 = vrsqrt.pop %v3802
      %v3839 = vmul.f32 %v3838, %v3802
      %v3840 = vmul.f32 %v3839, %v3838
      %v3841 = vmul.f32 0.5, %v3840
      %v3842 = vsub.f32 1.5, %v3841
      %v3843 = vmul.f32 %v3838, %v3842
      %vm3844 = vweird.f32 %v3802
      %vm3845 = vweird.f32 %v3838
      %vm3846 = vmor %vm3844, %vm3845
      %v3847 = vsel %vm3846, %v3838, %v3843
      %v3848 = vrsqrt.pop %v3803
      %v3849 = vmul.f32 %v3848, %v3803
      %v3850 = vmul.f32 %v3849, %v3848
      %v3851 = vmul.f32 0.5, %v3850
      %v3852 = vsub.f32 1.5, %v3851
      %v3853 = vmul.f32 %v3848, %v3852
      %vm3854 = vweird.f32 %v3803
      %vm3855 = vweird.f32 %v3848
      %vm3856 = vmor %vm3854, %vm3855
      %v3857 = vsel %vm3856, %v3848, %v3853
      %v3858 = vrsqrt.pop %v3804
      %v3859 = vmul.f32 %v3858, %v3804
      %v3860 = vmul.f32 %v3859, %v3858
      %v3861 = vmul.f32 0.5, %v3860
      %v3862 = vsub.f32 1.5, %v3861
      %v3863 = vmul.f32 %v3858, %v3862
      %vm3864 = vweird.f32 %v3804
      %vm3865 = vweird.f32 %v3858
      %vm3866 = vmor %vm3864, %vm3865
      %v3867 = vsel %vm3866, %v3858, %v3863
      %v3868 = vrsqrt.pop %v3805
      %v3869 = vmul.f32 %v3868, %v3805
      %v3870 = vmul.f32 %v3869, %v3868
      %v3871 = vmul.f32 0.5, %v3870
      %v3872 = vsub.f32 1.5, %v3871
      %v3873 = vmul.f32 %v3868, %v3872
      %vm3874 = vweird.f32 %v3805
      %vm3875 = vweird.f32 %v3868
      %vm3876 = vmor %vm3874, %vm3875
      %v3877 = vsel %vm3876, %v3868, %v3873
      %v3878 = vrsqrt.pop %v3806
      %v3879 = vmul.f32 %v3878, %v3806
      %v3880 = vmul.f32 %v3879, %v3878
      %v3881 = vmul.f32 0.5, %v3880
      %v3882 = vsub.f32 1.5, %v3881
      %v3883 = vmul.f32 %v3878, %v3882
      %vm3884 = vweird.f32 %v3806
      %vm3885 = vweird.f32 %v3878
      %vm3886 = vmor %vm3884, %vm3885
      %v3887 = vsel %vm3886, %v3878, %v3883
      %v3888 = vrsqrt.pop %v3807
      %v3889 = vmul.f32 %v3888, %v3807
      %v3890 = vmul.f32 %v3889, %v3888
      %v3891 = vmul.f32 0.5, %v3890
      %v3892 = vsub.f32 1.5, %v3891
      %v3893 = vmul.f32 %v3888, %v3892
      %vm3894 = vweird.f32 %v3807
      %vm3895 = vweird.f32 %v3888
      %vm3896 = vmor %vm3894, %vm3895
      %v3897 = vsel %vm3896, %v3888, %v3893
      %v3898 = vmul.f32 %v3745, %v3817
      %v3899 = vmul.f32 %v3746, %v3827
      %v3900 = vmul.f32 %v3747, %v3837
      %v3901 = vmul.f32 %v3748, %v3847
      %v3902 = vmul.f32 %v3749, %v3857
      %v3903 = vmul.f32 %v3750, %v3867
      %v3904 = vmul.f32 %v3751, %v3877
      %v3905 = vmul.f32 %v3752, %v3887
      %v3906 = vmul.f32 %v3753, %v3897
      %v3907 = vperm.slane %v3707, 0
      %v3908 = vmul.f32 %v3898, %v3907
      %v3909 = vmul.f32 %v3899, %v3907
      %v3910 = vmul.f32 %v3900, %v3907
      %v3911 = vmul.f32 %v3901, %v3907
      %v3912 = vmul.f32 %v3902, %v3907
      %v3913 = vmul.f32 %v3903, %v3907
      %v3914 = vmul.f32 %v3904, %v3907
      %v3915 = vmul.f32 %v3905, %v3907
      %v3916 = vmul.f32 %v3906, %v3907
      %v3917 = vperm.slane %v3708, 0
      %v3918 = vadd.f32 %v3908, %v3917
      %v3919 = vadd.f32 %v3909, %v3917
      %v3920 = vadd.f32 %v3910, %v3917
      %v3921 = vadd.f32 %v3911, %v3917
      %v3922 = vadd.f32 %v3912, %v3917
      %v3923 = vadd.f32 %v3913, %v3917
      %v3924 = vadd.f32 %v3914, %v3917
      %v3925 = vadd.f32 %v3915, %v3917
      %v3926 = vadd.f32 %v3916, %v3917
      %v3927 = vpack.c.bf16 %v3919, %v3918
      %v3928 = vpack.c.bf16 %v3921, %v3920
      %v3929 = vpack.c.bf16 %v3923, %v3922
      %v3930 = vpack.c.bf16 %v3925, %v3924
      %v3931 = vpack.c.bf16 %v3926, %v3926
      %s3932 = scalar_lea.vmem %s613, 16
      %v3933 = vld [vmem:[%s3932] sm:$0xf]
      %v3934 = vld [vmem:[%s3932 + $0x4] sm:$0xf]
      %v3935 = vld [vmem:[%s3932 + $0x8] sm:$0xf]
      %v3936 = vld [vmem:[%s3932 + $0xc] sm:$0x7]
      %v3937 = vld [vmem:[%s627 + $0x1] sm:$0x1]
      %v3938 = vperm.slane %v3937, 0
      %v3943 = vunpack.c.l.b16 %v3933
      %v3944 = vunpack.c.l.b16 %v3934
      %v3945 = vunpack.c.l.b16 %v3935
      %v3946 = vunpack.c.l.b16 %v3936
      %v3947 = vpack.c.b16 %v3944, %v3943
      %v3948 = vpack.c.b16 %v3946, %v3945
      %v3951 = vsel %vm850, %v3927, 0
      %v3954 = vsel %vm850, %v3928, 0
      %v3957 = vsel %vm850, %v3929, 0
      %v3960 = vsel %vm850, %v3930, 0
      %v3963 = vsel %vm850, %v3931, 0
      %v3966 = vsel %vm1113, %v3948, 0
      %3968 = vmatpush.bf16.msra.mxu0 0
      %3969 = vmatpush.bf16.msra.mxu0 0
      %3970 = vmatpush.bf16.msra.mxu0 0
      %3971 = vmatpush.bf16.msra.mxu0 0
      %3972 = vmatpush.bf16.msra.mxu0 0
      %3973 = vmatpush.bf16.msra.mxu0 0
      %3974 = vmatpush.bf16.msra.mxu0 %v3966
      %3975 = vmatpush.bf16.msra.mxu0 %v3947
      %3976 = vmatmul.bf16.gmra.mxu0 %v3951
      %v3977 = vpop.f32.mrf.mxu0
      %v3978 = vadd.f32 %v3938, %v3977
      %v3979 = vpop.f32.mrf.mxu0
      %v3980 = vadd.f32 %v3938, %v3979
      %3981 = vmatmul.bf16.gmra.mxu0 %v3954
      %v3982 = vpop.f32.mrf.mxu0
      %v3983 = vadd.f32 %v3938, %v3982
      %v3984 = vpop.f32.mrf.mxu0
      %v3985 = vadd.f32 %v3938, %v3984
      %3986 = vmatmul.bf16.gmra.mxu0 %v3957
      %v3987 = vpop.f32.mrf.mxu0
      %v3988 = vadd.f32 %v3938, %v3987
      %v3989 = vpop.f32.mrf.mxu0
      %v3990 = vadd.f32 %v3938, %v3989
      %3991 = vmatmul.bf16.gmra.mxu0 %v3960
      %v3992 = vpop.f32.mrf.mxu0
      %v3993 = vadd.f32 %v3938, %v3992
      %v3994 = vpop.f32.mrf.mxu0
      %v3995 = vadd.f32 %v3938, %v3994
      %3996 = vmatmul.bf16.gmra.mxu0 %v3963
      %v3997 = vpop.f32.mrf.mxu0
      %v3998 = vadd.f32 %v3938, %v3997
      %v3999 = vpop.f32.mrf.mxu0
      %4000 = vdwg.mxu0
      %v4001 = vxor.u32 %v3978, 2147483648
      %v4002 = vxor.u32 %v3980, 2147483648
      %v4003 = vxor.u32 %v3983, 2147483648
      %v4004 = vxor.u32 %v3985, 2147483648
      %v4005 = vxor.u32 %v3988, 2147483648
      %v4006 = vxor.u32 %v3990, 2147483648
      %v4007 = vxor.u32 %v3993, 2147483648
      %v4008 = vxor.u32 %v3995, 2147483648
      %v4009 = vxor.u32 %v3998, 2147483648
      %v4010 = vmul.f32 %v4001, 1.442695
      %v4011 = vpow.pop %v4010
      %v4012 = vmul.f32 %v4002, 1.442695
      %v4013 = vpow.pop %v4012
      %v4014 = vmul.f32 %v4003, 1.442695
      %v4015 = vpow.pop %v4014
      %v4016 = vmul.f32 %v4004, 1.442695
      %v4017 = vpow.pop %v4016
      %v4018 = vmul.f32 %v4005, 1.442695
      %v4019 = vpow.pop %v4018
      %v4020 = vmul.f32 %v4006, 1.442695
      %v4021 = vpow.pop %v4020
      %v4022 = vmul.f32 %v4007, 1.442695
      %v4023 = vpow.pop %v4022
      %v4024 = vmul.f32 %v4008, 1.442695
      %v4025 = vpow.pop %v4024
      %v4026 = vmul.f32 %v4009, 1.442695
      %v4027 = vpow.pop %v4026
      %v4028 = vadd.f32 %v4011, 1.0
      %v4029 = vadd.f32 %v4013, 1.0
      %v4030 = vadd.f32 %v4015, 1.0
      %v4031 = vadd.f32 %v4017, 1.0
      %v4032 = vadd.f32 %v4019, 1.0
      %v4033 = vadd.f32 %v4021, 1.0
      %v4034 = vadd.f32 %v4023, 1.0
      %v4035 = vadd.f32 %v4025, 1.0
      %v4036 = vadd.f32 %v4027, 1.0
      %v4037 = vrcp.pop %v4028
      %v4038 = vmul.f32 %v4028, %v4037
      %v4039 = vsub.f32 1.0, %v4038
      %v4040 = vmul.f32 %v4037, %v4039
      %v4041 = vadd.f32 %v4037, %v4040
      %vm4042 = vweird.f32 %v4028
      %vm4043 = vweird.f32 %v4037
      %vm4044 = vmor %vm4042, %vm4043
      %v4045 = vsel %vm4044, %v4037, %v4041
      %v4046 = vand.u32 2147483647, %v4028
      %vm4047 = vcmp.eq.f32.partialorder %v4046, 8.507059e+37
      %v4048 = vand.u32 %v4028, 2147483648
      %v4049 = vor.u32 1.1754944e-38, %v4048
      %v4050 = vsel %vm4047, %v4049, %v4045
      %v4051 = vmul.f32 1.0, %v4050
      %v4052 = vrcp.pop %v4029
      %v4053 = vmul.f32 %v4029, %v4052
      %v4054 = vsub.f32 1.0, %v4053
      %v4055 = vmul.f32 %v4052, %v4054
      %v4056 = vadd.f32 %v4052, %v4055
      %vm4057 = vweird.f32 %v4029
      %vm4058 = vweird.f32 %v4052
      %vm4059 = vmor %vm4057, %vm4058
      %v4060 = vsel %vm4059, %v4052, %v4056
      %v4061 = vand.u32 2147483647, %v4029
      %vm4062 = vcmp.eq.f32.partialorder %v4061, 8.507059e+37
      %v4063 = vand.u32 %v4029, 2147483648
      %v4064 = vor.u32 1.1754944e-38, %v4063
      %v4065 = vsel %vm4062, %v4064, %v4060
      %v4066 = vmul.f32 1.0, %v4065
      %v4067 = vrcp.pop %v4030
      %v4068 = vmul.f32 %v4030, %v4067
      %v4069 = vsub.f32 1.0, %v4068
      %v4070 = vmul.f32 %v4067, %v4069
      %v4071 = vadd.f32 %v4067, %v4070
      %vm4072 = vweird.f32 %v4030
      %vm4073 = vweird.f32 %v4067
      %vm4074 = vmor %vm4072, %vm4073
      %v4075 = vsel %vm4074, %v4067, %v4071
      %v4076 = vand.u32 2147483647, %v4030
      %vm4077 = vcmp.eq.f32.partialorder %v4076, 8.507059e+37
      %v4078 = vand.u32 %v4030, 2147483648
      %v4079 = vor.u32 1.1754944e-38, %v4078
      %v4080 = vsel %vm4077, %v4079, %v4075
      %v4081 = vmul.f32 1.0, %v4080
      %v4082 = vrcp.pop %v4031
      %v4083 = vmul.f32 %v4031, %v4082
      %v4084 = vsub.f32 1.0, %v4083
      %v4085 = vmul.f32 %v4082, %v4084
      %v4086 = vadd.f32 %v4082, %v4085
      %vm4087 = vweird.f32 %v4031
      %vm4088 = vweird.f32 %v4082
      %vm4089 = vmor %vm4087, %vm4088
      %v4090 = vsel %vm4089, %v4082, %v4086
      %v4091 = vand.u32 2147483647, %v4031
      %vm4092 = vcmp.eq.f32.partialorder %v4091, 8.507059e+37
      %v4093 = vand.u32 %v4031, 2147483648
      %v4094 = vor.u32 1.1754944e-38, %v4093
      %v4095 = vsel %vm4092, %v4094, %v4090
      %v4096 = vmul.f32 1.0, %v4095
      %v4097 = vrcp.pop %v4032
      %v4098 = vmul.f32 %v4032, %v4097
      %v4099 = vsub.f32 1.0, %v4098
      %v4100 = vmul.f32 %v4097, %v4099
      %v4101 = vadd.f32 %v4097, %v4100
      %vm4102 = vweird.f32 %v4032
      %vm4103 = vweird.f32 %v4097
      %vm4104 = vmor %vm4102, %vm4103
      %v4105 = vsel %vm4104, %v4097, %v4101
      %v4106 = vand.u32 2147483647, %v4032
      %vm4107 = vcmp.eq.f32.partialorder %v4106, 8.507059e+37
      %v4108 = vand.u32 %v4032, 2147483648
      %v4109 = vor.u32 1.1754944e-38, %v4108
      %v4110 = vsel %vm4107, %v4109, %v4105
      %v4111 = vmul.f32 1.0, %v4110
      %v4112 = vrcp.pop %v4033
      %v4113 = vmul.f32 %v4033, %v4112
      %v4114 = vsub.f32 1.0, %v4113
      %v4115 = vmul.f32 %v4112, %v4114
      %v4116 = vadd.f32 %v4112, %v4115
      %vm4117 = vweird.f32 %v4033
      %vm4118 = vweird.f32 %v4112
      %vm4119 = vmor %vm4117, %vm4118
      %v4120 = vsel %vm4119, %v4112, %v4116
      %v4121 = vand.u32 2147483647, %v4033
      %vm4122 = vcmp.eq.f32.partialorder %v4121, 8.507059e+37
      %v4123 = vand.u32 %v4033, 2147483648
      %v4124 = vor.u32 1.1754944e-38, %v4123
      %v4125 = vsel %vm4122, %v4124, %v4120
      %v4126 = vmul.f32 1.0, %v4125
      %v4127 = vrcp.pop %v4034
      %v4128 = vmul.f32 %v4034, %v4127
      %v4129 = vsub.f32 1.0, %v4128
      %v4130 = vmul.f32 %v4127, %v4129
      %v4131 = vadd.f32 %v4127, %v4130
      %vm4132 = vweird.f32 %v4034
      %vm4133 = vweird.f32 %v4127
      %vm4134 = vmor %vm4132, %vm4133
      %v4135 = vsel %vm4134, %v4127, %v4131
      %v4136 = vand.u32 2147483647, %v4034
      %vm4137 = vcmp.eq.f32.partialorder %v4136, 8.507059e+37
      %v4138 = vand.u32 %v4034, 2147483648
      %v4139 = vor.u32 1.1754944e-38, %v4138
      %v4140 = vsel %vm4137, %v4139, %v4135
      %v4141 = vmul.f32 1.0, %v4140
      %v4142 = vrcp.pop %v4035
      %v4143 = vmul.f32 %v4035, %v4142
      %v4144 = vsub.f32 1.0, %v4143
      %v4145 = vmul.f32 %v4142, %v4144
      %v4146 = vadd.f32 %v4142, %v4145
      %vm4147 = vweird.f32 %v4035
      %vm4148 = vweird.f32 %v4142
      %vm4149 = vmor %vm4147, %vm4148
      %v4150 = vsel %vm4149, %v4142, %v4146
      %v4151 = vand.u32 2147483647, %v4035
      %vm4152 = vcmp.eq.f32.partialorder %v4151, 8.507059e+37
      %v4153 = vand.u32 %v4035, 2147483648
      %v4154 = vor.u32 1.1754944e-38, %v4153
      %v4155 = vsel %vm4152, %v4154, %v4150
      %v4156 = vmul.f32 1.0, %v4155
      %v4157 = vrcp.pop %v4036
      %v4158 = vmul.f32 %v4036, %v4157
      %v4159 = vsub.f32 1.0, %v4158
      %v4160 = vmul.f32 %v4157, %v4159
      %v4161 = vadd.f32 %v4157, %v4160
      %vm4162 = vweird.f32 %v4036
      %vm4163 = vweird.f32 %v4157
      %vm4164 = vmor %vm4162, %vm4163
      %v4165 = vsel %vm4164, %v4157, %v4161
      %v4166 = vand.u32 2147483647, %v4036
      %vm4167 = vcmp.eq.f32.partialorder %v4166, 8.507059e+37
      %v4168 = vand.u32 %v4036, 2147483648
      %v4169 = vor.u32 1.1754944e-38, %v4168
      %v4170 = vsel %vm4167, %v4169, %v4165
      %v4171 = vmul.f32 1.0, %v4170
      %v4172 = vmul.f32 %v3978, %v4051
      %v4173 = vmul.f32 %v3980, %v4066
      %v4174 = vmul.f32 %v3983, %v4081
      %v4175 = vmul.f32 %v3985, %v4096
      %v4176 = vmul.f32 %v3988, %v4111
      %v4177 = vmul.f32 %v3990, %v4126
      %v4178 = vmul.f32 %v3993, %v4141
      %v4179 = vmul.f32 %v3995, %v4156
      %v4180 = vmul.f32 %v3998, %v4171
      %v4181 = vpack.c.bf16 %v4173, %v4172
      %v4182 = vpack.c.bf16 %v4175, %v4174
      %v4183 = vpack.c.bf16 %v4177, %v4176
      %v4184 = vpack.c.bf16 %v4179, %v4178
      %v4185 = vpack.c.bf16 %v4180, %v4180
      %s4186 = scalar_lea.vmem %s618, 60
      %v4187 = vld [vmem:[%s4186] sm:$0xf]
      %v4188 = vld [vmem:[%s4186 + $0x4] sm:$0xf]
      %v4189 = vld [vmem:[%s4186 + $0x8] sm:$0xf]
      %v4190 = vld [vmem:[%s4186 + $0xc] sm:$0xf]
      %v4191 = vld [vmem:[%s4186 + $0x10] sm:$0xf]
      %v4192 = vld [vmem:[%s4186 + $0x14] sm:$0xf]
      %v4193 = vld [vmem:[%s4186 + $0x18] sm:$0xf]
      %v4194 = vld [vmem:[%s4186 + $0x1c] sm:$0xf]
      %v4195 = vld [vmem:[%s4186 + $0x20] sm:$0xf]
      %v4196 = vld [vmem:[%s4186 + $0x24] sm:$0xf]
      %v4197 = vld [vmem:[%s4186 + $0x28] sm:$0xf]
      %v4198 = vld [vmem:[%s4186 + $0x2c] sm:$0xf]
      %v4199 = vld [vmem:[%s4186 + $0x30] sm:$0xf]
      %v4200 = vld [vmem:[%s4186 + $0x34] sm:$0xf]
      %v4201 = vld [vmem:[%s4186 + $0x38] sm:$0xf]
      %v4202 = vld [vmem:[%s623 + $0x10] sm:$0x1]
      %v4203 = vperm.slane %v4202, 0
      %v4219 = vunpack.c.l.b16 %v4187
      %v4220 = vunpack.c.l.b16 %v4188
      %v4221 = vunpack.c.l.b16 %v4189
      %v4222 = vunpack.c.l.b16 %v4190
      %v4223 = vunpack.c.l.b16 %v4191
      %v4224 = vunpack.c.l.b16 %v4192
      %v4225 = vunpack.c.l.b16 %v4193
      %v4226 = vunpack.c.l.b16 %v4194
      %v4227 = vunpack.c.l.b16 %v4195
      %v4228 = vunpack.c.l.b16 %v4196
      %v4229 = vunpack.c.l.b16 %v4197
      %v4230 = vunpack.c.l.b16 %v4198
      %v4231 = vunpack.c.l.b16 %v4199
      %v4232 = vunpack.c.l.b16 %v4200
      %v4233 = vunpack.c.l.b16 %v4201
      %v4234 = vpack.c.b16 %v4220, %v4219
      %v4235 = vpack.c.b16 %v4222, %v4221
      %v4236 = vpack.c.b16 %v4224, %v4223
      %v4237 = vpack.c.b16 %v4226, %v4225
      %v4238 = vpack.c.b16 %v4228, %v4227
      %v4239 = vpack.c.b16 %v4230, %v4229
      %v4240 = vpack.c.b16 %v4232, %v4231
      %v4241 = vpack.c.b16 %v4233, %v4233
      %v4250 = vsel %vm1397, %v4181, 0
      %v4253 = vsel %vm1397, %v4182, 0
      %v4256 = vsel %vm1397, %v4183, 0
      %v4259 = vsel %vm1397, %v4184, 0
      %v4262 = vsel %vm1397, %v4185, 0
      %v4265 = vsel %vm1413, %v4241, 0
      %4267 = vmatpush.bf16.msra.mxu0 %v4265
      %4268 = vmatpush.bf16.msra.mxu0 %v4240
      %4269 = vmatpush.bf16.msra.mxu0 %v4239
      %4270 = vmatpush.bf16.msra.mxu0 %v4238
      %4271 = vmatpush.bf16.msra.mxu0 %v4237
      %4272 = vmatpush.bf16.msra.mxu0 %v4236
      %4273 = vmatpush.bf16.msra.mxu0 %v4235
      %4274 = vmatpush.bf16.msra.mxu0 %v4234
      %4275 = vmatmul.bf16.gmra.mxu0 %v4250
      %v4276 = vpop.f32.mrf.mxu0
      %v4277 = vadd.f32 %v4203, %v4276
      %v4278 = vpop.f32.mrf.mxu0
      %v4279 = vadd.f32 %v4203, %v4278
      %4280 = vmatmul.bf16.gmra.mxu0 %v4253
      %v4281 = vpop.f32.mrf.mxu0
      %v4282 = vadd.f32 %v4203, %v4281
      %v4283 = vpop.f32.mrf.mxu0
      %v4284 = vadd.f32 %v4203, %v4283
      %4285 = vmatmul.bf16.gmra.mxu0 %v4256
      %v4286 = vpop.f32.mrf.mxu0
      %v4287 = vadd.f32 %v4203, %v4286
      %v4288 = vpop.f32.mrf.mxu0
      %v4289 = vadd.f32 %v4203, %v4288
      %4290 = vmatmul.bf16.gmra.mxu0 %v4259
      %v4291 = vpop.f32.mrf.mxu0
      %v4292 = vadd.f32 %v4203, %v4291
      %v4293 = vpop.f32.mrf.mxu0
      %v4294 = vadd.f32 %v4203, %v4293
      %4295 = vmatmul.bf16.gmra.mxu0 %v4262
      %v4296 = vpop.f32.mrf.mxu0
      %v4297 = vadd.f32 %v4203, %v4296
      %v4298 = vpop.f32.mrf.mxu0
      %4299 = vdwg.mxu0
      %v4300 = vmul.f32 %v4277, 0.5
      %v4301 = vmul.f32 %v4279, 0.5
      %v4302 = vmul.f32 %v4282, 0.5
      %v4303 = vmul.f32 %v4284, 0.5
      %v4304 = vmul.f32 %v4287, 0.5
      %v4305 = vmul.f32 %v4289, 0.5
      %v4306 = vmul.f32 %v4292, 0.5
      %v4307 = vmul.f32 %v4294, 0.5
      %v4308 = vmul.f32 %v4297, 0.5
      %v4309 = vadd.f32 %v3698, %v4300
      %v4310 = vadd.f32 %v3699, %v4301
      %v4311 = vadd.f32 %v3700, %v4302
      %v4312 = vadd.f32 %v3701, %v4303
      %v4313 = vadd.f32 %v3702, %v4304
      %v4314 = vadd.f32 %v3703, %v4305
      %v4315 = vadd.f32 %v3704, %v4306
      %v4316 = vadd.f32 %v3705, %v4307
      %v4317 = vadd.f32 %v3706, %v4308
      %v4318 = vld [vmem:[%s623 + $0x11] sm:$0x1]
      %v4319 = vld [vmem:[%s623 + $0x12] sm:$0x1]
      %v4320 = vsel %vm850, %v4309, 0.0
      %4321 = vadd.xlane.f32.xlu0 %v4320
      %v4322 = vpop.xlane.xlu0 %4321
      %v4323 = vsel %vm850, %v4310, 0.0
      %4324 = vadd.xlane.f32.xlu0 %v4323
      %v4325 = vpop.xlane.xlu0 %4324
      %v4326 = vsel %vm850, %v4311, 0.0
      %4327 = vadd.xlane.f32.xlu0 %v4326
      %v4328 = vpop.xlane.xlu0 %4327
      %v4329 = vsel %vm850, %v4312, 0.0
      %4330 = vadd.xlane.f32.xlu0 %v4329
      %v4331 = vpop.xlane.xlu0 %4330
      %v4332 = vsel %vm850, %v4313, 0.0
      %4333 = vadd.xlane.f32.xlu0 %v4332
      %v4334 = vpop.xlane.xlu0 %4333
      %v4335 = vsel %vm850, %v4314, 0.0
      %4336 = vadd.xlane.f32.xlu0 %v4335
      %v4337 = vpop.xlane.xlu0 %4336
      %v4338 = vsel %vm850, %v4315, 0.0
      %4339 = vadd.xlane.f32.xlu0 %v4338
      %v4340 = vpop.xlane.xlu0 %4339
      %v4341 = vsel %vm850, %v4316, 0.0
      %4342 = vadd.xlane.f32.xlu0 %v4341
      %v4343 = vpop.xlane.xlu0 %4342
      %v4344 = vsel %vm850, %v4317, 0.0
      %4345 = vadd.xlane.f32.xlu0 %v4344
      %v4346 = vpop.xlane.xlu0 %4345
      %v4347 = vmul.f32 %v4322, %v884
      %v4348 = vmul.f32 %v4325, %v884
      %v4349 = vmul.f32 %v4328, %v884
      %v4350 = vmul.f32 %v4331, %v884
      %v4351 = vmul.f32 %v4334, %v884
      %v4352 = vmul.f32 %v4337, %v884
      %v4353 = vmul.f32 %v4340, %v884
      %v4354 = vmul.f32 %v4343, %v884
      %v4355 = vmul.f32 %v4346, %v884
      %v4356 = vsub.f32 %v4309, %v4347
      %v4357 = vsub.f32 %v4310, %v4348
      %v4358 = vsub.f32 %v4311, %v4349
      %v4359 = vsub.f32 %v4312, %v4350
      %v4360 = vsub.f32 %v4313, %v4351
      %v4361 = vsub.f32 %v4314, %v4352
      %v4362 = vsub.f32 %v4315, %v4353
      %v4363 = vsub.f32 %v4316, %v4354
      %v4364 = vsub.f32 %v4317, %v4355
      %v4365 = vmul.f32 %v4356, %v4356
      %v4366 = vmul.f32 %v4357, %v4357
      %v4367 = vmul.f32 %v4358, %v4358
      %v4368 = vmul.f32 %v4359, %v4359
      %v4369 = vmul.f32 %v4360, %v4360
      %v4370 = vmul.f32 %v4361, %v4361
      %v4371 = vmul.f32 %v4362, %v4362
      %v4372 = vmul.f32 %v4363, %v4363
      %v4373 = vmul.f32 %v4364, %v4364
      %v4374 = vsel %vm850, %v4365, 0.0
      %4375 = vadd.xlane.f32.xlu0 %v4374
      %v4376 = vpop.xlane.xlu0 %4375
      %v4377 = vsel %vm850, %v4366, 0.0
      %4378 = vadd.xlane.f32.xlu0 %v4377
      %v4379 = vpop.xlane.xlu0 %4378
      %v4380 = vsel %vm850, %v4367, 0.0
      %4381 = vadd.xlane.f32.xlu0 %v4380
      %v4382 = vpop.xlane.xlu0 %4381
      %v4383 = vsel %vm850, %v4368, 0.0
      %4384 = vadd.xlane.f32.xlu0 %v4383
      %v4385 = vpop.xlane.xlu0 %4384
      %v4386 = vsel %vm850, %v4369, 0.0
      %4387 = vadd.xlane.f32.xlu0 %v4386
      %v4388 = vpop.xlane.xlu0 %4387
      %v4389 = vsel %vm850, %v4370, 0.0
      %4390 = vadd.xlane.f32.xlu0 %v4389
      %v4391 = vpop.xlane.xlu0 %4390
      %v4392 = vsel %vm850, %v4371, 0.0
      %4393 = vadd.xlane.f32.xlu0 %v4392
      %v4394 = vpop.xlane.xlu0 %4393
      %v4395 = vsel %vm850, %v4372, 0.0
      %4396 = vadd.xlane.f32.xlu0 %v4395
      %v4397 = vpop.xlane.xlu0 %4396
      %v4398 = vsel %vm850, %v4373, 0.0
      %4399 = vadd.xlane.f32.xlu0 %v4398
      %v4400 = vpop.xlane.xlu0 %4399
      %v4401 = vmul.f32 %v4376, %v884
      %v4402 = vmul.f32 %v4379, %v884
      %v4403 = vmul.f32 %v4382, %v884
      %v4404 = vmul.f32 %v4385, %v884
      %v4405 = vmul.f32 %v4388, %v884
      %v4406 = vmul.f32 %v4391, %v884
      %v4407 = vmul.f32 %v4394, %v884
      %v4408 = vmul.f32 %v4397, %v884
      %v4409 = vmul.f32 %v4400, %v884
      %v4410 = vadd.f32 %v4401, 1e-05
      %v4411 = vadd.f32 %v4402, 1e-05
      %v4412 = vadd.f32 %v4403, 1e-05
      %v4413 = vadd.f32 %v4404, 1e-05
      %v4414 = vadd.f32 %v4405, 1e-05
      %v4415 = vadd.f32 %v4406, 1e-05
      %v4416 = vadd.f32 %v4407, 1e-05
      %v4417 = vadd.f32 %v4408, 1e-05
      %v4418 = vadd.f32 %v4409, 1e-05
      %v4419 = vrsqrt.pop %v4410
      %v4420 = vmul.f32 %v4419, %v4410
      %v4421 = vmul.f32 %v4420, %v4419
      %v4422 = vmul.f32 0.5, %v4421
      %v4423 = vsub.f32 1.5, %v4422
      %v4424 = vmul.f32 %v4419, %v4423
      %vm4425 = vweird.f32 %v4410
      %vm4426 = vweird.f32 %v4419
      %vm4427 = vmor %vm4425, %vm4426
      %v4428 = vsel %vm4427, %v4419, %v4424
      %v4429 = vrsqrt.pop %v4411
      %v4430 = vmul.f32 %v4429, %v4411
      %v4431 = vmul.f32 %v4430, %v4429
      %v4432 = vmul.f32 0.5, %v4431
      %v4433 = vsub.f32 1.5, %v4432
      %v4434 = vmul.f32 %v4429, %v4433
      %vm4435 = vweird.f32 %v4411
      %vm4436 = vweird.f32 %v4429
      %vm4437 = vmor %vm4435, %vm4436
      %v4438 = vsel %vm4437, %v4429, %v4434
      %v4439 = vrsqrt.pop %v4412
      %v4440 = vmul.f32 %v4439, %v4412
      %v4441 = vmul.f32 %v4440, %v4439
      %v4442 = vmul.f32 0.5, %v4441
      %v4443 = vsub.f32 1.5, %v4442
      %v4444 = vmul.f32 %v4439, %v4443
      %vm4445 = vweird.f32 %v4412
      %vm4446 = vweird.f32 %v4439
      %vm4447 = vmor %vm4445, %vm4446
      %v4448 = vsel %vm4447, %v4439, %v4444
      %v4449 = vrsqrt.pop %v4413
      %v4450 = vmul.f32 %v4449, %v4413
      %v4451 = vmul.f32 %v4450, %v4449
      %v4452 = vmul.f32 0.5, %v4451
      %v4453 = vsub.f32 1.5, %v4452
      %v4454 = vmul.f32 %v4449, %v4453
      %vm4455 = vweird.f32 %v4413
      %vm4456 = vweird.f32 %v4449
      %vm4457 = vmor %vm4455, %vm4456
      %v4458 = vsel %vm4457, %v4449, %v4454
      %v4459 = vrsqrt.pop %v4414
      %v4460 = vmul.f32 %v4459, %v4414
      %v4461 = vmul.f32 %v4460, %v4459
      %v4462 = vmul.f32 0.5, %v4461
      %v4463 = vsub.f32 1.5, %v4462
      %v4464 = vmul.f32 %v4459, %v4463
      %vm4465 = vweird.f32 %v4414
      %vm4466 = vweird.f32 %v4459
      %vm4467 = vmor %vm4465, %vm4466
      %v4468 = vsel %vm4467, %v4459, %v4464
      %v4469 = vrsqrt.pop %v4415
      %v4470 = vmul.f32 %v4469, %v4415
      %v4471 = vmul.f32 %v4470, %v4469
      %v4472 = vmul.f32 0.5, %v4471
      %v4473 = vsub.f32 1.5, %v4472
      %v4474 = vmul.f32 %v4469, %v4473
      %vm4475 = vweird.f32 %v4415
      %vm4476 = vweird.f32 %v4469
      %vm4477 = vmor %vm4475, %vm4476
      %v4478 = vsel %vm4477, %v4469, %v4474
      %v4479 = vrsqrt.pop %v4416
      %v4480 = vmul.f32 %v4479, %v4416
      %v4481 = vmul.f32 %v4480, %v4479
      %v4482 = vmul.f32 0.5, %v4481
      %v4483 = vsub.f32 1.5, %v4482
      %v4484 = vmul.f32 %v4479, %v4483
      %vm4485 = vweird.f32 %v4416
      %vm4486 = vweird.f32 %v4479
      %vm4487 = vmor %vm4485, %vm4486
      %v4488 = vsel %vm4487, %v4479, %v4484
      %v4489 = vrsqrt.pop %v4417
      %v4490 = vmul.f32 %v4489, %v4417
      %v4491 = vmul.f32 %v4490, %v4489
      %v4492 = vmul.f32 0.5, %v4491
      %v4493 = vsub.f32 1.5, %v4492
      %v4494 = vmul.f32 %v4489, %v4493
      %vm4495 = vweird.f32 %v4417
      %vm4496 = vweird.f32 %v4489
      %vm4497 = vmor %vm4495, %vm4496
      %v4498 = vsel %vm4497, %v4489, %v4494
      %v4499 = vrsqrt.pop %v4418
      %v4500 = vmul.f32 %v4499, %v4418
      %v4501 = vmul.f32 %v4500, %v4499
      %v4502 = vmul.f32 0.5, %v4501
      %v4503 = vsub.f32 1.5, %v4502
      %v4504 = vmul.f32 %v4499, %v4503
      %vm4505 = vweird.f32 %v4418
      %vm4506 = vweird.f32 %v4499
      %vm4507 = vmor %vm4505, %vm4506
      %v4508 = vsel %vm4507, %v4499, %v4504
      %v4509 = vmul.f32 %v4356, %v4428
      %v4510 = vmul.f32 %v4357, %v4438
      %v4511 = vmul.f32 %v4358, %v4448
      %v4512 = vmul.f32 %v4359, %v4458
      %v4513 = vmul.f32 %v4360, %v4468
      %v4514 = vmul.f32 %v4361, %v4478
      %v4515 = vmul.f32 %v4362, %v4488
      %v4516 = vmul.f32 %v4363, %v4498
      %v4517 = vmul.f32 %v4364, %v4508
      %v4518 = vperm.slane %v4318, 0
      %v4519 = vmul.f32 %v4509, %v4518
      %v4520 = vmul.f32 %v4510, %v4518
      %v4521 = vmul.f32 %v4511, %v4518
      %v4522 = vmul.f32 %v4512, %v4518
      %v4523 = vmul.f32 %v4513, %v4518
      %v4524 = vmul.f32 %v4514, %v4518
      %v4525 = vmul.f32 %v4515, %v4518
      %v4526 = vmul.f32 %v4516, %v4518
      %v4527 = vmul.f32 %v4517, %v4518
      %v4528 = vperm.slane %v4319, 0
      %v4529 = vadd.f32 %v4519, %v4528
      %v4530 = vadd.f32 %v4520, %v4528
      %v4531 = vadd.f32 %v4521, %v4528
      %v4532 = vadd.f32 %v4522, %v4528
      %v4533 = vadd.f32 %v4523, %v4528
      %v4534 = vadd.f32 %v4524, %v4528
      %v4535 = vadd.f32 %v4525, %v4528
      %v4536 = vadd.f32 %v4526, %v4528
      %v4537 = vadd.f32 %v4527, %v4528
      %4538 = vst.msk [vmem:[#allocation2] sm:$0xff] %vm850, %v4529
      %4539 = vst.msk [vmem:[#allocation2 + $0x8] sm:$0xff] %vm850, %v4530
      %4540 = vst.msk [vmem:[#allocation2 + $0x10] sm:$0xff] %vm850, %v4531
      %4541 = vst.msk [vmem:[#allocation2 + $0x18] sm:$0xff] %vm850, %v4532
      %4542 = vst.msk [vmem:[#allocation2 + $0x20] sm:$0xff] %vm850, %v4533
      %4543 = vst.msk [vmem:[#allocation2 + $0x28] sm:$0xff] %vm850, %v4534
      %4544 = vst.msk [vmem:[#allocation2 + $0x30] sm:$0xff] %vm850, %v4535
      %4545 = vst.msk [vmem:[#allocation2 + $0x38] sm:$0xff] %vm850, %v4536
      %4546 = vst.msk [vmem:[#allocation2 + $0x40] sm:$0xff] %vm850, %v4537
      %4547 = vst.msk [vmem:[%s640] sm:$0xff] %vm850, %v4529
      %4548 = vst.msk [vmem:[%s640 + $0x8] sm:$0xff] %vm850, %v4530
      %4549 = vst.msk [vmem:[%s640 + $0x10] sm:$0xff] %vm850, %v4531
      %4550 = vst.msk [vmem:[%s640 + $0x18] sm:$0xff] %vm850, %v4532
      %4551 = vst.msk [vmem:[%s640 + $0x20] sm:$0xff] %vm850, %v4533
      %4552 = vst.msk [vmem:[%s640 + $0x28] sm:$0xff] %vm850, %v4534
      %4553 = vst.msk [vmem:[%s640 + $0x30] sm:$0xff] %vm850, %v4535
      %4554 = vst.msk [vmem:[%s640 + $0x38] sm:$0xff] %vm850, %v4536
      %4555 = vst.msk [vmem:[%s640 + $0x40] sm:$0xff] %vm850, %v4537
      %p4556 = scmp.eq.s32.totalorder %s34, 1
      // Predicated region
      $region81: #{dpd_forward.1} parent=75 // pred_check
        %p4557 = pneg %p4556
      $region82: #{dpd_forward.1} parent=75 // pred_check_branch
        %4559 = sbr.rel (%p4557) target = $region84
      $region83: #{dpd_forward.1} parent=75 // pred_region
        %v4560 = vld [vmem:[%s6] sm:$0x1]
        %v4561 = vperm.slane %v4560, 0
        %v4562 = vmul.f32 %v4529, %v4561
        %v4563 = vmul.f32 %v4530, %v4561
        %v4564 = vmul.f32 %v4531, %v4561
        %v4565 = vmul.f32 %v4532, %v4561
        %v4566 = vmul.f32 %v4533, %v4561
        %v4567 = vmul.f32 %v4534, %v4561
        %v4568 = vmul.f32 %v4535, %v4561
        %v4569 = vmul.f32 %v4536, %v4561
        %v4570 = vmul.f32 %v4537, %v4561
        %v4571 = vadd.f32 %v4562, 0.0
        %v4572 = vadd.f32 %v4563, 0.0
        %v4573 = vadd.f32 %v4564, 0.0
        %v4574 = vadd.f32 %v4565, 0.0
        %v4575 = vadd.f32 %v4566, 0.0
        %v4576 = vadd.f32 %v4567, 0.0
        %v4577 = vadd.f32 %v4568, 0.0
        %v4578 = vadd.f32 %v4569, 0.0
        %v4579 = vadd.f32 %v4570, 0.0
        %v4580 = vrot.slane %v4529, 1
        %v4581 = vrot.slane %v4530, 1
        %v4582 = vrot.slane %v4531, 1
        %v4583 = vrot.slane %v4532, 1
        %v4584 = vrot.slane %v4533, 1
        %v4585 = vrot.slane %v4534, 1
        %v4586 = vrot.slane %v4535, 1
        %v4587 = vrot.slane %v4536, 1
        %v4588 = vrot.slane %v4537, 1
        %v4589 = vsel %vm3144, %v4587, %v4588
        %v4590 = vsel %vm3144, %v4586, %v4587
        %v4591 = vsel %vm3144, %v4585, %v4586
        %v4592 = vsel %vm3144, %v4584, %v4585
        %v4593 = vsel %vm3144, %v4583, %v4584
        %v4594 = vsel %vm3144, %v4582, %v4583
        %v4595 = vsel %vm3144, %v4581, %v4582
        %v4596 = vsel %vm3144, %v4580, %v4581
        %v4597 = vsel %vm3144, %v4588, %v4580
        %v4598 = vld [vmem:[%s6 + $0x1] sm:$0x1]
        %v4599 = vperm.slane %v4598, 0
        %v4600 = vmul.f32 %v4596, %v4599
        %v4601 = vmul.f32 %v4595, %v4599
        %v4602 = vmul.f32 %v4594, %v4599
        %v4603 = vmul.f32 %v4593, %v4599
        %v4604 = vmul.f32 %v4592, %v4599
        %v4605 = vmul.f32 %v4591, %v4599
        %v4606 = vmul.f32 %v4590, %v4599
        %v4607 = vmul.f32 %v4589, %v4599
        %v4608 = vmul.f32 %v4597, %v4599
        %v4609 = vadd.f32 %v4571, %v4600
        %v4610 = vadd.f32 %v4572, %v4601
        %v4611 = vadd.f32 %v4573, %v4602
        %v4612 = vadd.f32 %v4574, %v4603
        %v4613 = vadd.f32 %v4575, %v4604
        %v4614 = vadd.f32 %v4576, %v4605
        %v4615 = vadd.f32 %v4577, %v4606
        %v4616 = vadd.f32 %v4578, %v4607
        %v4617 = vadd.f32 %v4579, %v4608
        %v4618 = vrot.slane %v4529, 2
        %v4619 = vrot.slane %v4530, 2
        %v4620 = vrot.slane %v4531, 2
        %v4621 = vrot.slane %v4532, 2
        %v4622 = vrot.slane %v4533, 2
        %v4623 = vrot.slane %v4534, 2
        %v4624 = vrot.slane %v4535, 2
        %v4625 = vrot.slane %v4536, 2
        %v4626 = vrot.slane %v4537, 2
        %v4627 = vsel %vm3247, %v4625, %v4626
        %v4628 = vsel %vm3247, %v4624, %v4625
        %v4629 = vsel %vm3247, %v4623, %v4624
        %v4630 = vsel %vm3247, %v4622, %v4623
        %v4631 = vsel %vm3247, %v4621, %v4622
        %v4632 = vsel %vm3247, %v4620, %v4621
        %v4633 = vsel %vm3247, %v4619, %v4620
        %v4634 = vsel %vm3247, %v4618, %v4619
        %v4635 = vsel %vm3247, %v4626, %v4618
        %v4636 = vld [vmem:[%s6 + $0x2] sm:$0x1]
        %v4637 = vperm.slane %v4636, 0
        %v4638 = vmul.f32 %v4634, %v4637
        %v4639 = vmul.f32 %v4633, %v4637
        %v4640 = vmul.f32 %v4632, %v4637
        %v4641 = vmul.f32 %v4631, %v4637
        %v4642 = vmul.f32 %v4630, %v4637
        %v4643 = vmul.f32 %v4629, %v4637
        %v4644 = vmul.f32 %v4628, %v4637
        %v4645 = vmul.f32 %v4627, %v4637
        %v4646 = vmul.f32 %v4635, %v4637
        %v4647 = vadd.f32 %v4609, %v4638
        %v4648 = vadd.f32 %v4610, %v4639
        %v4649 = vadd.f32 %v4611, %v4640
        %v4650 = vadd.f32 %v4612, %v4641
        %v4651 = vadd.f32 %v4613, %v4642
        %v4652 = vadd.f32 %v4614, %v4643
        %v4653 = vadd.f32 %v4615, %v4644
        %v4654 = vadd.f32 %v4616, %v4645
        %v4655 = vadd.f32 %v4617, %v4646
        %v4656 = vsel %vm850, %v4647, 0.0
        %4657 = vadd.xlane.f32.xlu0 %v4656
        %v4658 = vpop.xlane.xlu0 %4657
        %v4659 = vsel %vm850, %v4648, 0.0
        %4660 = vadd.xlane.f32.xlu0 %v4659
        %v4661 = vpop.xlane.xlu0 %4660
        %v4662 = vsel %vm850, %v4649, 0.0
        %4663 = vadd.xlane.f32.xlu0 %v4662
        %v4664 = vpop.xlane.xlu0 %4663
        %v4665 = vsel %vm850, %v4650, 0.0
        %4666 = vadd.xlane.f32.xlu0 %v4665
        %v4667 = vpop.xlane.xlu0 %4666
        %v4668 = vsel %vm850, %v4651, 0.0
        %4669 = vadd.xlane.f32.xlu0 %v4668
        %v4670 = vpop.xlane.xlu0 %4669
        %v4671 = vsel %vm850, %v4652, 0.0
        %4672 = vadd.xlane.f32.xlu0 %v4671
        %v4673 = vpop.xlane.xlu0 %4672
        %v4674 = vsel %vm850, %v4653, 0.0
        %4675 = vadd.xlane.f32.xlu0 %v4674
        %v4676 = vpop.xlane.xlu0 %4675
        %v4677 = vsel %vm850, %v4654, 0.0
        %4678 = vadd.xlane.f32.xlu0 %v4677
        %v4679 = vpop.xlane.xlu0 %4678
        %v4680 = vsel %vm850, %v4655, 0.0
        %4681 = vadd.xlane.f32.xlu0 %v4680
        %v4682 = vpop.xlane.xlu0 %4681
        %v4683 = vld [vmem:[#allocation3] sm:$0x1]
        %v4685 = vperm.slane %v4683, 0
        %v4687 = vadd.f32 %v4658, %v4685
        %v4688 = vadd.f32 %v4661, %v4685
        %v4689 = vadd.f32 %v4664, %v4685
        %v4690 = vadd.f32 %v4667, %v4685
        %v4691 = vadd.f32 %v4670, %v4685
        %v4692 = vadd.f32 %v4673, %v4685
        %v4693 = vadd.f32 %v4676, %v4685
        %v4694 = vadd.f32 %v4679, %v4685
        %v4695 = vadd.f32 %v4682, %v4685
        %vm4696 = vcmask 7168
        %4697 = vst.msk [vmem:[%s645] sm:$0xff] %vm4696, %v4687
        %4698 = vst.msk [vmem:[%s645 + $0x8] sm:$0xff] %vm4696, %v4688
        %4699 = vst.msk [vmem:[%s645 + $0x10] sm:$0xff] %vm4696, %v4689
        %4700 = vst.msk [vmem:[%s645 + $0x18] sm:$0xff] %vm4696, %v4690
        %4701 = vst.msk [vmem:[%s645 + $0x20] sm:$0xff] %vm4696, %v4691
        %4702 = vst.msk [vmem:[%s645 + $0x28] sm:$0xff] %vm4696, %v4692
        %4703 = vst.msk [vmem:[%s645 + $0x30] sm:$0xff] %vm4696, %v4693
        %4704 = vst.msk [vmem:[%s645 + $0x38] sm:$0xff] %vm4696, %v4694
        %4705 = vst.msk [vmem:[%s645 + $0x40] sm:$0xff] %vm4696, %v4695
      $region84: #{dpd_forward.1} parent=75 // pred_fallthru
        _
      %p4706 = scmp.lt.s32.totalorder %s34, 1
      %s4707 = scalar_select %p4706, %s34, 1
      %p4708 = scmp.lt.s32.totalorder %s33, 1
      %s4709 = scalar_select %p4708, %s33, 1
      %s4710 = smul.addr %s4709, 9
      %s4711 = smul.addr %s4707, 18
      %s4712 = sadd.s32 %s4710, %s4711
      %s4713 = smul.addr %s4712, 8
      %s4714 = scalar_lea.vmem %s14, %s4713
      %p4715 = scmp.lt.s32.totalorder %s33, 1
      %s4716 = scalar_select %p4715, %s33, 1
      %s4717 = smul.addr %s4716, 9
      %s4718 = smul.addr %s4717, 8
      %s4719 = scalar_lea.vmem %s15, %s4718
      // Predicated region
      $region85: #{dpd_forward.1} parent=75 // pred_check
        %p4720 = pneg %p390
      $region86: #{dpd_forward.1} parent=75 // pred_check_branch
        %4722 = sbr.rel (%p4720) target = $region88
      $region87: #{dpd_forward.1} parent=75 // pred_region
        _
      $region88: #{dpd_forward.1} parent=75 // pred_fallthru
        _
      // Predicated region
      $region89: #{dpd_forward.1} parent=75 // pred_check
        %p4723 = pneg %p416
      $region90: #{dpd_forward.1} parent=75 // pred_check_branch
        %4725 = sbr.rel (%p4723) target = $region92
      $region91: #{dpd_forward.1} parent=75 // pred_region
        _
      $region92: #{dpd_forward.1} parent=75 // pred_fallthru
        _
    $region76: #{dpd_forward.1} parent=5 // pred_fallthru
      _
    %p4726 = scmp.le.s32.totalorder 2, %s24
    // Predicated region
    $region93: #{dpd_forward.1} parent=5 // pred_check
      %p4727 = pneg %p4726
    $region94: #{dpd_forward.1} parent=5 // pred_check_branch
      %4729 = sbr.rel (%p4727) target = $region96
    $region95: #{dpd_forward.1} parent=5 // pred_region
      %s4730 = ssub.s32 %s24, 2
      // Predicated region
      $region97: #{dpd_forward.1} parent=95 // pred_check
        %p4731 = pneg %p396
      $region98: #{dpd_forward.1} parent=95 // pred_check_branch
        %4733 = sbr.rel (%p4731) target = $region100
      $region99: #{dpd_forward.1} parent=95 // pred_region
        %p4734 = scmp.lt.s32.totalorder %s36, 1
        %s4735 = scalar_select %p4734, %s36, 1
        %p4736 = scmp.lt.s32.totalorder %s35, 1
        %s4737 = scalar_select %p4736, %s35, 1
        %s4738 = smul.addr %s4737, 9
        %s4739 = smul.addr %s4735, 18
        %s4740 = sadd.s32 %s4738, %s4739
        %s4741 = smul.addr %s4740, 8
        %s4742 = scalar_lea.vmem %s14, %s4741
      $region100: #{dpd_forward.1} parent=95 // pred_fallthru
        _
      // Predicated region
      $region101: #{dpd_forward.1} parent=95 // pred_check
        %p4743 = pneg %p422
      $region102: #{dpd_forward.1} parent=95 // pred_check_branch
        %4745 = sbr.rel (%p4743) target = $region104
      $region103: #{dpd_forward.1} parent=95 // pred_region
        %p4746 = scmp.lt.s32.totalorder %s35, 1
        %s4747 = scalar_select %p4746, %s35, 1
        %s4748 = smul.addr %s4747, 9
        %s4749 = smul.addr %s4748, 8
        %s4750 = scalar_lea.vmem %s15, %s4749
      $region104: #{dpd_forward.1} parent=95 // pred_fallthru
        _
    $region96: #{dpd_forward.1} parent=5 // pred_fallthru
      _
  $region6: #{dpd_forward.1} parent=0 // loop_footer
    %s28 = sadd.s32 1, %s24
  $region7: #{dpd_forward.1} parent=0 // loop_footer_branch
    %23 = sbr.rel target = $region3
  $region8: #{dpd_forward.1} parent=0 // loop_exit
    _

</llo_original>
